<compile_context>
chip_gen: v7x
topology: tpu7x:2x2x1
jax: 0.10.0
libtpu: 0.0.40
codegen_flags: <defaults>
</compile_context>

<pallas_src>
import jax
import jax.numpy as jnp
from jax.experimental import pallas as pl
from jax.experimental.pallas import tpu as pltpu


# ---------------------------------------------------------------------------
# Fused kernel: GCN aggregation -> (folded) fc1 -> relu -> fc2
# One grid step processes Bt graphs.
# ---------------------------------------------------------------------------
def sgcn_fused_kernel(at_ref, xd_ref, w1f_ref, b1_ref, w2_ref, b2_ref,
                      o_ref, v_scr):
    """
    at_ref : (Bt, n, n)    bf16  per-graph A_b^T blocks (NO self loops)
    xd_ref : (Bt, C+1, n)  f32   C feature planes (X_b^T) + one row of D^{-1/2}
    w1f_ref: (C, n, h1)    f32   fc1 weight with W_gcn folded in (resident)
    b1_ref : (1, h1)       f32   fc1 bias with GCN bias folded in
    w2_ref : (h1, out)     f32
    b2_ref : (1, out)      f32
    o_ref  : (Bt, out)     f32   logits (dense block, graphs on sublanes)
    v_scr  : (Bt, C, n)    f32   normalized aggregated planes (VMEM scratch)
    """
    C = w1f_ref.shape[0]

    planes = xd_ref[:, :C, :]                         # (Bt, C, n) f32
    dinv = xd_ref[:, C:, :]                           # (Bt, 1, n) f32

    # u = (D^{-1/2} X_b)^T   (column scaling on the node/lane axis; VPU)
    u = planes * dinv
    # (A_b + I) never materialized:  u @ A^T + u  ==  u @ (A + I)^T
    agg = jnp.einsum("bcn,bnm->bcm",
                     u.astype(jnp.bfloat16), at_ref[...],
                     preferred_element_type=jnp.float32)
    # v = (D^{-1/2} (A+I) D^{-1/2} X_b)^T
    v_scr[...] = (agg + u) * dinv

    # fc1 (GCNConv weight/bias pre-folded into w1f / b1):
    # C pushes of (Bt, n) @ (n, h1)  ->  real MXU M dimension (M = Bt).
    z = b1_ref[...] + jnp.dot(v_scr[:, 0, :], w1f_ref[0],
                              preferred_element_type=jnp.float32)
    for c in range(1, C):
        z = z + jnp.dot(v_scr[:, c, :], w1f_ref[c],
                        preferred_element_type=jnp.float32)

    z = jnp.maximum(z, 0.0)          # F.relu; Dropout(p=0) on both sides = identity

    # fc2: (Bt, h1) @ (h1, out), then one dense (Bt, out) writeback per step.
    o_ref[...] = jnp.dot(z, w2_ref[...],
                         preferred_element_type=jnp.float32) + b2_ref[...]


# ---------------------------------------------------------------------------
# Forward (mirrors SGCN.forward)
# ---------------------------------------------------------------------------
def sgcn_forward(params, x, edge_index, edge_attr, y, adj, *, B, num_nodes, Bt=64):
    # mirror the `if x.dim() == 3: squeeze(0)` handling
    if x.ndim == 3:
        x, edge_index, edge_attr, y = x[0], edge_index[0], edge_attr[0], y[0]
    if adj.ndim == 3:
        adj = adj[0]

    n = num_nodes
    f_in = x.shape[-1]
    w_gcn = params["w_gcn"].astype(jnp.float32)            # (f_in, 4)
    b_gcn = params["b_gcn"].reshape(-1).astype(jnp.float32)
    gcn_out = w_gcn.shape[1]                               # 4
    w1 = params["w1"].astype(jnp.float32)                  # (n*4, 32)
    h1 = w1.shape[1]
    w2 = params["w2"].astype(jnp.float32)                  # (32, 2)
    out_dim = w2.shape[1]

    # TODO(synk): self.writer.add_histogram('conv1_x_std', x.std(dim=0)) is a
    # logging-only side effect with no Pallas equivalent; skipped.

    # --- block-diagonal gcn_norm pieces, built per graph: O(B*n^2), never (B*n)^2 ---
    src, dst = edge_index[0], edge_index[1]
    ew = edge_attr.reshape(-1).astype(jnp.float32)
    g = dst // n
    # A_b^T blocks (no self loops materialized): at[b, j, i] = weight of edge j -> i.
    at = jnp.zeros((B, n, n), jnp.float32).at[g, src % n, dst % n].add(ew)
    deg = at.sum(axis=1) + 1.0                             # row sums of (A_b + I)
    dinv = jnp.where(deg > 0.0, jax.lax.rsqrt(deg), 0.0)   # (B, n) D^{-1/2}, f32

    # --- fold GCNConv's linear layer into fc1 (exact: both maps are linear) ---
    # torch x.view(B, -1) flattens the GCN output node-major: index = node*4 + channel.
    w1r = w1.reshape(n, gcn_out, h1)                       # w1r[i, c, :] = W1[i*4+c, :]
    b1_eff = params["b1"].reshape(1, h1).astype(jnp.float32) \
        + jnp.einsum("c,ich->h", b_gcn, w1r)[None, :]
    if f_in <= gcn_out:
        # Aggregate the raw feature planes; fold W_gcn into fc1's weight.
        planes = x.astype(jnp.float32).reshape(B, n, f_in).transpose(0, 2, 1)  # (B,f,n)
        w1f = jnp.einsum("fc,ich->fih", w_gcn, w1r)        # (f_in, n, h1)
    else:
        # Project X @ W_gcn first (tiny XLA matmul) so the kernel streams only 4 planes.
        xw = x.astype(jnp.float32) @ w_gcn                 # (B*n, 4)
        planes = xw.reshape(B, n, gcn_out).transpose(0, 2, 1)
        w1f = w1r.transpose(1, 0, 2)                       # (4, n, h1)
    C = planes.shape[1]

    # planes + D^{-1/2} packed into one tensor -> one fewer DMA descriptor per step.
    xd = jnp.concatenate([planes, dinv[:, None, :]], axis=1)   # (B, C+1, n) f32
    at = at.astype(jnp.bfloat16)                               # dominant HBM term

    # --- batch tiling: Bt graphs per grid step ---
    Bt = max(1, min(Bt, B))
    if Bt < B and Bt % 8 != 0:        # (Bt, out_dim) output block wants sublane multiple
        Bt = max(8, (Bt // 8) * 8)
    n_steps = pl.cdiv(B, Bt)
    B_pad = n_steps * Bt
    if B_pad != B:
        pad = B_pad - B               # padded graphs: zero planes -> logits discarded
        at = jnp.pad(at, ((0, pad), (0, 0), (0, 0)))
        xd = jnp.pad(xd, ((0, pad), (0, 0), (0, 0)))

    flops = B_pad * (2 * C * n * n + 2 * C * n * h1 + 2 * h1 * out_dim)
    bytes_accessed = (at.size * 2
                      + 4 * (xd.size + w1f.size + b1_eff.size + w2.size
                             + params["b2"].size + B_pad * out_dim))

    out = pl.pallas_call(
        sgcn_fused_kernel,
        out_shape=jax.ShapeDtypeStruct((B_pad, out_dim), jnp.float32),
        grid=(n_steps,),
        in_specs=[
            pl.BlockSpec((Bt, n, n), lambda t: (t, 0, 0)),        # A^T (bf16)
            pl.BlockSpec((Bt, C + 1, n), lambda t: (t, 0, 0)),    # planes + dinv (f32)
            pl.BlockSpec((C, n, h1), lambda t: (0, 0, 0)),        # folded fc1 W (resident)
            pl.BlockSpec((1, h1), lambda t: (0, 0)),              # folded fc1 b
            pl.BlockSpec((h1, out_dim), lambda t: (0, 0)),        # fc2 W
            pl.BlockSpec((1, out_dim), lambda t: (0, 0)),         # fc2 b
        ],
        out_specs=pl.BlockSpec((Bt, out_dim), lambda t: (t, 0)),
        scratch_shapes=[pltpu.VMEM((Bt, C, n), jnp.float32)],
        compiler_params=pltpu.CompilerParams(
            dimension_semantics=("parallel",),
            vmem_limit_bytes=32 * 1024 * 1024),
        cost_estimate=pl.CostEstimate(
            flops=flops, transcendentals=0, bytes_accessed=bytes_accessed),
    )(at, xd, w1f, b1_eff, w2, params["b2"].astype(jnp.float32))

    logits = out[:B]
    reg = jnp.zeros((1,), jnp.float32)   # torch.tensor([0], dtype=torch.float)
    return logits, reg


# ---------------------------------------------------------------------------
# Deterministic parameter init (shapes from SGCN.__init__)
# ---------------------------------------------------------------------------
def init_params(key, num_features, num_nodes):
    k1, k2, k3, k4, k5 = jax.random.split(key, 5)
    gcn_out = 4
    fc1_in, fc1_out = num_nodes * gcn_out, 32
    fc2_in, fc2_out = 32, 2

    def glorot(k, shape):
        lim = (6.0 / (shape[0] + shape[1])) ** 0.5
        return jax.random.uniform(k, shape, jnp.float32, -lim, lim)

    def linear_uniform(k, shape):   # kaiming-uniform-ish a la torch.nn.Linear
        lim = 1.0 / (shape[0] ** 0.5)
        return jax.random.uniform(k, shape, jnp.float32, -lim, lim)

    return {
        "w_gcn": glorot(k1, (num_features, gcn_out)),
        "b_gcn": jnp.zeros((1, gcn_out), jnp.float32),
        "w1": linear_uniform(k2, (fc1_in, fc1_out)),
        "b1": linear_uniform(k3, (1, fc1_out)),
        "w2": linear_uniform(k4, (fc2_in, fc2_out)),
        "b2": linear_uniform(k5, (1, fc2_out)),
    }


# ---------------------------------------------------------------------------
if __name__ == "__main__":
    # 128 small graphs of 8 nodes each -> 2 grid steps of Bt=64 graphs.
    B, num_nodes, num_features = 128, 8, 4
    n_total = B * num_nodes

    key = jax.random.PRNGKey(0)
    kx, ke, kp = jax.random.split(key, 3)

    # node features
    x = jax.random.normal(kx, (n_total, num_features), jnp.float32)

    # bidirectional ring graph inside each of the B disjoint graphs
    srcs, dsts = [], []
    for b in range(B):
        off = b * num_nodes
        for i in range(num_nodes):
            j = (i + 1) % num_nodes
            srcs += [off + i, off + j]
            dsts += [off + j, off + i]
    edge_index = jnp.array([srcs, dsts], dtype=jnp.int32)
    E = edge_index.shape[1]
    edge_attr = jax.random.uniform(ke, (E, 1), jnp.float32, 0.5, 1.5)

    y = jnp.zeros((B,), jnp.int32)                        # labels (unused in forward)
    adj = jnp.zeros((n_total, n_total), jnp.float32)      # passed but unused in forward

    params = init_params(kp, num_features, num_nodes)

    logits, reg = sgcn_forward(
        params, x, edge_index, edge_attr, y, adj, B=B, num_nodes=num_nodes, Bt=64
    )
    jax.block_until_ready((logits, reg))

    assert logits.shape == (B, 2) and reg.shape == (1,)
    print("KERNEL_OK")
</pallas_src>

<mosaic_0001>
module attributes {stable_mosaic.version = 11 : i64} {
  func.func @sgcn_fused_kernel(%arg0: i32, %arg1: memref<64x8x8xbf16, #tpu.memory_space<vmem>>, %arg2: memref<64x5x8xf32, #tpu.memory_space<vmem>>, %arg3: memref<4x8x32xf32, #tpu.memory_space<vmem>>, %arg4: memref<1x32xf32, #tpu.memory_space<vmem>>, %arg5: memref<32x2xf32, #tpu.memory_space<vmem>>, %arg6: memref<1x2xf32, #tpu.memory_space<vmem>>, %arg7: memref<64x2xf32, #tpu.memory_space<vmem>>, %arg8: memref<64x4x8xf32, #tpu.memory_space<vmem>>) attributes {dimension_semantics = [#tpu.dimension_semantics<parallel>], iteration_bounds = array<i64: 2>, scalar_prefetch = 0 : i64, scratch_operands = 1 : i64, tpu.core_type = #tpu.core_type<tc>, window_params = [{transform_indices = @transform_0, window_bounds = array<i64: 64, 8, 8>}, {transform_indices = @transform_1, window_bounds = array<i64: 64, 5, 8>}, {pipeline_mode = #tpu.pipeline_mode<synchronous>, transform_indices = @transform_2, window_bounds = array<i64: 4, 8, 32>}, {pipeline_mode = #tpu.pipeline_mode<synchronous>, transform_indices = @transform_3, window_bounds = array<i64: 1, 32>}, {pipeline_mode = #tpu.pipeline_mode<synchronous>, transform_indices = @transform_4, window_bounds = array<i64: 32, 2>}, {pipeline_mode = #tpu.pipeline_mode<synchronous>, transform_indices = @transform_5, window_bounds = array<i64: 1, 2>}, {transform_indices = @transform_6, window_bounds = array<i64: 64, 2>}]} {
    %c0 = arith.constant 0 : index
    %c0_0 = arith.constant 0 : index
    %c0_1 = arith.constant 0 : index
    %0 = vector.load %arg2[%c0, %c0_0, %c0_1] : memref<64x5x8xf32, #tpu.memory_space<vmem>>, vector<64x4x8xf32>
    %c0_2 = arith.constant 0 : index
    %c4 = arith.constant 4 : index
    %c0_3 = arith.constant 0 : index
    %1 = vector.load %arg2[%c0_2, %c4, %c0_3] : memref<64x5x8xf32, #tpu.memory_space<vmem>>, vector<64x1x8xf32>
    %2 = vector.broadcast %1 : vector<64x1x8xf32> to vector<64x4x8xf32>
    %3 = arith.mulf %0, %2 : vector<64x4x8xf32>
    %4 = arith.truncf %3 : vector<64x4x8xf32> to vector<64x4x8xbf16>
    %c0_4 = arith.constant 0 : index
    %c0_5 = arith.constant 0 : index
    %c0_6 = arith.constant 0 : index
    %5 = vector.load %arg1[%c0_4, %c0_5, %c0_6] : memref<64x8x8xbf16, #tpu.memory_space<vmem>>, vector<64x8x8xbf16>
    "tpu.trace_start"() <{level = 10 : i32, message = "bcn,bnm->bcm"}> : () -> ()
    %cst = arith.constant dense<0.000000e+00> : vector<64x4x8xf32>
    %6 = tpu.matmul %4, %5, %cst {dimension_numbers = #tpu.dot_dimension_numbers<[2], [1], [1], [2], [0, 0, 0, 1, 1, 2], [0], [0]>} : vector<64x4x8xbf16>, vector<64x8x8xbf16>, vector<64x4x8xf32> -> vector<64x4x8xf32>
    "tpu.trace_stop"() : () -> ()
    %7 = arith.addf %6, %3 : vector<64x4x8xf32>
    %8 = vector.broadcast %1 : vector<64x1x8xf32> to vector<64x4x8xf32>
    %9 = arith.mulf %7, %8 : vector<64x4x8xf32>
    %c0_7 = arith.constant 0 : index
    %c0_8 = arith.constant 0 : index
    %c0_9 = arith.constant 0 : index
    %10 = vector.load %arg8[%c0_7, %c0_8, %c0_9] : memref<64x4x8xf32, #tpu.memory_space<vmem>>, vector<64x4x8xf32>
    tpu.vector_store %arg8[%c0_7, %c0_8, %c0_9], %9 {strides = array<i32>} : memref<64x4x8xf32, #tpu.memory_space<vmem>>, vector<64x4x8xf32>,
    %c0_10 = arith.constant 0 : index
    %c0_11 = arith.constant 0 : index
    %11 = vector.load %arg4[%c0_10, %c0_11] : memref<1x32xf32, #tpu.memory_space<vmem>>, vector<1x32xf32>
    %c0_12 = arith.constant 0 : index
    %c0_13 = arith.constant 0 : index
    %c0_14 = arith.constant 0 : index
    %12 = vector.load %arg8[%c0_12, %c0_13, %c0_14] : memref<64x4x8xf32, #tpu.memory_space<vmem>>, vector<64x1x8xf32>
    %13 = vector.shape_cast %12 : vector<64x1x8xf32> to vector<64x8xf32>
    %c0_15 = arith.constant 0 : index
    %c0_16 = arith.constant 0 : index
    %c0_17 = arith.constant 0 : index
    %14 = vector.load %arg3[%c0_15, %c0_16, %c0_17] : memref<4x8x32xf32, #tpu.memory_space<vmem>>, vector<1x8x32xf32>
    %15 = vector.shape_cast %14 : vector<1x8x32xf32> to vector<8x32xf32>
    %cst_18 = arith.constant dense<0.000000e+00> : vector<64x32xf32>
    %16 = tpu.matmul %13, %15, %cst_18 {dimension_numbers = #tpu.dot_dimension_numbers<[1], [0], [0], [1], [0, 0, 1, 1], [], []>} : vector<64x8xf32>, vector<8x32xf32>, vector<64x32xf32> -> vector<64x32xf32>
    %17 = vector.broadcast %11 : vector<1x32xf32> to vector<64x32xf32>
    %18 = arith.addf %17, %16 : vector<64x32xf32>
    %c0_19 = arith.constant 0 : index
    %c1 = arith.constant 1 : index
    %c0_20 = arith.constant 0 : index
    %19 = vector.load %arg8[%c0_19, %c1, %c0_20] : memref<64x4x8xf32, #tpu.memory_space<vmem>>, vector<64x1x8xf32>
    %20 = vector.shape_cast %19 : vector<64x1x8xf32> to vector<64x8xf32>
    %c1_21 = arith.constant 1 : index
    %c0_22 = arith.constant 0 : index
    %c0_23 = arith.constant 0 : index
    %21 = vector.load %arg3[%c1_21, %c0_22, %c0_23] : memref<4x8x32xf32, #tpu.memory_space<vmem>>, vector<1x8x32xf32>
    %22 = vector.shape_cast %21 : vector<1x8x32xf32> to vector<8x32xf32>
    %cst_24 = arith.constant dense<0.000000e+00> : vector<64x32xf32>
    %23 = tpu.matmul %20, %22, %cst_24 {dimension_numbers = #tpu.dot_dimension_numbers<[1], [0], [0], [1], [0, 0, 1, 1], [], []>} : vector<64x8xf32>, vector<8x32xf32>, vector<64x32xf32> -> vector<64x32xf32>
    %24 = arith.addf %18, %23 : vector<64x32xf32>
    %c0_25 = arith.constant 0 : index
    %c2 = arith.constant 2 : index
    %c0_26 = arith.constant 0 : index
    %25 = vector.load %arg8[%c0_25, %c2, %c0_26] : memref<64x4x8xf32, #tpu.memory_space<vmem>>, vector<64x1x8xf32>
    %26 = vector.shape_cast %25 : vector<64x1x8xf32> to vector<64x8xf32>
    %c2_27 = arith.constant 2 : index
    %c0_28 = arith.constant 0 : index
    %c0_29 = arith.constant 0 : index
    %27 = vector.load %arg3[%c2_27, %c0_28, %c0_29] : memref<4x8x32xf32, #tpu.memory_space<vmem>>, vector<1x8x32xf32>
    %28 = vector.shape_cast %27 : vector<1x8x32xf32> to vector<8x32xf32>
    %cst_30 = arith.constant dense<0.000000e+00> : vector<64x32xf32>
    %29 = tpu.matmul %26, %28, %cst_30 {dimension_numbers = #tpu.dot_dimension_numbers<[1], [0], [0], [1], [0, 0, 1, 1], [], []>} : vector<64x8xf32>, vector<8x32xf32>, vector<64x32xf32> -> vector<64x32xf32>
    %30 = arith.addf %24, %29 : vector<64x32xf32>
    %c0_31 = arith.constant 0 : index
    %c3 = arith.constant 3 : index
    %c0_32 = arith.constant 0 : index
    %31 = vector.load %arg8[%c0_31, %c3, %c0_32] : memref<64x4x8xf32, #tpu.memory_space<vmem>>, vector<64x1x8xf32>
    %32 = vector.shape_cast %31 : vector<64x1x8xf32> to vector<64x8xf32>
    %c3_33 = arith.constant 3 : index
    %c0_34 = arith.constant 0 : index
    %c0_35 = arith.constant 0 : index
    %33 = vector.load %arg3[%c3_33, %c0_34, %c0_35] : memref<4x8x32xf32, #tpu.memory_space<vmem>>, vector<1x8x32xf32>
    %34 = vector.shape_cast %33 : vector<1x8x32xf32> to vector<8x32xf32>
    %cst_36 = arith.constant dense<0.000000e+00> : vector<64x32xf32>
    %35 = tpu.matmul %32, %34, %cst_36 {dimension_numbers = #tpu.dot_dimension_numbers<[1], [0], [0], [1], [0, 0, 1, 1], [], []>} : vector<64x8xf32>, vector<8x32xf32>, vector<64x32xf32> -> vector<64x32xf32>
    %36 = arith.addf %30, %35 : vector<64x32xf32>
    %cst_37 = arith.constant 0.000000e+00 : f32
    %37 = vector.broadcast %cst_37 : f32 to vector<64x32xf32>
    %38 = arith.maximumf %36, %37 : vector<64x32xf32>
    %c0_38 = arith.constant 0 : index
    %c0_39 = arith.constant 0 : index
    %39 = vector.load %arg5[%c0_38, %c0_39] : memref<32x2xf32, #tpu.memory_space<vmem>>, vector<32x2xf32>
    %cst_40 = arith.constant dense<0.000000e+00> : vector<64x2xf32>
    %40 = tpu.matmul %38, %39, %cst_40 {dimension_numbers = #tpu.dot_dimension_numbers<[1], [0], [0], [1], [0, 0, 1, 1], [], []>} : vector<64x32xf32>, vector<32x2xf32>, vector<64x2xf32> -> vector<64x2xf32>
    %c0_41 = arith.constant 0 : index
    %c0_42 = arith.constant 0 : index
    %41 = vector.load %arg6[%c0_41, %c0_42] : memref<1x2xf32, #tpu.memory_space<vmem>>, vector<1x2xf32>
    %42 = vector.broadcast %41 : vector<1x2xf32> to vector<64x2xf32>
    %43 = arith.addf %40, %42 : vector<64x2xf32>
    %c0_43 = arith.constant 0 : index
    %c0_44 = arith.constant 0 : index
    %44 = vector.load %arg7[%c0_43, %c0_44] : memref<64x2xf32, #tpu.memory_space<vmem>>, vector<64x2xf32>
    tpu.vector_store %arg7[%c0_43, %c0_44], %43 {strides = array<i32>} : memref<64x2xf32, #tpu.memory_space<vmem>>, vector<64x2xf32>,
    return
  }
  func.func @transform_0(%arg0: i32) -> (i32, i32, i32) {
    %c0_i32 = arith.constant 0 : i32
    %c0_i32_0 = arith.constant 0 : i32
    %c0_i32_1 = arith.constant 0 : i32
    return %arg0, %c0_i32, %c0_i32_0 : i32, i32, i32
  }
  func.func @transform_1(%arg0: i32) -> (i32, i32, i32) {
    %c0_i32 = arith.constant 0 : i32
    %c0_i32_0 = arith.constant 0 : i32
    %c0_i32_1 = arith.constant 0 : i32
    return %arg0, %c0_i32, %c0_i32_0 : i32, i32, i32
  }
  func.func @transform_2(%arg0: i32) -> (i32, i32, i32) {
    %c0_i32 = arith.constant 0 : i32
    %c0_i32_0 = arith.constant 0 : i32
    %c0_i32_1 = arith.constant 0 : i32
    %c0_i32_2 = arith.constant 0 : i32
    return %c0_i32, %c0_i32_0, %c0_i32_1 : i32, i32, i32
  }
  func.func @transform_3(%arg0: i32) -> (i32, i32) {
    %c0_i32 = arith.constant 0 : i32
    %c0_i32_0 = arith.constant 0 : i32
    %c0_i32_1 = arith.constant 0 : i32
    return %c0_i32, %c0_i32_0 : i32, i32
  }
  func.func @transform_4(%arg0: i32) -> (i32, i32) {
    %c0_i32 = arith.constant 0 : i32
    %c0_i32_0 = arith.constant 0 : i32
    %c0_i32_1 = arith.constant 0 : i32
    return %c0_i32, %c0_i32_0 : i32, i32
  }
  func.func @transform_5(%arg0: i32) -> (i32, i32) {
    %c0_i32 = arith.constant 0 : i32
    %c0_i32_0 = arith.constant 0 : i32
    %c0_i32_1 = arith.constant 0 : i32
    return %c0_i32, %c0_i32_0 : i32, i32
  }
  func.func @transform_6(%arg0: i32) -> (i32, i32) {
    %c0_i32 = arith.constant 0 : i32
    %c0_i32_0 = arith.constant 0 : i32
    return %arg0, %c0_i32 : i32, i32
  }
}

</mosaic_0001>

<llo_original>
// kernel: tpu_custom_call.1
$region0: #{tpu_custom_call.1}
  #allocation0 [shape = 'u32[]', space=smem, size = 0x4, offset = 0x4, fixed_abs, tag = 'smem constant byte address 0x4 - core index']
  #allocation1 [shape = 'u32[144,128]{1,0:T(1,128)}', space=vmem, size = 0x12000, scoped, tag = 'internal scratch']
  #allocation2 [shape = 'f32[64,4,8]{2,1,0:T(4,128)}', space=vmem, size = 0x20000, scoped, tag = 'scratch operand']
  %s0 = inlined_call_operand.vmem [shape: bf16[128,8,8], index: 0, kind: input, shape index: {}]
  %s1 = inlined_call_operand.vmem [shape: f32[128,5,8], index: 1, kind: input, shape index: {}]
  %s2 = inlined_call_operand.vmem [shape: f32[4,8,32], index: 2, kind: input, shape index: {}]
  %s3 = inlined_call_operand.vmem [shape: f32[1,32], index: 3, kind: input, shape index: {}]
  %s4 = inlined_call_operand.vmem [shape: f32[32,2], index: 4, kind: input, shape index: {}]
  %s5 = inlined_call_operand.vmem [shape: f32[1,2], index: 5, kind: input, shape index: {}]
  %s6 = inlined_call_operand.vmem [shape: f32[128,2], index: 6, kind: output, shape index: {}]
  %s7 = sld [smem:[#allocation0]]
  $region57: #{tpu_custom_call.1} parent=0
    _
  %s9 = ssub.s32 1, %s7
  %s10 = scalar_select 0, %s9, %s7
  loop: start=0, step=1, limit=4
  $region2: #{tpu_custom_call.1} parent=0 // loop_pre_header
    _
  $region3: #{tpu_custom_call.1} parent=0 // loop_header
    %s12 = sphi 0, %s16
    %p13 = scmp.ge.s32.totalorder %s12, 4
    %s22 = sphi 0, %s24
    %s25 = sphi 0, %s22
    %s26 = sphi 0, %s25
    %s42 = sphi 0, %s26
    %s48 = sphi 0, %s50
    %s51 = sphi 0, %s48
    %s52 = sphi 0, %s51
    %s68 = sphi 0, %s52
    %s72 = sphi 0, %s72
    %s74 = sphi 0, %s72
    %s75 = sphi 0, %s74
    %s89 = sphi 0, %s75
    %s93 = sphi 0, %s93
    %s95 = sphi 0, %s93
    %s96 = sphi 0, %s95
    %s110 = sphi 0, %s96
    %s114 = sphi 0, %s114
    %s116 = sphi 0, %s114
    %s117 = sphi 0, %s116
    %s131 = sphi 0, %s117
    %s135 = sphi 0, %s135
    %s137 = sphi 0, %s135
    %s138 = sphi 0, %s137
    %s152 = sphi 0, %s138
    %s158 = sphi 0, %s160
    %s161 = sphi 0, %s158
    %s162 = sphi 0, %s161
    %s178 = sphi 0, %s162
  $region4: #{tpu_custom_call.1} parent=0 // loop_header_branch
    %15 = sbr.rel (%p13) target = $region8
  $region5: #{tpu_custom_call.1} parent=0 // loop_body
    %s17 = ssub.s32 %s12, 1
    %s18 = ssub.s32 %s12, 2
    %s19 = sadd.s32 %s12, 1
    %s20 = ssub.s32 %s12, %s19
    %p21 = scmp.eq.s32.totalorder %s20, 0
    %s23 = sadd.s32 %s22, 1
    %s24 = scalar_select %p21, %s22, %s23
    %p27 = pneg %p21
    %p28 = scmp.eq.s32.totalorder %s12, 1
    %p29 = por %p27, %p28
    %p30 = scmp.ne.s32.totalorder %s22, %s25
    %p31 = scmp.eq.s32.totalorder %s12, 0
    %p32 = por %p30, %p31
    %p33 = scmp.ne.s32.totalorder %s22, %s25
    %p34 = scmp.eq.s32.totalorder %s17, 1
    %p35 = por %p33, %p34
    %p36 = scmp.ne.s32.totalorder %s25, %s26
    %p37 = scmp.eq.s32.totalorder %s17, 0
    %p38 = por %p36, %p37
    %p39 = scmp.ne.s32.totalorder %s25, %s26
    %p40 = scmp.eq.s32.totalorder %s18, 1
    %p41 = por %p39, %p40
    %p43 = scmp.ne.s32.totalorder %s26, %s42
    %p44 = scmp.eq.s32.totalorder %s18, 0
    %p45 = por %p43, %p44
    %s46 = ssub.s32 %s12, %s19
    %p47 = scmp.eq.s32.totalorder %s46, 0
    %s49 = sadd.s32 %s48, 1
    %s50 = scalar_select %p47, %s48, %s49
    %p53 = pneg %p47
    %p54 = scmp.eq.s32.totalorder %s12, 1
    %p55 = por %p53, %p54
    %p56 = scmp.ne.s32.totalorder %s48, %s51
    %p57 = scmp.eq.s32.totalorder %s12, 0
    %p58 = por %p56, %p57
    %p59 = scmp.ne.s32.totalorder %s48, %s51
    %p60 = scmp.eq.s32.totalorder %s17, 1
    %p61 = por %p59, %p60
    %p62 = scmp.ne.s32.totalorder %s51, %s52
    %p63 = scmp.eq.s32.totalorder %s17, 0
    %p64 = por %p62, %p63
    %p65 = scmp.ne.s32.totalorder %s51, %s52
    %p66 = scmp.eq.s32.totalorder %s18, 1
    %p67 = por %p65, %p66
    %p69 = scmp.ne.s32.totalorder %s52, %s68
    %p70 = scmp.eq.s32.totalorder %s18, 0
    %p71 = por %p69, %p70
    %s73 = sadd.s32 %s72, 1
    %p76 = scmp.eq.s32.totalorder %s12, 1
    %p77 = scmp.ne.s32.totalorder %s72, %s74
    %p78 = scmp.eq.s32.totalorder %s12, 0
    %p79 = por %p77, %p78
    %p80 = scmp.ne.s32.totalorder %s72, %s74
    %p81 = scmp.eq.s32.totalorder %s17, 1
    %p82 = por %p80, %p81
    %p83 = scmp.ne.s32.totalorder %s74, %s75
    %p84 = scmp.eq.s32.totalorder %s17, 0
    %p85 = por %p83, %p84
    %p86 = scmp.ne.s32.totalorder %s74, %s75
    %p87 = scmp.eq.s32.totalorder %s18, 1
    %p88 = por %p86, %p87
    %p90 = scmp.ne.s32.totalorder %s75, %s89
    %p91 = scmp.eq.s32.totalorder %s18, 0
    %p92 = por %p90, %p91
    %s94 = sadd.s32 %s93, 1
    %p97 = scmp.eq.s32.totalorder %s12, 1
    %p98 = scmp.ne.s32.totalorder %s93, %s95
    %p99 = scmp.eq.s32.totalorder %s12, 0
    %p100 = por %p98, %p99
    %p101 = scmp.ne.s32.totalorder %s93, %s95
    %p102 = scmp.eq.s32.totalorder %s17, 1
    %p103 = por %p101, %p102
    %p104 = scmp.ne.s32.totalorder %s95, %s96
    %p105 = scmp.eq.s32.totalorder %s17, 0
    %p106 = por %p104, %p105
    %p107 = scmp.ne.s32.totalorder %s95, %s96
    %p108 = scmp.eq.s32.totalorder %s18, 1
    %p109 = por %p107, %p108
    %p111 = scmp.ne.s32.totalorder %s96, %s110
    %p112 = scmp.eq.s32.totalorder %s18, 0
    %p113 = por %p111, %p112
    %s115 = sadd.s32 %s114, 1
    %p118 = scmp.eq.s32.totalorder %s12, 1
    %p119 = scmp.ne.s32.totalorder %s114, %s116
    %p120 = scmp.eq.s32.totalorder %s12, 0
    %p121 = por %p119, %p120
    %p122 = scmp.ne.s32.totalorder %s114, %s116
    %p123 = scmp.eq.s32.totalorder %s17, 1
    %p124 = por %p122, %p123
    %p125 = scmp.ne.s32.totalorder %s116, %s117
    %p126 = scmp.eq.s32.totalorder %s17, 0
    %p127 = por %p125, %p126
    %p128 = scmp.ne.s32.totalorder %s116, %s117
    %p129 = scmp.eq.s32.totalorder %s18, 1
    %p130 = por %p128, %p129
    %p132 = scmp.ne.s32.totalorder %s117, %s131
    %p133 = scmp.eq.s32.totalorder %s18, 0
    %p134 = por %p132, %p133
    %s136 = sadd.s32 %s135, 1
    %p139 = scmp.eq.s32.totalorder %s12, 1
    %p140 = scmp.ne.s32.totalorder %s135, %s137
    %p141 = scmp.eq.s32.totalorder %s12, 0
    %p142 = por %p140, %p141
    %p143 = scmp.ne.s32.totalorder %s135, %s137
    %p144 = scmp.eq.s32.totalorder %s17, 1
    %p145 = por %p143, %p144
    %p146 = scmp.ne.s32.totalorder %s137, %s138
    %p147 = scmp.eq.s32.totalorder %s17, 0
    %p148 = por %p146, %p147
    %p149 = scmp.ne.s32.totalorder %s137, %s138
    %p150 = scmp.eq.s32.totalorder %s18, 1
    %p151 = por %p149, %p150
    %p153 = scmp.ne.s32.totalorder %s138, %s152
    %p154 = scmp.eq.s32.totalorder %s18, 0
    %p155 = por %p153, %p154
    %s156 = ssub.s32 %s12, %s19
    %p157 = scmp.eq.s32.totalorder %s156, 0
    %s159 = sadd.s32 %s158, 1
    %s160 = scalar_select %p157, %s158, %s159
    %p163 = pneg %p157
    %p164 = scmp.eq.s32.totalorder %s12, 1
    %p165 = por %p163, %p164
    %p166 = scmp.ne.s32.totalorder %s158, %s161
    %p167 = scmp.eq.s32.totalorder %s12, 0
    %p168 = por %p166, %p167
    %p169 = scmp.ne.s32.totalorder %s158, %s161
    %p170 = scmp.eq.s32.totalorder %s17, 1
    %p171 = por %p169, %p170
    %p172 = scmp.ne.s32.totalorder %s161, %s162
    %p173 = scmp.eq.s32.totalorder %s17, 0
    %p174 = por %p172, %p173
    %p175 = scmp.ne.s32.totalorder %s161, %s162
    %p176 = scmp.eq.s32.totalorder %s18, 1
    %p177 = por %p175, %p176
    %p179 = scmp.ne.s32.totalorder %s162, %s178
    %p180 = scmp.eq.s32.totalorder %s18, 0
    %p181 = por %p179, %p180
    %p182 = scmp.le.s32.totalorder 1, %s12
    %p183 = scmp.lt.s32.totalorder %s12, 3
    %p184 = pnand %p182, %p183
    %p185 = pneg %p184
    // Predicated region
    $region9: #{tpu_custom_call.1} parent=5 // pred_check
      _
    $region10: #{tpu_custom_call.1} parent=5 // pred_check_branch
      %187 = sbr.rel (%p184) target = $region12
    $region11: #{tpu_custom_call.1} parent=5 // pred_region
      %s188 = ssub.s32 %s12, 1
      // Predicated region
      $region13: #{tpu_custom_call.1} parent=11 // pred_check
        %p189 = pneg %p85
      $region14: #{tpu_custom_call.1} parent=11 // pred_check_branch
        %191 = sbr.rel (%p189) target = $region16
      $region15: #{tpu_custom_call.1} parent=11 // pred_region
        _
      $region16: #{tpu_custom_call.1} parent=11 // pred_fallthru
        _
      // Predicated region
      $region17: #{tpu_custom_call.1} parent=11 // pred_check
        %p192 = pneg %p106
      $region18: #{tpu_custom_call.1} parent=11 // pred_check_branch
        %194 = sbr.rel (%p192) target = $region20
      $region19: #{tpu_custom_call.1} parent=11 // pred_region
        _
      $region20: #{tpu_custom_call.1} parent=11 // pred_fallthru
        _
      // Predicated region
      $region21: #{tpu_custom_call.1} parent=11 // pred_check
        %p195 = pneg %p127
      $region22: #{tpu_custom_call.1} parent=11 // pred_check_branch
        %197 = sbr.rel (%p195) target = $region24
      $region23: #{tpu_custom_call.1} parent=11 // pred_region
        _
      $region24: #{tpu_custom_call.1} parent=11 // pred_fallthru
        _
      // Predicated region
      $region25: #{tpu_custom_call.1} parent=11 // pred_check
        %p198 = pneg %p148
      $region26: #{tpu_custom_call.1} parent=11 // pred_check_branch
        %200 = sbr.rel (%p198) target = $region28
      $region27: #{tpu_custom_call.1} parent=11 // pred_region
        _
      $region28: #{tpu_custom_call.1} parent=11 // pred_fallthru
        _
    $region12: #{tpu_custom_call.1} parent=5 // pred_fallthru
      _
    %p201 = scmp.lt.s32.totalorder %s12, 2
    // Predicated region
    $region29: #{tpu_custom_call.1} parent=5 // pred_check
      %p202 = pneg %p201
    $region30: #{tpu_custom_call.1} parent=5 // pred_check_branch
      %204 = sbr.rel (%p202) target = $region32
    $region31: #{tpu_custom_call.1} parent=5 // pred_region
      // Predicated region
      $region33: #{tpu_custom_call.1} parent=31 // pred_check
        %p205 = pneg %p32
      $region34: #{tpu_custom_call.1} parent=31 // pred_check_branch
        %207 = sbr.rel (%p205) target = $region36
      $region35: #{tpu_custom_call.1} parent=31 // pred_region
        %s208 = smul.u32 64, %s12
        %p209 = scmp.lt.s32.totalorder %s208, 127
        %s210 = scalar_select %p209, %s208, 127
        %s211 = smul.addr %s210, 4
        %s212 = scalar_lea.vmem %s0, %s211
        %s213 = smul.u32 64, %s12
      $region36: #{tpu_custom_call.1} parent=31 // pred_fallthru
        _
      // Predicated region
      $region37: #{tpu_custom_call.1} parent=31 // pred_check
        %p214 = pneg %p58
      $region38: #{tpu_custom_call.1} parent=31 // pred_check_branch
        %216 = sbr.rel (%p214) target = $region40
      $region39: #{tpu_custom_call.1} parent=31 // pred_region
        %s217 = smul.u32 64, %s12
        %p218 = scmp.lt.s32.totalorder %s217, 127
        %s219 = scalar_select %p218, %s217, 127
        %s220 = smul.addr %s219, 8
        %s221 = scalar_lea.vmem %s1, %s220
        %s222 = smul.u32 64, %s12
      $region40: #{tpu_custom_call.1} parent=31 // pred_fallthru
        _
    $region32: #{tpu_custom_call.1} parent=5 // pred_fallthru
      _
    %p223 = scmp.le.s32.totalorder 1, %s12
    %p224 = scmp.lt.s32.totalorder %s12, 3
    %p225 = pnand %p223, %p224
    %p226 = pneg %p225
    // Predicated region
    $region41: #{tpu_custom_call.1} parent=5 // pred_check
      _
    $region42: #{tpu_custom_call.1} parent=5 // pred_check_branch
      %228 = sbr.rel (%p225) target = $region44
    $region43: #{tpu_custom_call.1} parent=5 // pred_region
      %s229 = ssub.s32 %s12, 1
      %s230 = smul.u32 64, %s17
      %p231 = scmp.lt.s32.totalorder %s230, 127
      %s232 = scalar_select %p231, %s230, 127
      %s233 = smul.addr %s232, 4
      %s234 = scalar_lea.vmem %s0, %s233
      %p235 = pneg %p38
      %p236 = pneg %p35
      %s237 = smul.u32 64, %s17
      %p238 = scmp.lt.s32.totalorder %s237, 127
      %s239 = scalar_select %p238, %s237, 127
      %s240 = smul.addr %s239, 8
      %s241 = scalar_lea.vmem %s1, %s240
      %p242 = pneg %p64
      %p243 = pneg %p61
      %p244 = pneg %p85
      %p245 = pneg %p82
      %p246 = pneg %p106
      %p247 = pneg %p103
      %p248 = pneg %p127
      %p249 = pneg %p124
      %p250 = pneg %p148
      %p251 = pneg %p145
      %p252 = pneg %p174
      %p253 = pneg %p171
      %s254 = smul.u32 8, %s17
      %p255 = scmp.lt.s32.totalorder %s254, 15
      %s256 = scalar_select %p255, %s254, 15
      %s257 = smul.addr %s256, 8
      %s258 = scalar_lea.vmem %s6, %s257
      %s259 = smul.u32 64, %s17
      %p260 = scmp.lt.s32.totalorder %s259, 127
      %s261 = scalar_select %p260, %s259, 127
      %s262 = smul.addr %s261, 4
      %s263 = scalar_lea.vmem %s0, %s262
      %s264 = smul.u32 64, %s17
      %s265 = smul.u32 64, %s17
      %p266 = scmp.lt.s32.totalorder %s265, 127
      %s267 = scalar_select %p266, %s265, 127
      %s268 = smul.addr %s267, 8
      %s269 = scalar_lea.vmem %s1, %s268
      %s270 = smul.u32 64, %s17
      %s271 = smul.u32 8, %s17
      %p272 = scmp.lt.s32.totalorder %s271, 15
      %s273 = scalar_select %p272, %s271, 15
      %s274 = smul.addr %s273, 8
      %s275 = scalar_lea.vmem %s6, %s274
      %s276 = smul.u32 8, %s17
      %v278 = vld [vmem:[%s269] sm:$0xf]
      %v279 = vld [vmem:[%s269 + $0x8] sm:$0xf]
      %v280 = vld [vmem:[%s269 + $0x10] sm:$0xf]
      %v281 = vld [vmem:[%s269 + $0x18] sm:$0xf]
      %v282 = vld [vmem:[%s269 + $0x20] sm:$0xf]
      %v283 = vld [vmem:[%s269 + $0x28] sm:$0xf]
      %v284 = vld [vmem:[%s269 + $0x30] sm:$0xf]
      %v285 = vld [vmem:[%s269 + $0x38] sm:$0xf]
      %v286 = vld [vmem:[%s269 + $0x40] sm:$0xf]
      %v287 = vld [vmem:[%s269 + $0x48] sm:$0xf]
      %v288 = vld [vmem:[%s269 + $0x50] sm:$0xf]
      %v289 = vld [vmem:[%s269 + $0x58] sm:$0xf]
      %v290 = vld [vmem:[%s269 + $0x60] sm:$0xf]
      %v291 = vld [vmem:[%s269 + $0x68] sm:$0xf]
      %v292 = vld [vmem:[%s269 + $0x70] sm:$0xf]
      %v293 = vld [vmem:[%s269 + $0x78] sm:$0xf]
      %v294 = vld [vmem:[%s269 + $0x80] sm:$0xf]
      %v295 = vld [vmem:[%s269 + $0x88] sm:$0xf]
      %v296 = vld [vmem:[%s269 + $0x90] sm:$0xf]
      %v297 = vld [vmem:[%s269 + $0x98] sm:$0xf]
      %v298 = vld [vmem:[%s269 + $0xa0] sm:$0xf]
      %v299 = vld [vmem:[%s269 + $0xa8] sm:$0xf]
      %v300 = vld [vmem:[%s269 + $0xb0] sm:$0xf]
      %v301 = vld [vmem:[%s269 + $0xb8] sm:$0xf]
      %v302 = vld [vmem:[%s269 + $0xc0] sm:$0xf]
      %v303 = vld [vmem:[%s269 + $0xc8] sm:$0xf]
      %v304 = vld [vmem:[%s269 + $0xd0] sm:$0xf]
      %v305 = vld [vmem:[%s269 + $0xd8] sm:$0xf]
      %v306 = vld [vmem:[%s269 + $0xe0] sm:$0xf]
      %v307 = vld [vmem:[%s269 + $0xe8] sm:$0xf]
      %v308 = vld [vmem:[%s269 + $0xf0] sm:$0xf]
      %v309 = vld [vmem:[%s269 + $0xf8] sm:$0xf]
      %v310 = vld [vmem:[%s269 + $0x100] sm:$0xf]
      %v311 = vld [vmem:[%s269 + $0x108] sm:$0xf]
      %v312 = vld [vmem:[%s269 + $0x110] sm:$0xf]
      %v313 = vld [vmem:[%s269 + $0x118] sm:$0xf]
      %v314 = vld [vmem:[%s269 + $0x120] sm:$0xf]
      %v315 = vld [vmem:[%s269 + $0x128] sm:$0xf]
      %v316 = vld [vmem:[%s269 + $0x130] sm:$0xf]
      %v317 = vld [vmem:[%s269 + $0x138] sm:$0xf]
      %v318 = vld [vmem:[%s269 + $0x140] sm:$0xf]
      %v319 = vld [vmem:[%s269 + $0x148] sm:$0xf]
      %v320 = vld [vmem:[%s269 + $0x150] sm:$0xf]
      %v321 = vld [vmem:[%s269 + $0x158] sm:$0xf]
      %v322 = vld [vmem:[%s269 + $0x160] sm:$0xf]
      %v323 = vld [vmem:[%s269 + $0x168] sm:$0xf]
      %v324 = vld [vmem:[%s269 + $0x170] sm:$0xf]
      %v325 = vld [vmem:[%s269 + $0x178] sm:$0xf]
      %v326 = vld [vmem:[%s269 + $0x180] sm:$0xf]
      %v327 = vld [vmem:[%s269 + $0x188] sm:$0xf]
      %v328 = vld [vmem:[%s269 + $0x190] sm:$0xf]
      %v329 = vld [vmem:[%s269 + $0x198] sm:$0xf]
      %v330 = vld [vmem:[%s269 + $0x1a0] sm:$0xf]
      %v331 = vld [vmem:[%s269 + $0x1a8] sm:$0xf]
      %v332 = vld [vmem:[%s269 + $0x1b0] sm:$0xf]
      %v333 = vld [vmem:[%s269 + $0x1b8] sm:$0xf]
      %v334 = vld [vmem:[%s269 + $0x1c0] sm:$0xf]
      %v335 = vld [vmem:[%s269 + $0x1c8] sm:$0xf]
      %v336 = vld [vmem:[%s269 + $0x1d0] sm:$0xf]
      %v337 = vld [vmem:[%s269 + $0x1d8] sm:$0xf]
      %v338 = vld [vmem:[%s269 + $0x1e0] sm:$0xf]
      %v339 = vld [vmem:[%s269 + $0x1e8] sm:$0xf]
      %v340 = vld [vmem:[%s269 + $0x1f0] sm:$0xf]
      %v341 = vld [vmem:[%s269 + $0x1f8] sm:$0xf]
      %v342 = vld [vmem:[%s269 + $0x4] sm:$0x1]
      %v343 = vld [vmem:[%s269 + $0xc] sm:$0x1]
      %v344 = vld [vmem:[%s269 + $0x14] sm:$0x1]
      %v345 = vld [vmem:[%s269 + $0x1c] sm:$0x1]
      %v346 = vld [vmem:[%s269 + $0x24] sm:$0x1]
      %v347 = vld [vmem:[%s269 + $0x2c] sm:$0x1]
      %v348 = vld [vmem:[%s269 + $0x34] sm:$0x1]
      %v349 = vld [vmem:[%s269 + $0x3c] sm:$0x1]
      %v350 = vld [vmem:[%s269 + $0x44] sm:$0x1]
      %v351 = vld [vmem:[%s269 + $0x4c] sm:$0x1]
      %v352 = vld [vmem:[%s269 + $0x54] sm:$0x1]
      %v353 = vld [vmem:[%s269 + $0x5c] sm:$0x1]
      %v354 = vld [vmem:[%s269 + $0x64] sm:$0x1]
      %v355 = vld [vmem:[%s269 + $0x6c] sm:$0x1]
      %v356 = vld [vmem:[%s269 + $0x74] sm:$0x1]
      %v357 = vld [vmem:[%s269 + $0x7c] sm:$0x1]
      %v358 = vld [vmem:[%s269 + $0x84] sm:$0x1]
      %v359 = vld [vmem:[%s269 + $0x8c] sm:$0x1]
      %v360 = vld [vmem:[%s269 + $0x94] sm:$0x1]
      %v361 = vld [vmem:[%s269 + $0x9c] sm:$0x1]
      %v362 = vld [vmem:[%s269 + $0xa4] sm:$0x1]
      %v363 = vld [vmem:[%s269 + $0xac] sm:$0x1]
      %v364 = vld [vmem:[%s269 + $0xb4] sm:$0x1]
      %v365 = vld [vmem:[%s269 + $0xbc] sm:$0x1]
      %v366 = vld [vmem:[%s269 + $0xc4] sm:$0x1]
      %v367 = vld [vmem:[%s269 + $0xcc] sm:$0x1]
      %v368 = vld [vmem:[%s269 + $0xd4] sm:$0x1]
      %v369 = vld [vmem:[%s269 + $0xdc] sm:$0x1]
      %v370 = vld [vmem:[%s269 + $0xe4] sm:$0x1]
      %v371 = vld [vmem:[%s269 + $0xec] sm:$0x1]
      %v372 = vld [vmem:[%s269 + $0xf4] sm:$0x1]
      %v373 = vld [vmem:[%s269 + $0xfc] sm:$0x1]
      %v374 = vld [vmem:[%s269 + $0x104] sm:$0x1]
      %v375 = vld [vmem:[%s269 + $0x10c] sm:$0x1]
      %v376 = vld [vmem:[%s269 + $0x114] sm:$0x1]
      %v377 = vld [vmem:[%s269 + $0x11c] sm:$0x1]
      %v378 = vld [vmem:[%s269 + $0x124] sm:$0x1]
      %v379 = vld [vmem:[%s269 + $0x12c] sm:$0x1]
      %v380 = vld [vmem:[%s269 + $0x134] sm:$0x1]
      %v381 = vld [vmem:[%s269 + $0x13c] sm:$0x1]
      %v382 = vld [vmem:[%s269 + $0x144] sm:$0x1]
      %v383 = vld [vmem:[%s269 + $0x14c] sm:$0x1]
      %v384 = vld [vmem:[%s269 + $0x154] sm:$0x1]
      %v385 = vld [vmem:[%s269 + $0x15c] sm:$0x1]
      %v386 = vld [vmem:[%s269 + $0x164] sm:$0x1]
      %v387 = vld [vmem:[%s269 + $0x16c] sm:$0x1]
      %v388 = vld [vmem:[%s269 + $0x174] sm:$0x1]
      %v389 = vld [vmem:[%s269 + $0x17c] sm:$0x1]
      %v390 = vld [vmem:[%s269 + $0x184] sm:$0x1]
      %v391 = vld [vmem:[%s269 + $0x18c] sm:$0x1]
      %v392 = vld [vmem:[%s269 + $0x194] sm:$0x1]
      %v393 = vld [vmem:[%s269 + $0x19c] sm:$0x1]
      %v394 = vld [vmem:[%s269 + $0x1a4] sm:$0x1]
      %v395 = vld [vmem:[%s269 + $0x1ac] sm:$0x1]
      %v396 = vld [vmem:[%s269 + $0x1b4] sm:$0x1]
      %v397 = vld [vmem:[%s269 + $0x1bc] sm:$0x1]
      %v398 = vld [vmem:[%s269 + $0x1c4] sm:$0x1]
      %v399 = vld [vmem:[%s269 + $0x1cc] sm:$0x1]
      %v400 = vld [vmem:[%s269 + $0x1d4] sm:$0x1]
      %v401 = vld [vmem:[%s269 + $0x1dc] sm:$0x1]
      %v402 = vld [vmem:[%s269 + $0x1e4] sm:$0x1]
      %v403 = vld [vmem:[%s269 + $0x1ec] sm:$0x1]
      %v404 = vld [vmem:[%s269 + $0x1f4] sm:$0x1]
      %v405 = vld [vmem:[%s269 + $0x1fc] sm:$0x1]
      %v406 = vlaneseq
      %v407 = vshrl.u32 %v406, 7
      %v408 = vsub.s32 0, %v407
      %v409 = vrot.slane %v342, %v408
      %v410 = vlaneseq
      %v411 = vshrl.u32 %v410, 7
      %v412 = vsub.s32 0, %v411
      %v413 = vrot.slane %v343, %v412
      %v414 = vlaneseq
      %v415 = vshrl.u32 %v414, 7
      %v416 = vsub.s32 0, %v415
      %v417 = vrot.slane %v344, %v416
      %v418 = vlaneseq
      %v419 = vshrl.u32 %v418, 7
      %v420 = vsub.s32 0, %v419
      %v421 = vrot.slane %v345, %v420
      %v422 = vlaneseq
      %v423 = vshrl.u32 %v422, 7
      %v424 = vsub.s32 0, %v423
      %v425 = vrot.slane %v346, %v424
      %v426 = vlaneseq
      %v427 = vshrl.u32 %v426, 7
      %v428 = vsub.s32 0, %v427
      %v429 = vrot.slane %v347, %v428
      %v430 = vlaneseq
      %v431 = vshrl.u32 %v430, 7
      %v432 = vsub.s32 0, %v431
      %v433 = vrot.slane %v348, %v432
      %v434 = vlaneseq
      %v435 = vshrl.u32 %v434, 7
      %v436 = vsub.s32 0, %v435
      %v437 = vrot.slane %v349, %v436
      %v438 = vlaneseq
      %v439 = vshrl.u32 %v438, 7
      %v440 = vsub.s32 0, %v439
      %v441 = vrot.slane %v350, %v440
      %v442 = vlaneseq
      %v443 = vshrl.u32 %v442, 7
      %v444 = vsub.s32 0, %v443
      %v445 = vrot.slane %v351, %v444
      %v446 = vlaneseq
      %v447 = vshrl.u32 %v446, 7
      %v448 = vsub.s32 0, %v447
      %v449 = vrot.slane %v352, %v448
      %v450 = vlaneseq
      %v451 = vshrl.u32 %v450, 7
      %v452 = vsub.s32 0, %v451
      %v453 = vrot.slane %v353, %v452
      %v454 = vlaneseq
      %v455 = vshrl.u32 %v454, 7
      %v456 = vsub.s32 0, %v455
      %v457 = vrot.slane %v354, %v456
      %v458 = vlaneseq
      %v459 = vshrl.u32 %v458, 7
      %v460 = vsub.s32 0, %v459
      %v461 = vrot.slane %v355, %v460
      %v462 = vlaneseq
      %v463 = vshrl.u32 %v462, 7
      %v464 = vsub.s32 0, %v463
      %v465 = vrot.slane %v356, %v464
      %v466 = vlaneseq
      %v467 = vshrl.u32 %v466, 7
      %v468 = vsub.s32 0, %v467
      %v469 = vrot.slane %v357, %v468
      %v470 = vlaneseq
      %v471 = vshrl.u32 %v470, 7
      %v472 = vsub.s32 0, %v471
      %v473 = vrot.slane %v358, %v472
      %v474 = vlaneseq
      %v475 = vshrl.u32 %v474, 7
      %v476 = vsub.s32 0, %v475
      %v477 = vrot.slane %v359, %v476
      %v478 = vlaneseq
      %v479 = vshrl.u32 %v478, 7
      %v480 = vsub.s32 0, %v479
      %v481 = vrot.slane %v360, %v480
      %v482 = vlaneseq
      %v483 = vshrl.u32 %v482, 7
      %v484 = vsub.s32 0, %v483
      %v485 = vrot.slane %v361, %v484
      %v486 = vlaneseq
      %v487 = vshrl.u32 %v486, 7
      %v488 = vsub.s32 0, %v487
      %v489 = vrot.slane %v362, %v488
      %v490 = vlaneseq
      %v491 = vshrl.u32 %v490, 7
      %v492 = vsub.s32 0, %v491
      %v493 = vrot.slane %v363, %v492
      %v494 = vlaneseq
      %v495 = vshrl.u32 %v494, 7
      %v496 = vsub.s32 0, %v495
      %v497 = vrot.slane %v364, %v496
      %v498 = vlaneseq
      %v499 = vshrl.u32 %v498, 7
      %v500 = vsub.s32 0, %v499
      %v501 = vrot.slane %v365, %v500
      %v502 = vlaneseq
      %v503 = vshrl.u32 %v502, 7
      %v504 = vsub.s32 0, %v503
      %v505 = vrot.slane %v366, %v504
      %v506 = vlaneseq
      %v507 = vshrl.u32 %v506, 7
      %v508 = vsub.s32 0, %v507
      %v509 = vrot.slane %v367, %v508
      %v510 = vlaneseq
      %v511 = vshrl.u32 %v510, 7
      %v512 = vsub.s32 0, %v511
      %v513 = vrot.slane %v368, %v512
      %v514 = vlaneseq
      %v515 = vshrl.u32 %v514, 7
      %v516 = vsub.s32 0, %v515
      %v517 = vrot.slane %v369, %v516
      %v518 = vlaneseq
      %v519 = vshrl.u32 %v518, 7
      %v520 = vsub.s32 0, %v519
      %v521 = vrot.slane %v370, %v520
      %v522 = vlaneseq
      %v523 = vshrl.u32 %v522, 7
      %v524 = vsub.s32 0, %v523
      %v525 = vrot.slane %v371, %v524
      %v526 = vlaneseq
      %v527 = vshrl.u32 %v526, 7
      %v528 = vsub.s32 0, %v527
      %v529 = vrot.slane %v372, %v528
      %v530 = vlaneseq
      %v531 = vshrl.u32 %v530, 7
      %v532 = vsub.s32 0, %v531
      %v533 = vrot.slane %v373, %v532
      %v534 = vlaneseq
      %v535 = vshrl.u32 %v534, 7
      %v536 = vsub.s32 0, %v535
      %v537 = vrot.slane %v374, %v536
      %v538 = vlaneseq
      %v539 = vshrl.u32 %v538, 7
      %v540 = vsub.s32 0, %v539
      %v541 = vrot.slane %v375, %v540
      %v542 = vlaneseq
      %v543 = vshrl.u32 %v542, 7
      %v544 = vsub.s32 0, %v543
      %v545 = vrot.slane %v376, %v544
      %v546 = vlaneseq
      %v547 = vshrl.u32 %v546, 7
      %v548 = vsub.s32 0, %v547
      %v549 = vrot.slane %v377, %v548
      %v550 = vlaneseq
      %v551 = vshrl.u32 %v550, 7
      %v552 = vsub.s32 0, %v551
      %v553 = vrot.slane %v378, %v552
      %v554 = vlaneseq
      %v555 = vshrl.u32 %v554, 7
      %v556 = vsub.s32 0, %v555
      %v557 = vrot.slane %v379, %v556
      %v558 = vlaneseq
      %v559 = vshrl.u32 %v558, 7
      %v560 = vsub.s32 0, %v559
      %v561 = vrot.slane %v380, %v560
      %v562 = vlaneseq
      %v563 = vshrl.u32 %v562, 7
      %v564 = vsub.s32 0, %v563
      %v565 = vrot.slane %v381, %v564
      %v566 = vlaneseq
      %v567 = vshrl.u32 %v566, 7
      %v568 = vsub.s32 0, %v567
      %v569 = vrot.slane %v382, %v568
      %v570 = vlaneseq
      %v571 = vshrl.u32 %v570, 7
      %v572 = vsub.s32 0, %v571
      %v573 = vrot.slane %v383, %v572
      %v574 = vlaneseq
      %v575 = vshrl.u32 %v574, 7
      %v576 = vsub.s32 0, %v575
      %v577 = vrot.slane %v384, %v576
      %v578 = vlaneseq
      %v579 = vshrl.u32 %v578, 7
      %v580 = vsub.s32 0, %v579
      %v581 = vrot.slane %v385, %v580
      %v582 = vlaneseq
      %v583 = vshrl.u32 %v582, 7
      %v584 = vsub.s32 0, %v583
      %v585 = vrot.slane %v386, %v584
      %v586 = vlaneseq
      %v587 = vshrl.u32 %v586, 7
      %v588 = vsub.s32 0, %v587
      %v589 = vrot.slane %v387, %v588
      %v590 = vlaneseq
      %v591 = vshrl.u32 %v590, 7
      %v592 = vsub.s32 0, %v591
      %v593 = vrot.slane %v388, %v592
      %v594 = vlaneseq
      %v595 = vshrl.u32 %v594, 7
      %v596 = vsub.s32 0, %v595
      %v597 = vrot.slane %v389, %v596
      %v598 = vlaneseq
      %v599 = vshrl.u32 %v598, 7
      %v600 = vsub.s32 0, %v599
      %v601 = vrot.slane %v390, %v600
      %v602 = vlaneseq
      %v603 = vshrl.u32 %v602, 7
      %v604 = vsub.s32 0, %v603
      %v605 = vrot.slane %v391, %v604
      %v606 = vlaneseq
      %v607 = vshrl.u32 %v606, 7
      %v608 = vsub.s32 0, %v607
      %v609 = vrot.slane %v392, %v608
      %v610 = vlaneseq
      %v611 = vshrl.u32 %v610, 7
      %v612 = vsub.s32 0, %v611
      %v613 = vrot.slane %v393, %v612
      %v614 = vlaneseq
      %v615 = vshrl.u32 %v614, 7
      %v616 = vsub.s32 0, %v615
      %v617 = vrot.slane %v394, %v616
      %v618 = vlaneseq
      %v619 = vshrl.u32 %v618, 7
      %v620 = vsub.s32 0, %v619
      %v621 = vrot.slane %v395, %v620
      %v622 = vlaneseq
      %v623 = vshrl.u32 %v622, 7
      %v624 = vsub.s32 0, %v623
      %v625 = vrot.slane %v396, %v624
      %v626 = vlaneseq
      %v627 = vshrl.u32 %v626, 7
      %v628 = vsub.s32 0, %v627
      %v629 = vrot.slane %v397, %v628
      %v630 = vlaneseq
      %v631 = vshrl.u32 %v630, 7
      %v632 = vsub.s32 0, %v631
      %v633 = vrot.slane %v398, %v632
      %v634 = vlaneseq
      %v635 = vshrl.u32 %v634, 7
      %v636 = vsub.s32 0, %v635
      %v637 = vrot.slane %v399, %v636
      %v638 = vlaneseq
      %v639 = vshrl.u32 %v638, 7
      %v640 = vsub.s32 0, %v639
      %v641 = vrot.slane %v400, %v640
      %v642 = vlaneseq
      %v643 = vshrl.u32 %v642, 7
      %v644 = vsub.s32 0, %v643
      %v645 = vrot.slane %v401, %v644
      %v646 = vlaneseq
      %v647 = vshrl.u32 %v646, 7
      %v648 = vsub.s32 0, %v647
      %v649 = vrot.slane %v402, %v648
      %v650 = vlaneseq
      %v651 = vshrl.u32 %v650, 7
      %v652 = vsub.s32 0, %v651
      %v653 = vrot.slane %v403, %v652
      %v654 = vlaneseq
      %v655 = vshrl.u32 %v654, 7
      %v656 = vsub.s32 0, %v655
      %v657 = vrot.slane %v404, %v656
      %v658 = vlaneseq
      %v659 = vshrl.u32 %v658, 7
      %v660 = vsub.s32 0, %v659
      %v661 = vrot.slane %v405, %v660
      %v662 = vmul.f32 %v278, %v409
      %v663 = vmul.f32 %v279, %v413
      %v664 = vmul.f32 %v280, %v417
      %v665 = vmul.f32 %v281, %v421
      %v666 = vmul.f32 %v282, %v425
      %v667 = vmul.f32 %v283, %v429
      %v668 = vmul.f32 %v284, %v433
      %v669 = vmul.f32 %v285, %v437
      %v670 = vmul.f32 %v286, %v441
      %v671 = vmul.f32 %v287, %v445
      %v672 = vmul.f32 %v288, %v449
      %v673 = vmul.f32 %v289, %v453
      %v674 = vmul.f32 %v290, %v457
      %v675 = vmul.f32 %v291, %v461
      %v676 = vmul.f32 %v292, %v465
      %v677 = vmul.f32 %v293, %v469
      %v678 = vmul.f32 %v294, %v473
      %v679 = vmul.f32 %v295, %v477
      %v680 = vmul.f32 %v296, %v481
      %v681 = vmul.f32 %v297, %v485
      %v682 = vmul.f32 %v298, %v489
      %v683 = vmul.f32 %v299, %v493
      %v684 = vmul.f32 %v300, %v497
      %v685 = vmul.f32 %v301, %v501
      %v686 = vmul.f32 %v302, %v505
      %v687 = vmul.f32 %v303, %v509
      %v688 = vmul.f32 %v304, %v513
      %v689 = vmul.f32 %v305, %v517
      %v690 = vmul.f32 %v306, %v521
      %v691 = vmul.f32 %v307, %v525
      %v692 = vmul.f32 %v308, %v529
      %v693 = vmul.f32 %v309, %v533
      %v694 = vmul.f32 %v310, %v537
      %v695 = vmul.f32 %v311, %v541
      %v696 = vmul.f32 %v312, %v545
      %v697 = vmul.f32 %v313, %v549
      %v698 = vmul.f32 %v314, %v553
      %v699 = vmul.f32 %v315, %v557
      %v700 = vmul.f32 %v316, %v561
      %v701 = vmul.f32 %v317, %v565
      %v702 = vmul.f32 %v318, %v569
      %v703 = vmul.f32 %v319, %v573
      %v704 = vmul.f32 %v320, %v577
      %v705 = vmul.f32 %v321, %v581
      %v706 = vmul.f32 %v322, %v585
      %v707 = vmul.f32 %v323, %v589
      %v708 = vmul.f32 %v324, %v593
      %v709 = vmul.f32 %v325, %v597
      %v710 = vmul.f32 %v326, %v601
      %v711 = vmul.f32 %v327, %v605
      %v712 = vmul.f32 %v328, %v609
      %v713 = vmul.f32 %v329, %v613
      %v714 = vmul.f32 %v330, %v617
      %v715 = vmul.f32 %v331, %v621
      %v716 = vmul.f32 %v332, %v625
      %v717 = vmul.f32 %v333, %v629
      %v718 = vmul.f32 %v334, %v633
      %v719 = vmul.f32 %v335, %v637
      %v720 = vmul.f32 %v336, %v641
      %v721 = vmul.f32 %v337, %v645
      %v722 = vmul.f32 %v338, %v649
      %v723 = vmul.f32 %v339, %v653
      %v724 = vmul.f32 %v340, %v657
      %v725 = vmul.f32 %v341, %v661
      %v726 = vpack.c.bf16 %v662, %v662
      %v727 = vpack.c.bf16 %v663, %v663
      %v728 = vpack.c.bf16 %v664, %v664
      %v729 = vpack.c.bf16 %v665, %v665
      %v730 = vpack.c.bf16 %v666, %v666
      %v731 = vpack.c.bf16 %v667, %v667
      %v732 = vpack.c.bf16 %v668, %v668
      %v733 = vpack.c.bf16 %v669, %v669
      %v734 = vpack.c.bf16 %v670, %v670
      %v735 = vpack.c.bf16 %v671, %v671
      %v736 = vpack.c.bf16 %v672, %v672
      %v737 = vpack.c.bf16 %v673, %v673
      %v738 = vpack.c.bf16 %v674, %v674
      %v739 = vpack.c.bf16 %v675, %v675
      %v740 = vpack.c.bf16 %v676, %v676
      %v741 = vpack.c.bf16 %v677, %v677
      %v742 = vpack.c.bf16 %v678, %v678
      %v743 = vpack.c.bf16 %v679, %v679
      %v744 = vpack.c.bf16 %v680, %v680
      %v745 = vpack.c.bf16 %v681, %v681
      %v746 = vpack.c.bf16 %v682, %v682
      %v747 = vpack.c.bf16 %v683, %v683
      %v748 = vpack.c.bf16 %v684, %v684
      %v749 = vpack.c.bf16 %v685, %v685
      %v750 = vpack.c.bf16 %v686, %v686
      %v751 = vpack.c.bf16 %v687, %v687
      %v752 = vpack.c.bf16 %v688, %v688
      %v753 = vpack.c.bf16 %v689, %v689
      %v754 = vpack.c.bf16 %v690, %v690
      %v755 = vpack.c.bf16 %v691, %v691
      %v756 = vpack.c.bf16 %v692, %v692
      %v757 = vpack.c.bf16 %v693, %v693
      %v758 = vpack.c.bf16 %v694, %v694
      %v759 = vpack.c.bf16 %v695, %v695
      %v760 = vpack.c.bf16 %v696, %v696
      %v761 = vpack.c.bf16 %v697, %v697
      %v762 = vpack.c.bf16 %v698, %v698
      %v763 = vpack.c.bf16 %v699, %v699
      %v764 = vpack.c.bf16 %v700, %v700
      %v765 = vpack.c.bf16 %v701, %v701
      %v766 = vpack.c.bf16 %v702, %v702
      %v767 = vpack.c.bf16 %v703, %v703
      %v768 = vpack.c.bf16 %v704, %v704
      %v769 = vpack.c.bf16 %v705, %v705
      %v770 = vpack.c.bf16 %v706, %v706
      %v771 = vpack.c.bf16 %v707, %v707
      %v772 = vpack.c.bf16 %v708, %v708
      %v773 = vpack.c.bf16 %v709, %v709
      %v774 = vpack.c.bf16 %v710, %v710
      %v775 = vpack.c.bf16 %v711, %v711
      %v776 = vpack.c.bf16 %v712, %v712
      %v777 = vpack.c.bf16 %v713, %v713
      %v778 = vpack.c.bf16 %v714, %v714
      %v779 = vpack.c.bf16 %v715, %v715
      %v780 = vpack.c.bf16 %v716, %v716
      %v781 = vpack.c.bf16 %v717, %v717
      %v782 = vpack.c.bf16 %v718, %v718
      %v783 = vpack.c.bf16 %v719, %v719
      %v784 = vpack.c.bf16 %v720, %v720
      %v785 = vpack.c.bf16 %v721, %v721
      %v786 = vpack.c.bf16 %v722, %v722
      %v787 = vpack.c.bf16 %v723, %v723
      %v788 = vpack.c.bf16 %v724, %v724
      %v789 = vpack.c.bf16 %v725, %v725
      %v790 = vld [vmem:[%s263] sm:$0xf]
      %v791 = vld [vmem:[%s263 + $0x4] sm:$0xf]
      %v792 = vld [vmem:[%s263 + $0x8] sm:$0xf]
      %v793 = vld [vmem:[%s263 + $0xc] sm:$0xf]
      %v794 = vld [vmem:[%s263 + $0x10] sm:$0xf]
      %v795 = vld [vmem:[%s263 + $0x14] sm:$0xf]
      %v796 = vld [vmem:[%s263 + $0x18] sm:$0xf]
      %v797 = vld [vmem:[%s263 + $0x1c] sm:$0xf]
      %v798 = vld [vmem:[%s263 + $0x20] sm:$0xf]
      %v799 = vld [vmem:[%s263 + $0x24] sm:$0xf]
      %v800 = vld [vmem:[%s263 + $0x28] sm:$0xf]
      %v801 = vld [vmem:[%s263 + $0x2c] sm:$0xf]
      %v802 = vld [vmem:[%s263 + $0x30] sm:$0xf]
      %v803 = vld [vmem:[%s263 + $0x34] sm:$0xf]
      %v804 = vld [vmem:[%s263 + $0x38] sm:$0xf]
      %v805 = vld [vmem:[%s263 + $0x3c] sm:$0xf]
      %v806 = vld [vmem:[%s263 + $0x40] sm:$0xf]
      %v807 = vld [vmem:[%s263 + $0x44] sm:$0xf]
      %v808 = vld [vmem:[%s263 + $0x48] sm:$0xf]
      %v809 = vld [vmem:[%s263 + $0x4c] sm:$0xf]
      %v810 = vld [vmem:[%s263 + $0x50] sm:$0xf]
      %v811 = vld [vmem:[%s263 + $0x54] sm:$0xf]
      %v812 = vld [vmem:[%s263 + $0x58] sm:$0xf]
      %v813 = vld [vmem:[%s263 + $0x5c] sm:$0xf]
      %v814 = vld [vmem:[%s263 + $0x60] sm:$0xf]
      %v815 = vld [vmem:[%s263 + $0x64] sm:$0xf]
      %v816 = vld [vmem:[%s263 + $0x68] sm:$0xf]
      %v817 = vld [vmem:[%s263 + $0x6c] sm:$0xf]
      %v818 = vld [vmem:[%s263 + $0x70] sm:$0xf]
      %v819 = vld [vmem:[%s263 + $0x74] sm:$0xf]
      %v820 = vld [vmem:[%s263 + $0x78] sm:$0xf]
      %v821 = vld [vmem:[%s263 + $0x7c] sm:$0xf]
      %v822 = vld [vmem:[%s263 + $0x80] sm:$0xf]
      %v823 = vld [vmem:[%s263 + $0x84] sm:$0xf]
      %v824 = vld [vmem:[%s263 + $0x88] sm:$0xf]
      %v825 = vld [vmem:[%s263 + $0x8c] sm:$0xf]
      %v826 = vld [vmem:[%s263 + $0x90] sm:$0xf]
      %v827 = vld [vmem:[%s263 + $0x94] sm:$0xf]
      %v828 = vld [vmem:[%s263 + $0x98] sm:$0xf]
      %v829 = vld [vmem:[%s263 + $0x9c] sm:$0xf]
      %v830 = vld [vmem:[%s263 + $0xa0] sm:$0xf]
      %v831 = vld [vmem:[%s263 + $0xa4] sm:$0xf]
      %v832 = vld [vmem:[%s263 + $0xa8] sm:$0xf]
      %v833 = vld [vmem:[%s263 + $0xac] sm:$0xf]
      %v834 = vld [vmem:[%s263 + $0xb0] sm:$0xf]
      %v835 = vld [vmem:[%s263 + $0xb4] sm:$0xf]
      %v836 = vld [vmem:[%s263 + $0xb8] sm:$0xf]
      %v837 = vld [vmem:[%s263 + $0xbc] sm:$0xf]
      %v838 = vld [vmem:[%s263 + $0xc0] sm:$0xf]
      %v839 = vld [vmem:[%s263 + $0xc4] sm:$0xf]
      %v840 = vld [vmem:[%s263 + $0xc8] sm:$0xf]
      %v841 = vld [vmem:[%s263 + $0xcc] sm:$0xf]
      %v842 = vld [vmem:[%s263 + $0xd0] sm:$0xf]
      %v843 = vld [vmem:[%s263 + $0xd4] sm:$0xf]
      %v844 = vld [vmem:[%s263 + $0xd8] sm:$0xf]
      %v845 = vld [vmem:[%s263 + $0xdc] sm:$0xf]
      %v846 = vld [vmem:[%s263 + $0xe0] sm:$0xf]
      %v847 = vld [vmem:[%s263 + $0xe4] sm:$0xf]
      %v848 = vld [vmem:[%s263 + $0xe8] sm:$0xf]
      %v849 = vld [vmem:[%s263 + $0xec] sm:$0xf]
      %v850 = vld [vmem:[%s263 + $0xf0] sm:$0xf]
      %v851 = vld [vmem:[%s263 + $0xf4] sm:$0xf]
      %v852 = vld [vmem:[%s263 + $0xf8] sm:$0xf]
      %v853 = vld [vmem:[%s263 + $0xfc] sm:$0xf]
      %vm854 = vcmask 64512
      %v856 = vsel %vm854, %v726, 0
      %vm858 = vcmask 1043456
      %v860 = vsel %vm858, %v790, 0
      %862 = vmatprep.subr.bf16.mxu0 0
      %863 = vmatpush1.bf16.msra.mxu0 %v860
      %864 = vmatprep.subr.bf16.mxu0 0
      %865 = vmatpush1.bf16.msra.mxu0 0
      %866 = vmatprep.subr.bf16.mxu0 0
      %867 = vmatpush1.bf16.msra.mxu0 0
      %868 = vmatprep.subr.bf16.mxu0 0
      %869 = vmatpush1.bf16.msra.mxu0 0
      %870 = vmatprep.subr.bf16.mxu0 0
      %871 = vmatpush1.bf16.msra.mxu0 0
      %872 = vmatprep.subr.bf16.mxu0 0
      %873 = vmatpush1.bf16.msra.mxu0 0
      %874 = vmatprep.subr.bf16.mxu0 0
      %875 = vmatpush1.bf16.msra.mxu0 0
      %876 = vmatprep.subr.bf16.mxu0 0
      %877 = vmatpush1.bf16.msra.mxu0 0
      %878 = vmatprep.subr.bf16.mxu0 0
      %879 = vmatpush1.bf16.msra.mxu0 0
      %880 = vmatprep.subr.bf16.mxu0 0
      %881 = vmatpush1.bf16.msra.mxu0 0
      %882 = vmatprep.subr.bf16.mxu0 0
      %883 = vmatpush1.bf16.msra.mxu0 0
      %884 = vmatprep.subr.bf16.mxu0 0
      %885 = vmatpush1.bf16.msra.mxu0 0
      %886 = vmatprep.subr.bf16.mxu0 0
      %887 = vmatpush1.bf16.msra.mxu0 0
      %888 = vmatprep.subr.bf16.mxu0 0
      %889 = vmatpush1.bf16.msra.mxu0 0
      %890 = vmatprep.subr.bf16.mxu0 0
      %891 = vmatpush1.bf16.msra.mxu0 0
      %892 = vmatprep.subr.bf16.mxu0 0
      %893 = vmatpush1.bf16.msra.mxu0 0
      %894 = vmatprep.mubr.bf16.mxu0 0
      %895 = vmatmul.mubr.bf16.gmra.mrb[0].mxu0 %v856
      %v896 = vpop.f32.mrb[0].mxu0
      %v897 = vadd.f32 %v662, %v896
      %v898 = vpop.f32.mrb[0].mxu0
      %v899 = vpop.f32.mrb[0].mxu0
      %v900 = vpop.f32.mrb[0].mxu0
      %901 = vdwg.mxu0
      %v903 = vsel %vm854, %v727, 0
      %v906 = vsel %vm858, %v791, 0
      %908 = vmatprep.subr.bf16.mxu0 0
      %909 = vmatpush1.bf16.msra.mxu0 %v906
      %910 = vmatprep.subr.bf16.mxu0 0
      %911 = vmatpush1.bf16.msra.mxu0 0
      %912 = vmatprep.subr.bf16.mxu0 0
      %913 = vmatpush1.bf16.msra.mxu0 0
      %914 = vmatprep.subr.bf16.mxu0 0
      %915 = vmatpush1.bf16.msra.mxu0 0
      %916 = vmatprep.subr.bf16.mxu0 0
      %917 = vmatpush1.bf16.msra.mxu0 0
      %918 = vmatprep.subr.bf16.mxu0 0
      %919 = vmatpush1.bf16.msra.mxu0 0
      %920 = vmatprep.subr.bf16.mxu0 0
      %921 = vmatpush1.bf16.msra.mxu0 0
      %922 = vmatprep.subr.bf16.mxu0 0
      %923 = vmatpush1.bf16.msra.mxu0 0
      %924 = vmatprep.subr.bf16.mxu0 0
      %925 = vmatpush1.bf16.msra.mxu0 0
      %926 = vmatprep.subr.bf16.mxu0 0
      %927 = vmatpush1.bf16.msra.mxu0 0
      %928 = vmatprep.subr.bf16.mxu0 0
      %929 = vmatpush1.bf16.msra.mxu0 0
      %930 = vmatprep.subr.bf16.mxu0 0
      %931 = vmatpush1.bf16.msra.mxu0 0
      %932 = vmatprep.subr.bf16.mxu0 0
      %933 = vmatpush1.bf16.msra.mxu0 0
      %934 = vmatprep.subr.bf16.mxu0 0
      %935 = vmatpush1.bf16.msra.mxu0 0
      %936 = vmatprep.subr.bf16.mxu0 0
      %937 = vmatpush1.bf16.msra.mxu0 0
      %938 = vmatprep.subr.bf16.mxu0 0
      %939 = vmatpush1.bf16.msra.mxu0 0
      %940 = vmatprep.mubr.bf16.mxu0 0
      %941 = vmatmul.mubr.bf16.gmra.mrb[0].mxu0 %v903
      %v942 = vpop.f32.mrb[0].mxu0
      %v943 = vadd.f32 %v663, %v942
      %v944 = vpop.f32.mrb[0].mxu0
      %v945 = vpop.f32.mrb[0].mxu0
      %v946 = vpop.f32.mrb[0].mxu0
      %947 = vdwg.mxu0
      %v949 = vsel %vm854, %v728, 0
      %v952 = vsel %vm858, %v792, 0
      %954 = vmatprep.subr.bf16.mxu0 0
      %955 = vmatpush1.bf16.msra.mxu0 %v952
      %956 = vmatprep.subr.bf16.mxu0 0
      %957 = vmatpush1.bf16.msra.mxu0 0
      %958 = vmatprep.subr.bf16.mxu0 0
      %959 = vmatpush1.bf16.msra.mxu0 0
      %960 = vmatprep.subr.bf16.mxu0 0
      %961 = vmatpush1.bf16.msra.mxu0 0
      %962 = vmatprep.subr.bf16.mxu0 0
      %963 = vmatpush1.bf16.msra.mxu0 0
      %964 = vmatprep.subr.bf16.mxu0 0
      %965 = vmatpush1.bf16.msra.mxu0 0
      %966 = vmatprep.subr.bf16.mxu0 0
      %967 = vmatpush1.bf16.msra.mxu0 0
      %968 = vmatprep.subr.bf16.mxu0 0
      %969 = vmatpush1.bf16.msra.mxu0 0
      %970 = vmatprep.subr.bf16.mxu0 0
      %971 = vmatpush1.bf16.msra.mxu0 0
      %972 = vmatprep.subr.bf16.mxu0 0
      %973 = vmatpush1.bf16.msra.mxu0 0
      %974 = vmatprep.subr.bf16.mxu0 0
      %975 = vmatpush1.bf16.msra.mxu0 0
      %976 = vmatprep.subr.bf16.mxu0 0
      %977 = vmatpush1.bf16.msra.mxu0 0
      %978 = vmatprep.subr.bf16.mxu0 0
      %979 = vmatpush1.bf16.msra.mxu0 0
      %980 = vmatprep.subr.bf16.mxu0 0
      %981 = vmatpush1.bf16.msra.mxu0 0
      %982 = vmatprep.subr.bf16.mxu0 0
      %983 = vmatpush1.bf16.msra.mxu0 0
      %984 = vmatprep.subr.bf16.mxu0 0
      %985 = vmatpush1.bf16.msra.mxu0 0
      %986 = vmatprep.mubr.bf16.mxu0 0
      %987 = vmatmul.mubr.bf16.gmra.mrb[0].mxu0 %v949
      %v988 = vpop.f32.mrb[0].mxu0
      %v989 = vadd.f32 %v664, %v988
      %v990 = vpop.f32.mrb[0].mxu0
      %v991 = vpop.f32.mrb[0].mxu0
      %v992 = vpop.f32.mrb[0].mxu0
      %993 = vdwg.mxu0
      %v995 = vsel %vm854, %v729, 0
      %v998 = vsel %vm858, %v793, 0
      %1000 = vmatprep.subr.bf16.mxu0 0
      %1001 = vmatpush1.bf16.msra.mxu0 %v998
      %1002 = vmatprep.subr.bf16.mxu0 0
      %1003 = vmatpush1.bf16.msra.mxu0 0
      %1004 = vmatprep.subr.bf16.mxu0 0
      %1005 = vmatpush1.bf16.msra.mxu0 0
      %1006 = vmatprep.subr.bf16.mxu0 0
      %1007 = vmatpush1.bf16.msra.mxu0 0
      %1008 = vmatprep.subr.bf16.mxu0 0
      %1009 = vmatpush1.bf16.msra.mxu0 0
      %1010 = vmatprep.subr.bf16.mxu0 0
      %1011 = vmatpush1.bf16.msra.mxu0 0
      %1012 = vmatprep.subr.bf16.mxu0 0
      %1013 = vmatpush1.bf16.msra.mxu0 0
      %1014 = vmatprep.subr.bf16.mxu0 0
      %1015 = vmatpush1.bf16.msra.mxu0 0
      %1016 = vmatprep.subr.bf16.mxu0 0
      %1017 = vmatpush1.bf16.msra.mxu0 0
      %1018 = vmatprep.subr.bf16.mxu0 0
      %1019 = vmatpush1.bf16.msra.mxu0 0
      %1020 = vmatprep.subr.bf16.mxu0 0
      %1021 = vmatpush1.bf16.msra.mxu0 0
      %1022 = vmatprep.subr.bf16.mxu0 0
      %1023 = vmatpush1.bf16.msra.mxu0 0
      %1024 = vmatprep.subr.bf16.mxu0 0
      %1025 = vmatpush1.bf16.msra.mxu0 0
      %1026 = vmatprep.subr.bf16.mxu0 0
      %1027 = vmatpush1.bf16.msra.mxu0 0
      %1028 = vmatprep.subr.bf16.mxu0 0
      %1029 = vmatpush1.bf16.msra.mxu0 0
      %1030 = vmatprep.subr.bf16.mxu0 0
      %1031 = vmatpush1.bf16.msra.mxu0 0
      %1032 = vmatprep.mubr.bf16.mxu0 0
      %1033 = vmatmul.mubr.bf16.gmra.mrb[0].mxu0 %v995
      %v1034 = vpop.f32.mrb[0].mxu0
      %v1035 = vadd.f32 %v665, %v1034
      %v1036 = vpop.f32.mrb[0].mxu0
      %v1037 = vpop.f32.mrb[0].mxu0
      %v1038 = vpop.f32.mrb[0].mxu0
      %1039 = vdwg.mxu0
      %v1041 = vsel %vm854, %v730, 0
      %v1044 = vsel %vm858, %v794, 0
      %1046 = vmatprep.subr.bf16.mxu0 0
      %1047 = vmatpush1.bf16.msra.mxu0 %v1044
      %1048 = vmatprep.subr.bf16.mxu0 0
      %1049 = vmatpush1.bf16.msra.mxu0 0
      %1050 = vmatprep.subr.bf16.mxu0 0
      %1051 = vmatpush1.bf16.msra.mxu0 0
      %1052 = vmatprep.subr.bf16.mxu0 0
      %1053 = vmatpush1.bf16.msra.mxu0 0
      %1054 = vmatprep.subr.bf16.mxu0 0
      %1055 = vmatpush1.bf16.msra.mxu0 0
      %1056 = vmatprep.subr.bf16.mxu0 0
      %1057 = vmatpush1.bf16.msra.mxu0 0
      %1058 = vmatprep.subr.bf16.mxu0 0
      %1059 = vmatpush1.bf16.msra.mxu0 0
      %1060 = vmatprep.subr.bf16.mxu0 0
      %1061 = vmatpush1.bf16.msra.mxu0 0
      %1062 = vmatprep.subr.bf16.mxu0 0
      %1063 = vmatpush1.bf16.msra.mxu0 0
      %1064 = vmatprep.subr.bf16.mxu0 0
      %1065 = vmatpush1.bf16.msra.mxu0 0
      %1066 = vmatprep.subr.bf16.mxu0 0
      %1067 = vmatpush1.bf16.msra.mxu0 0
      %1068 = vmatprep.subr.bf16.mxu0 0
      %1069 = vmatpush1.bf16.msra.mxu0 0
      %1070 = vmatprep.subr.bf16.mxu0 0
      %1071 = vmatpush1.bf16.msra.mxu0 0
      %1072 = vmatprep.subr.bf16.mxu0 0
      %1073 = vmatpush1.bf16.msra.mxu0 0
      %1074 = vmatprep.subr.bf16.mxu0 0
      %1075 = vmatpush1.bf16.msra.mxu0 0
      %1076 = vmatprep.subr.bf16.mxu0 0
      %1077 = vmatpush1.bf16.msra.mxu0 0
      %1078 = vmatprep.mubr.bf16.mxu0 0
      %1079 = vmatmul.mubr.bf16.gmra.mrb[0].mxu0 %v1041
      %v1080 = vpop.f32.mrb[0].mxu0
      %v1081 = vadd.f32 %v666, %v1080
      %v1082 = vpop.f32.mrb[0].mxu0
      %v1083 = vpop.f32.mrb[0].mxu0
      %v1084 = vpop.f32.mrb[0].mxu0
      %1085 = vdwg.mxu0
      %v1087 = vsel %vm854, %v731, 0
      %v1090 = vsel %vm858, %v795, 0
      %1092 = vmatprep.subr.bf16.mxu0 0
      %1093 = vmatpush1.bf16.msra.mxu0 %v1090
      %1094 = vmatprep.subr.bf16.mxu0 0
      %1095 = vmatpush1.bf16.msra.mxu0 0
      %1096 = vmatprep.subr.bf16.mxu0 0
      %1097 = vmatpush1.bf16.msra.mxu0 0
      %1098 = vmatprep.subr.bf16.mxu0 0
      %1099 = vmatpush1.bf16.msra.mxu0 0
      %1100 = vmatprep.subr.bf16.mxu0 0
      %1101 = vmatpush1.bf16.msra.mxu0 0
      %1102 = vmatprep.subr.bf16.mxu0 0
      %1103 = vmatpush1.bf16.msra.mxu0 0
      %1104 = vmatprep.subr.bf16.mxu0 0
      %1105 = vmatpush1.bf16.msra.mxu0 0
      %1106 = vmatprep.subr.bf16.mxu0 0
      %1107 = vmatpush1.bf16.msra.mxu0 0
      %1108 = vmatprep.subr.bf16.mxu0 0
      %1109 = vmatpush1.bf16.msra.mxu0 0
      %1110 = vmatprep.subr.bf16.mxu0 0
      %1111 = vmatpush1.bf16.msra.mxu0 0
      %1112 = vmatprep.subr.bf16.mxu0 0
      %1113 = vmatpush1.bf16.msra.mxu0 0
      %1114 = vmatprep.subr.bf16.mxu0 0
      %1115 = vmatpush1.bf16.msra.mxu0 0
      %1116 = vmatprep.subr.bf16.mxu0 0
      %1117 = vmatpush1.bf16.msra.mxu0 0
      %1118 = vmatprep.subr.bf16.mxu0 0
      %1119 = vmatpush1.bf16.msra.mxu0 0
      %1120 = vmatprep.subr.bf16.mxu0 0
      %1121 = vmatpush1.bf16.msra.mxu0 0
      %1122 = vmatprep.subr.bf16.mxu0 0
      %1123 = vmatpush1.bf16.msra.mxu0 0
      %1124 = vmatprep.mubr.bf16.mxu0 0
      %1125 = vmatmul.mubr.bf16.gmra.mrb[0].mxu0 %v1087
      %v1126 = vpop.f32.mrb[0].mxu0
      %v1127 = vadd.f32 %v667, %v1126
      %v1128 = vpop.f32.mrb[0].mxu0
      %v1129 = vpop.f32.mrb[0].mxu0
      %v1130 = vpop.f32.mrb[0].mxu0
      %1131 = vdwg.mxu0
      %v1133 = vsel %vm854, %v732, 0
      %v1136 = vsel %vm858, %v796, 0
      %1138 = vmatprep.subr.bf16.mxu0 0
      %1139 = vmatpush1.bf16.msra.mxu0 %v1136
      %1140 = vmatprep.subr.bf16.mxu0 0
      %1141 = vmatpush1.bf16.msra.mxu0 0
      %1142 = vmatprep.subr.bf16.mxu0 0
      %1143 = vmatpush1.bf16.msra.mxu0 0
      %1144 = vmatprep.subr.bf16.mxu0 0
      %1145 = vmatpush1.bf16.msra.mxu0 0
      %1146 = vmatprep.subr.bf16.mxu0 0
      %1147 = vmatpush1.bf16.msra.mxu0 0
      %1148 = vmatprep.subr.bf16.mxu0 0
      %1149 = vmatpush1.bf16.msra.mxu0 0
      %1150 = vmatprep.subr.bf16.mxu0 0
      %1151 = vmatpush1.bf16.msra.mxu0 0
      %1152 = vmatprep.subr.bf16.mxu0 0
      %1153 = vmatpush1.bf16.msra.mxu0 0
      %1154 = vmatprep.subr.bf16.mxu0 0
      %1155 = vmatpush1.bf16.msra.mxu0 0
      %1156 = vmatprep.subr.bf16.mxu0 0
      %1157 = vmatpush1.bf16.msra.mxu0 0
      %1158 = vmatprep.subr.bf16.mxu0 0
      %1159 = vmatpush1.bf16.msra.mxu0 0
      %1160 = vmatprep.subr.bf16.mxu0 0
      %1161 = vmatpush1.bf16.msra.mxu0 0
      %1162 = vmatprep.subr.bf16.mxu0 0
      %1163 = vmatpush1.bf16.msra.mxu0 0
      %1164 = vmatprep.subr.bf16.mxu0 0
      %1165 = vmatpush1.bf16.msra.mxu0 0
      %1166 = vmatprep.subr.bf16.mxu0 0
      %1167 = vmatpush1.bf16.msra.mxu0 0
      %1168 = vmatprep.subr.bf16.mxu0 0
      %1169 = vmatpush1.bf16.msra.mxu0 0
      %1170 = vmatprep.mubr.bf16.mxu0 0
      %1171 = vmatmul.mubr.bf16.gmra.mrb[0].mxu0 %v1133
      %v1172 = vpop.f32.mrb[0].mxu0
      %v1173 = vadd.f32 %v668, %v1172
      %v1174 = vpop.f32.mrb[0].mxu0
      %v1175 = vpop.f32.mrb[0].mxu0
      %v1176 = vpop.f32.mrb[0].mxu0
      %1177 = vdwg.mxu0
      %v1179 = vsel %vm854, %v733, 0
      %v1182 = vsel %vm858, %v797, 0
      %1184 = vmatprep.subr.bf16.mxu0 0
      %1185 = vmatpush1.bf16.msra.mxu0 %v1182
      %1186 = vmatprep.subr.bf16.mxu0 0
      %1187 = vmatpush1.bf16.msra.mxu0 0
      %1188 = vmatprep.subr.bf16.mxu0 0
      %1189 = vmatpush1.bf16.msra.mxu0 0
      %1190 = vmatprep.subr.bf16.mxu0 0
      %1191 = vmatpush1.bf16.msra.mxu0 0
      %1192 = vmatprep.subr.bf16.mxu0 0
      %1193 = vmatpush1.bf16.msra.mxu0 0
      %1194 = vmatprep.subr.bf16.mxu0 0
      %1195 = vmatpush1.bf16.msra.mxu0 0
      %1196 = vmatprep.subr.bf16.mxu0 0
      %1197 = vmatpush1.bf16.msra.mxu0 0
      %1198 = vmatprep.subr.bf16.mxu0 0
      %1199 = vmatpush1.bf16.msra.mxu0 0
      %1200 = vmatprep.subr.bf16.mxu0 0
      %1201 = vmatpush1.bf16.msra.mxu0 0
      %1202 = vmatprep.subr.bf16.mxu0 0
      %1203 = vmatpush1.bf16.msra.mxu0 0
      %1204 = vmatprep.subr.bf16.mxu0 0
      %1205 = vmatpush1.bf16.msra.mxu0 0
      %1206 = vmatprep.subr.bf16.mxu0 0
      %1207 = vmatpush1.bf16.msra.mxu0 0
      %1208 = vmatprep.subr.bf16.mxu0 0
      %1209 = vmatpush1.bf16.msra.mxu0 0
      %1210 = vmatprep.subr.bf16.mxu0 0
      %1211 = vmatpush1.bf16.msra.mxu0 0
      %1212 = vmatprep.subr.bf16.mxu0 0
      %1213 = vmatpush1.bf16.msra.mxu0 0
      %1214 = vmatprep.subr.bf16.mxu0 0
      %1215 = vmatpush1.bf16.msra.mxu0 0
      %1216 = vmatprep.mubr.bf16.mxu0 0
      %1217 = vmatmul.mubr.bf16.gmra.mrb[0].mxu0 %v1179
      %v1218 = vpop.f32.mrb[0].mxu0
      %v1219 = vadd.f32 %v669, %v1218
      %v1220 = vpop.f32.mrb[0].mxu0
      %v1221 = vpop.f32.mrb[0].mxu0
      %v1222 = vpop.f32.mrb[0].mxu0
      %1223 = vdwg.mxu0
      %v1225 = vsel %vm854, %v734, 0
      %v1228 = vsel %vm858, %v798, 0
      %1230 = vmatprep.subr.bf16.mxu0 0
      %1231 = vmatpush1.bf16.msra.mxu0 %v1228
      %1232 = vmatprep.subr.bf16.mxu0 0
      %1233 = vmatpush1.bf16.msra.mxu0 0
      %1234 = vmatprep.subr.bf16.mxu0 0
      %1235 = vmatpush1.bf16.msra.mxu0 0
      %1236 = vmatprep.subr.bf16.mxu0 0
      %1237 = vmatpush1.bf16.msra.mxu0 0
      %1238 = vmatprep.subr.bf16.mxu0 0
      %1239 = vmatpush1.bf16.msra.mxu0 0
      %1240 = vmatprep.subr.bf16.mxu0 0
      %1241 = vmatpush1.bf16.msra.mxu0 0
      %1242 = vmatprep.subr.bf16.mxu0 0
      %1243 = vmatpush1.bf16.msra.mxu0 0
      %1244 = vmatprep.subr.bf16.mxu0 0
      %1245 = vmatpush1.bf16.msra.mxu0 0
      %1246 = vmatprep.subr.bf16.mxu0 0
      %1247 = vmatpush1.bf16.msra.mxu0 0
      %1248 = vmatprep.subr.bf16.mxu0 0
      %1249 = vmatpush1.bf16.msra.mxu0 0
      %1250 = vmatprep.subr.bf16.mxu0 0
      %1251 = vmatpush1.bf16.msra.mxu0 0
      %1252 = vmatprep.subr.bf16.mxu0 0
      %1253 = vmatpush1.bf16.msra.mxu0 0
      %1254 = vmatprep.subr.bf16.mxu0 0
      %1255 = vmatpush1.bf16.msra.mxu0 0
      %1256 = vmatprep.subr.bf16.mxu0 0
      %1257 = vmatpush1.bf16.msra.mxu0 0
      %1258 = vmatprep.subr.bf16.mxu0 0
      %1259 = vmatpush1.bf16.msra.mxu0 0
      %1260 = vmatprep.subr.bf16.mxu0 0
      %1261 = vmatpush1.bf16.msra.mxu0 0
      %1262 = vmatprep.mubr.bf16.mxu0 0
      %1263 = vmatmul.mubr.bf16.gmra.mrb[0].mxu0 %v1225
      %v1264 = vpop.f32.mrb[0].mxu0
      %v1265 = vadd.f32 %v670, %v1264
      %v1266 = vpop.f32.mrb[0].mxu0
      %v1267 = vpop.f32.mrb[0].mxu0
      %v1268 = vpop.f32.mrb[0].mxu0
      %1269 = vdwg.mxu0
      %v1271 = vsel %vm854, %v735, 0
      %v1274 = vsel %vm858, %v799, 0
      %1276 = vmatprep.subr.bf16.mxu0 0
      %1277 = vmatpush1.bf16.msra.mxu0 %v1274
      %1278 = vmatprep.subr.bf16.mxu0 0
      %1279 = vmatpush1.bf16.msra.mxu0 0
      %1280 = vmatprep.subr.bf16.mxu0 0
      %1281 = vmatpush1.bf16.msra.mxu0 0
      %1282 = vmatprep.subr.bf16.mxu0 0
      %1283 = vmatpush1.bf16.msra.mxu0 0
      %1284 = vmatprep.subr.bf16.mxu0 0
      %1285 = vmatpush1.bf16.msra.mxu0 0
      %1286 = vmatprep.subr.bf16.mxu0 0
      %1287 = vmatpush1.bf16.msra.mxu0 0
      %1288 = vmatprep.subr.bf16.mxu0 0
      %1289 = vmatpush1.bf16.msra.mxu0 0
      %1290 = vmatprep.subr.bf16.mxu0 0
      %1291 = vmatpush1.bf16.msra.mxu0 0
      %1292 = vmatprep.subr.bf16.mxu0 0
      %1293 = vmatpush1.bf16.msra.mxu0 0
      %1294 = vmatprep.subr.bf16.mxu0 0
      %1295 = vmatpush1.bf16.msra.mxu0 0
      %1296 = vmatprep.subr.bf16.mxu0 0
      %1297 = vmatpush1.bf16.msra.mxu0 0
      %1298 = vmatprep.subr.bf16.mxu0 0
      %1299 = vmatpush1.bf16.msra.mxu0 0
      %1300 = vmatprep.subr.bf16.mxu0 0
      %1301 = vmatpush1.bf16.msra.mxu0 0
      %1302 = vmatprep.subr.bf16.mxu0 0
      %1303 = vmatpush1.bf16.msra.mxu0 0
      %1304 = vmatprep.subr.bf16.mxu0 0
      %1305 = vmatpush1.bf16.msra.mxu0 0
      %1306 = vmatprep.subr.bf16.mxu0 0
      %1307 = vmatpush1.bf16.msra.mxu0 0
      %1308 = vmatprep.mubr.bf16.mxu0 0
      %1309 = vmatmul.mubr.bf16.gmra.mrb[0].mxu0 %v1271
      %v1310 = vpop.f32.mrb[0].mxu0
      %v1311 = vadd.f32 %v671, %v1310
      %v1312 = vpop.f32.mrb[0].mxu0
      %v1313 = vpop.f32.mrb[0].mxu0
      %v1314 = vpop.f32.mrb[0].mxu0
      %1315 = vdwg.mxu0
      %v1317 = vsel %vm854, %v736, 0
      %v1320 = vsel %vm858, %v800, 0
      %1322 = vmatprep.subr.bf16.mxu0 0
      %1323 = vmatpush1.bf16.msra.mxu0 %v1320
      %1324 = vmatprep.subr.bf16.mxu0 0
      %1325 = vmatpush1.bf16.msra.mxu0 0
      %1326 = vmatprep.subr.bf16.mxu0 0
      %1327 = vmatpush1.bf16.msra.mxu0 0
      %1328 = vmatprep.subr.bf16.mxu0 0
      %1329 = vmatpush1.bf16.msra.mxu0 0
      %1330 = vmatprep.subr.bf16.mxu0 0
      %1331 = vmatpush1.bf16.msra.mxu0 0
      %1332 = vmatprep.subr.bf16.mxu0 0
      %1333 = vmatpush1.bf16.msra.mxu0 0
      %1334 = vmatprep.subr.bf16.mxu0 0
      %1335 = vmatpush1.bf16.msra.mxu0 0
      %1336 = vmatprep.subr.bf16.mxu0 0
      %1337 = vmatpush1.bf16.msra.mxu0 0
      %1338 = vmatprep.subr.bf16.mxu0 0
      %1339 = vmatpush1.bf16.msra.mxu0 0
      %1340 = vmatprep.subr.bf16.mxu0 0
      %1341 = vmatpush1.bf16.msra.mxu0 0
      %1342 = vmatprep.subr.bf16.mxu0 0
      %1343 = vmatpush1.bf16.msra.mxu0 0
      %1344 = vmatprep.subr.bf16.mxu0 0
      %1345 = vmatpush1.bf16.msra.mxu0 0
      %1346 = vmatprep.subr.bf16.mxu0 0
      %1347 = vmatpush1.bf16.msra.mxu0 0
      %1348 = vmatprep.subr.bf16.mxu0 0
      %1349 = vmatpush1.bf16.msra.mxu0 0
      %1350 = vmatprep.subr.bf16.mxu0 0
      %1351 = vmatpush1.bf16.msra.mxu0 0
      %1352 = vmatprep.subr.bf16.mxu0 0
      %1353 = vmatpush1.bf16.msra.mxu0 0
      %1354 = vmatprep.mubr.bf16.mxu0 0
      %1355 = vmatmul.mubr.bf16.gmra.mrb[0].mxu0 %v1317
      %v1356 = vpop.f32.mrb[0].mxu0
      %v1357 = vadd.f32 %v672, %v1356
      %v1358 = vpop.f32.mrb[0].mxu0
      %v1359 = vpop.f32.mrb[0].mxu0
      %v1360 = vpop.f32.mrb[0].mxu0
      %1361 = vdwg.mxu0
      %v1363 = vsel %vm854, %v737, 0
      %v1366 = vsel %vm858, %v801, 0
      %1368 = vmatprep.subr.bf16.mxu0 0
      %1369 = vmatpush1.bf16.msra.mxu0 %v1366
      %1370 = vmatprep.subr.bf16.mxu0 0
      %1371 = vmatpush1.bf16.msra.mxu0 0
      %1372 = vmatprep.subr.bf16.mxu0 0
      %1373 = vmatpush1.bf16.msra.mxu0 0
      %1374 = vmatprep.subr.bf16.mxu0 0
      %1375 = vmatpush1.bf16.msra.mxu0 0
      %1376 = vmatprep.subr.bf16.mxu0 0
      %1377 = vmatpush1.bf16.msra.mxu0 0
      %1378 = vmatprep.subr.bf16.mxu0 0
      %1379 = vmatpush1.bf16.msra.mxu0 0
      %1380 = vmatprep.subr.bf16.mxu0 0
      %1381 = vmatpush1.bf16.msra.mxu0 0
      %1382 = vmatprep.subr.bf16.mxu0 0
      %1383 = vmatpush1.bf16.msra.mxu0 0
      %1384 = vmatprep.subr.bf16.mxu0 0
      %1385 = vmatpush1.bf16.msra.mxu0 0
      %1386 = vmatprep.subr.bf16.mxu0 0
      %1387 = vmatpush1.bf16.msra.mxu0 0
      %1388 = vmatprep.subr.bf16.mxu0 0
      %1389 = vmatpush1.bf16.msra.mxu0 0
      %1390 = vmatprep.subr.bf16.mxu0 0
      %1391 = vmatpush1.bf16.msra.mxu0 0
      %1392 = vmatprep.subr.bf16.mxu0 0
      %1393 = vmatpush1.bf16.msra.mxu0 0
      %1394 = vmatprep.subr.bf16.mxu0 0
      %1395 = vmatpush1.bf16.msra.mxu0 0
      %1396 = vmatprep.subr.bf16.mxu0 0
      %1397 = vmatpush1.bf16.msra.mxu0 0
      %1398 = vmatprep.subr.bf16.mxu0 0
      %1399 = vmatpush1.bf16.msra.mxu0 0
      %1400 = vmatprep.mubr.bf16.mxu0 0
      %1401 = vmatmul.mubr.bf16.gmra.mrb[0].mxu0 %v1363
      %v1402 = vpop.f32.mrb[0].mxu0
      %v1403 = vadd.f32 %v673, %v1402
      %v1404 = vpop.f32.mrb[0].mxu0
      %v1405 = vpop.f32.mrb[0].mxu0
      %v1406 = vpop.f32.mrb[0].mxu0
      %1407 = vdwg.mxu0
      %v1409 = vsel %vm854, %v738, 0
      %v1412 = vsel %vm858, %v802, 0
      %1414 = vmatprep.subr.bf16.mxu0 0
      %1415 = vmatpush1.bf16.msra.mxu0 %v1412
      %1416 = vmatprep.subr.bf16.mxu0 0
      %1417 = vmatpush1.bf16.msra.mxu0 0
      %1418 = vmatprep.subr.bf16.mxu0 0
      %1419 = vmatpush1.bf16.msra.mxu0 0
      %1420 = vmatprep.subr.bf16.mxu0 0
      %1421 = vmatpush1.bf16.msra.mxu0 0
      %1422 = vmatprep.subr.bf16.mxu0 0
      %1423 = vmatpush1.bf16.msra.mxu0 0
      %1424 = vmatprep.subr.bf16.mxu0 0
      %1425 = vmatpush1.bf16.msra.mxu0 0
      %1426 = vmatprep.subr.bf16.mxu0 0
      %1427 = vmatpush1.bf16.msra.mxu0 0
      %1428 = vmatprep.subr.bf16.mxu0 0
      %1429 = vmatpush1.bf16.msra.mxu0 0
      %1430 = vmatprep.subr.bf16.mxu0 0
      %1431 = vmatpush1.bf16.msra.mxu0 0
      %1432 = vmatprep.subr.bf16.mxu0 0
      %1433 = vmatpush1.bf16.msra.mxu0 0
      %1434 = vmatprep.subr.bf16.mxu0 0
      %1435 = vmatpush1.bf16.msra.mxu0 0
      %1436 = vmatprep.subr.bf16.mxu0 0
      %1437 = vmatpush1.bf16.msra.mxu0 0
      %1438 = vmatprep.subr.bf16.mxu0 0
      %1439 = vmatpush1.bf16.msra.mxu0 0
      %1440 = vmatprep.subr.bf16.mxu0 0
      %1441 = vmatpush1.bf16.msra.mxu0 0
      %1442 = vmatprep.subr.bf16.mxu0 0
      %1443 = vmatpush1.bf16.msra.mxu0 0
      %1444 = vmatprep.subr.bf16.mxu0 0
      %1445 = vmatpush1.bf16.msra.mxu0 0
      %1446 = vmatprep.mubr.bf16.mxu0 0
      %1447 = vmatmul.mubr.bf16.gmra.mrb[0].mxu0 %v1409
      %v1448 = vpop.f32.mrb[0].mxu0
      %v1449 = vadd.f32 %v674, %v1448
      %v1450 = vpop.f32.mrb[0].mxu0
      %v1451 = vpop.f32.mrb[0].mxu0
      %v1452 = vpop.f32.mrb[0].mxu0
      %1453 = vdwg.mxu0
      %v1455 = vsel %vm854, %v739, 0
      %v1458 = vsel %vm858, %v803, 0
      %1460 = vmatprep.subr.bf16.mxu0 0
      %1461 = vmatpush1.bf16.msra.mxu0 %v1458
      %1462 = vmatprep.subr.bf16.mxu0 0
      %1463 = vmatpush1.bf16.msra.mxu0 0
      %1464 = vmatprep.subr.bf16.mxu0 0
      %1465 = vmatpush1.bf16.msra.mxu0 0
      %1466 = vmatprep.subr.bf16.mxu0 0
      %1467 = vmatpush1.bf16.msra.mxu0 0
      %1468 = vmatprep.subr.bf16.mxu0 0
      %1469 = vmatpush1.bf16.msra.mxu0 0
      %1470 = vmatprep.subr.bf16.mxu0 0
      %1471 = vmatpush1.bf16.msra.mxu0 0
      %1472 = vmatprep.subr.bf16.mxu0 0
      %1473 = vmatpush1.bf16.msra.mxu0 0
      %1474 = vmatprep.subr.bf16.mxu0 0
      %1475 = vmatpush1.bf16.msra.mxu0 0
      %1476 = vmatprep.subr.bf16.mxu0 0
      %1477 = vmatpush1.bf16.msra.mxu0 0
      %1478 = vmatprep.subr.bf16.mxu0 0
      %1479 = vmatpush1.bf16.msra.mxu0 0
      %1480 = vmatprep.subr.bf16.mxu0 0
      %1481 = vmatpush1.bf16.msra.mxu0 0
      %1482 = vmatprep.subr.bf16.mxu0 0
      %1483 = vmatpush1.bf16.msra.mxu0 0
      %1484 = vmatprep.subr.bf16.mxu0 0
      %1485 = vmatpush1.bf16.msra.mxu0 0
      %1486 = vmatprep.subr.bf16.mxu0 0
      %1487 = vmatpush1.bf16.msra.mxu0 0
      %1488 = vmatprep.subr.bf16.mxu0 0
      %1489 = vmatpush1.bf16.msra.mxu0 0
      %1490 = vmatprep.subr.bf16.mxu0 0
      %1491 = vmatpush1.bf16.msra.mxu0 0
      %1492 = vmatprep.mubr.bf16.mxu0 0
      %1493 = vmatmul.mubr.bf16.gmra.mrb[0].mxu0 %v1455
      %v1494 = vpop.f32.mrb[0].mxu0
      %v1495 = vadd.f32 %v675, %v1494
      %v1496 = vpop.f32.mrb[0].mxu0
      %v1497 = vpop.f32.mrb[0].mxu0
      %v1498 = vpop.f32.mrb[0].mxu0
      %1499 = vdwg.mxu0
      %v1501 = vsel %vm854, %v740, 0
      %v1504 = vsel %vm858, %v804, 0
      %1506 = vmatprep.subr.bf16.mxu0 0
      %1507 = vmatpush1.bf16.msra.mxu0 %v1504
      %1508 = vmatprep.subr.bf16.mxu0 0
      %1509 = vmatpush1.bf16.msra.mxu0 0
      %1510 = vmatprep.subr.bf16.mxu0 0
      %1511 = vmatpush1.bf16.msra.mxu0 0
      %1512 = vmatprep.subr.bf16.mxu0 0
      %1513 = vmatpush1.bf16.msra.mxu0 0
      %1514 = vmatprep.subr.bf16.mxu0 0
      %1515 = vmatpush1.bf16.msra.mxu0 0
      %1516 = vmatprep.subr.bf16.mxu0 0
      %1517 = vmatpush1.bf16.msra.mxu0 0
      %1518 = vmatprep.subr.bf16.mxu0 0
      %1519 = vmatpush1.bf16.msra.mxu0 0
      %1520 = vmatprep.subr.bf16.mxu0 0
      %1521 = vmatpush1.bf16.msra.mxu0 0
      %1522 = vmatprep.subr.bf16.mxu0 0
      %1523 = vmatpush1.bf16.msra.mxu0 0
      %1524 = vmatprep.subr.bf16.mxu0 0
      %1525 = vmatpush1.bf16.msra.mxu0 0
      %1526 = vmatprep.subr.bf16.mxu0 0
      %1527 = vmatpush1.bf16.msra.mxu0 0
      %1528 = vmatprep.subr.bf16.mxu0 0
      %1529 = vmatpush1.bf16.msra.mxu0 0
      %1530 = vmatprep.subr.bf16.mxu0 0
      %1531 = vmatpush1.bf16.msra.mxu0 0
      %1532 = vmatprep.subr.bf16.mxu0 0
      %1533 = vmatpush1.bf16.msra.mxu0 0
      %1534 = vmatprep.subr.bf16.mxu0 0
      %1535 = vmatpush1.bf16.msra.mxu0 0
      %1536 = vmatprep.subr.bf16.mxu0 0
      %1537 = vmatpush1.bf16.msra.mxu0 0
      %1538 = vmatprep.mubr.bf16.mxu0 0
      %1539 = vmatmul.mubr.bf16.gmra.mrb[0].mxu0 %v1501
      %v1540 = vpop.f32.mrb[0].mxu0
      %v1541 = vadd.f32 %v676, %v1540
      %v1542 = vpop.f32.mrb[0].mxu0
      %v1543 = vpop.f32.mrb[0].mxu0
      %v1544 = vpop.f32.mrb[0].mxu0
      %1545 = vdwg.mxu0
      %v1547 = vsel %vm854, %v741, 0
      %v1550 = vsel %vm858, %v805, 0
      %1552 = vmatprep.subr.bf16.mxu0 0
      %1553 = vmatpush1.bf16.msra.mxu0 %v1550
      %1554 = vmatprep.subr.bf16.mxu0 0
      %1555 = vmatpush1.bf16.msra.mxu0 0
      %1556 = vmatprep.subr.bf16.mxu0 0
      %1557 = vmatpush1.bf16.msra.mxu0 0
      %1558 = vmatprep.subr.bf16.mxu0 0
      %1559 = vmatpush1.bf16.msra.mxu0 0
      %1560 = vmatprep.subr.bf16.mxu0 0
      %1561 = vmatpush1.bf16.msra.mxu0 0
      %1562 = vmatprep.subr.bf16.mxu0 0
      %1563 = vmatpush1.bf16.msra.mxu0 0
      %1564 = vmatprep.subr.bf16.mxu0 0
      %1565 = vmatpush1.bf16.msra.mxu0 0
      %1566 = vmatprep.subr.bf16.mxu0 0
      %1567 = vmatpush1.bf16.msra.mxu0 0
      %1568 = vmatprep.subr.bf16.mxu0 0
      %1569 = vmatpush1.bf16.msra.mxu0 0
      %1570 = vmatprep.subr.bf16.mxu0 0
      %1571 = vmatpush1.bf16.msra.mxu0 0
      %1572 = vmatprep.subr.bf16.mxu0 0
      %1573 = vmatpush1.bf16.msra.mxu0 0
      %1574 = vmatprep.subr.bf16.mxu0 0
      %1575 = vmatpush1.bf16.msra.mxu0 0
      %1576 = vmatprep.subr.bf16.mxu0 0
      %1577 = vmatpush1.bf16.msra.mxu0 0
      %1578 = vmatprep.subr.bf16.mxu0 0
      %1579 = vmatpush1.bf16.msra.mxu0 0
      %1580 = vmatprep.subr.bf16.mxu0 0
      %1581 = vmatpush1.bf16.msra.mxu0 0
      %1582 = vmatprep.subr.bf16.mxu0 0
      %1583 = vmatpush1.bf16.msra.mxu0 0
      %1584 = vmatprep.mubr.bf16.mxu0 0
      %1585 = vmatmul.mubr.bf16.gmra.mrb[0].mxu0 %v1547
      %v1586 = vpop.f32.mrb[0].mxu0
      %v1587 = vadd.f32 %v677, %v1586
      %v1588 = vpop.f32.mrb[0].mxu0
      %v1589 = vpop.f32.mrb[0].mxu0
      %v1590 = vpop.f32.mrb[0].mxu0
      %1591 = vdwg.mxu0
      %v1593 = vsel %vm854, %v742, 0
      %v1596 = vsel %vm858, %v806, 0
      %1598 = vmatprep.subr.bf16.mxu0 0
      %1599 = vmatpush1.bf16.msra.mxu0 %v1596
      %1600 = vmatprep.subr.bf16.mxu0 0
      %1601 = vmatpush1.bf16.msra.mxu0 0
      %1602 = vmatprep.subr.bf16.mxu0 0
      %1603 = vmatpush1.bf16.msra.mxu0 0
      %1604 = vmatprep.subr.bf16.mxu0 0
      %1605 = vmatpush1.bf16.msra.mxu0 0
      %1606 = vmatprep.subr.bf16.mxu0 0
      %1607 = vmatpush1.bf16.msra.mxu0 0
      %1608 = vmatprep.subr.bf16.mxu0 0
      %1609 = vmatpush1.bf16.msra.mxu0 0
      %1610 = vmatprep.subr.bf16.mxu0 0
      %1611 = vmatpush1.bf16.msra.mxu0 0
      %1612 = vmatprep.subr.bf16.mxu0 0
      %1613 = vmatpush1.bf16.msra.mxu0 0
      %1614 = vmatprep.subr.bf16.mxu0 0
      %1615 = vmatpush1.bf16.msra.mxu0 0
      %1616 = vmatprep.subr.bf16.mxu0 0
      %1617 = vmatpush1.bf16.msra.mxu0 0
      %1618 = vmatprep.subr.bf16.mxu0 0
      %1619 = vmatpush1.bf16.msra.mxu0 0
      %1620 = vmatprep.subr.bf16.mxu0 0
      %1621 = vmatpush1.bf16.msra.mxu0 0
      %1622 = vmatprep.subr.bf16.mxu0 0
      %1623 = vmatpush1.bf16.msra.mxu0 0
      %1624 = vmatprep.subr.bf16.mxu0 0
      %1625 = vmatpush1.bf16.msra.mxu0 0
      %1626 = vmatprep.subr.bf16.mxu0 0
      %1627 = vmatpush1.bf16.msra.mxu0 0
      %1628 = vmatprep.subr.bf16.mxu0 0
      %1629 = vmatpush1.bf16.msra.mxu0 0
      %1630 = vmatprep.mubr.bf16.mxu0 0
      %1631 = vmatmul.mubr.bf16.gmra.mrb[0].mxu0 %v1593
      %v1632 = vpop.f32.mrb[0].mxu0
      %v1633 = vadd.f32 %v678, %v1632
      %v1634 = vpop.f32.mrb[0].mxu0
      %v1635 = vpop.f32.mrb[0].mxu0
      %v1636 = vpop.f32.mrb[0].mxu0
      %1637 = vdwg.mxu0
      %v1639 = vsel %vm854, %v743, 0
      %v1642 = vsel %vm858, %v807, 0
      %1644 = vmatprep.subr.bf16.mxu0 0
      %1645 = vmatpush1.bf16.msra.mxu0 %v1642
      %1646 = vmatprep.subr.bf16.mxu0 0
      %1647 = vmatpush1.bf16.msra.mxu0 0
      %1648 = vmatprep.subr.bf16.mxu0 0
      %1649 = vmatpush1.bf16.msra.mxu0 0
      %1650 = vmatprep.subr.bf16.mxu0 0
      %1651 = vmatpush1.bf16.msra.mxu0 0
      %1652 = vmatprep.subr.bf16.mxu0 0
      %1653 = vmatpush1.bf16.msra.mxu0 0
      %1654 = vmatprep.subr.bf16.mxu0 0
      %1655 = vmatpush1.bf16.msra.mxu0 0
      %1656 = vmatprep.subr.bf16.mxu0 0
      %1657 = vmatpush1.bf16.msra.mxu0 0
      %1658 = vmatprep.subr.bf16.mxu0 0
      %1659 = vmatpush1.bf16.msra.mxu0 0
      %1660 = vmatprep.subr.bf16.mxu0 0
      %1661 = vmatpush1.bf16.msra.mxu0 0
      %1662 = vmatprep.subr.bf16.mxu0 0
      %1663 = vmatpush1.bf16.msra.mxu0 0
      %1664 = vmatprep.subr.bf16.mxu0 0
      %1665 = vmatpush1.bf16.msra.mxu0 0
      %1666 = vmatprep.subr.bf16.mxu0 0
      %1667 = vmatpush1.bf16.msra.mxu0 0
      %1668 = vmatprep.subr.bf16.mxu0 0
      %1669 = vmatpush1.bf16.msra.mxu0 0
      %1670 = vmatprep.subr.bf16.mxu0 0
      %1671 = vmatpush1.bf16.msra.mxu0 0
      %1672 = vmatprep.subr.bf16.mxu0 0
      %1673 = vmatpush1.bf16.msra.mxu0 0
      %1674 = vmatprep.subr.bf16.mxu0 0
      %1675 = vmatpush1.bf16.msra.mxu0 0
      %1676 = vmatprep.mubr.bf16.mxu0 0
      %1677 = vmatmul.mubr.bf16.gmra.mrb[0].mxu0 %v1639
      %v1678 = vpop.f32.mrb[0].mxu0
      %v1679 = vadd.f32 %v679, %v1678
      %v1680 = vpop.f32.mrb[0].mxu0
      %v1681 = vpop.f32.mrb[0].mxu0
      %v1682 = vpop.f32.mrb[0].mxu0
      %1683 = vdwg.mxu0
      %v1685 = vsel %vm854, %v744, 0
      %v1688 = vsel %vm858, %v808, 0
      %1690 = vmatprep.subr.bf16.mxu0 0
      %1691 = vmatpush1.bf16.msra.mxu0 %v1688
      %1692 = vmatprep.subr.bf16.mxu0 0
      %1693 = vmatpush1.bf16.msra.mxu0 0
      %1694 = vmatprep.subr.bf16.mxu0 0
      %1695 = vmatpush1.bf16.msra.mxu0 0
      %1696 = vmatprep.subr.bf16.mxu0 0
      %1697 = vmatpush1.bf16.msra.mxu0 0
      %1698 = vmatprep.subr.bf16.mxu0 0
      %1699 = vmatpush1.bf16.msra.mxu0 0
      %1700 = vmatprep.subr.bf16.mxu0 0
      %1701 = vmatpush1.bf16.msra.mxu0 0
      %1702 = vmatprep.subr.bf16.mxu0 0
      %1703 = vmatpush1.bf16.msra.mxu0 0
      %1704 = vmatprep.subr.bf16.mxu0 0
      %1705 = vmatpush1.bf16.msra.mxu0 0
      %1706 = vmatprep.subr.bf16.mxu0 0
      %1707 = vmatpush1.bf16.msra.mxu0 0
      %1708 = vmatprep.subr.bf16.mxu0 0
      %1709 = vmatpush1.bf16.msra.mxu0 0
      %1710 = vmatprep.subr.bf16.mxu0 0
      %1711 = vmatpush1.bf16.msra.mxu0 0
      %1712 = vmatprep.subr.bf16.mxu0 0
      %1713 = vmatpush1.bf16.msra.mxu0 0
      %1714 = vmatprep.subr.bf16.mxu0 0
      %1715 = vmatpush1.bf16.msra.mxu0 0
      %1716 = vmatprep.subr.bf16.mxu0 0
      %1717 = vmatpush1.bf16.msra.mxu0 0
      %1718 = vmatprep.subr.bf16.mxu0 0
      %1719 = vmatpush1.bf16.msra.mxu0 0
      %1720 = vmatprep.subr.bf16.mxu0 0
      %1721 = vmatpush1.bf16.msra.mxu0 0
      %1722 = vmatprep.mubr.bf16.mxu0 0
      %1723 = vmatmul.mubr.bf16.gmra.mrb[0].mxu0 %v1685
      %v1724 = vpop.f32.mrb[0].mxu0
      %v1725 = vadd.f32 %v680, %v1724
      %v1726 = vpop.f32.mrb[0].mxu0
      %v1727 = vpop.f32.mrb[0].mxu0
      %v1728 = vpop.f32.mrb[0].mxu0
      %1729 = vdwg.mxu0
      %v1731 = vsel %vm854, %v745, 0
      %v1734 = vsel %vm858, %v809, 0
      %1736 = vmatprep.subr.bf16.mxu0 0
      %1737 = vmatpush1.bf16.msra.mxu0 %v1734
      %1738 = vmatprep.subr.bf16.mxu0 0
      %1739 = vmatpush1.bf16.msra.mxu0 0
      %1740 = vmatprep.subr.bf16.mxu0 0
      %1741 = vmatpush1.bf16.msra.mxu0 0
      %1742 = vmatprep.subr.bf16.mxu0 0
      %1743 = vmatpush1.bf16.msra.mxu0 0
      %1744 = vmatprep.subr.bf16.mxu0 0
      %1745 = vmatpush1.bf16.msra.mxu0 0
      %1746 = vmatprep.subr.bf16.mxu0 0
      %1747 = vmatpush1.bf16.msra.mxu0 0
      %1748 = vmatprep.subr.bf16.mxu0 0
      %1749 = vmatpush1.bf16.msra.mxu0 0
      %1750 = vmatprep.subr.bf16.mxu0 0
      %1751 = vmatpush1.bf16.msra.mxu0 0
      %1752 = vmatprep.subr.bf16.mxu0 0
      %1753 = vmatpush1.bf16.msra.mxu0 0
      %1754 = vmatprep.subr.bf16.mxu0 0
      %1755 = vmatpush1.bf16.msra.mxu0 0
      %1756 = vmatprep.subr.bf16.mxu0 0
      %1757 = vmatpush1.bf16.msra.mxu0 0
      %1758 = vmatprep.subr.bf16.mxu0 0
      %1759 = vmatpush1.bf16.msra.mxu0 0
      %1760 = vmatprep.subr.bf16.mxu0 0
      %1761 = vmatpush1.bf16.msra.mxu0 0
      %1762 = vmatprep.subr.bf16.mxu0 0
      %1763 = vmatpush1.bf16.msra.mxu0 0
      %1764 = vmatprep.subr.bf16.mxu0 0
      %1765 = vmatpush1.bf16.msra.mxu0 0
      %1766 = vmatprep.subr.bf16.mxu0 0
      %1767 = vmatpush1.bf16.msra.mxu0 0
      %1768 = vmatprep.mubr.bf16.mxu0 0
      %1769 = vmatmul.mubr.bf16.gmra.mrb[0].mxu0 %v1731
      %v1770 = vpop.f32.mrb[0].mxu0
      %v1771 = vadd.f32 %v681, %v1770
      %v1772 = vpop.f32.mrb[0].mxu0
      %v1773 = vpop.f32.mrb[0].mxu0
      %v1774 = vpop.f32.mrb[0].mxu0
      %1775 = vdwg.mxu0
      %v1777 = vsel %vm854, %v746, 0
      %v1780 = vsel %vm858, %v810, 0
      %1782 = vmatprep.subr.bf16.mxu0 0
      %1783 = vmatpush1.bf16.msra.mxu0 %v1780
      %1784 = vmatprep.subr.bf16.mxu0 0
      %1785 = vmatpush1.bf16.msra.mxu0 0
      %1786 = vmatprep.subr.bf16.mxu0 0
      %1787 = vmatpush1.bf16.msra.mxu0 0
      %1788 = vmatprep.subr.bf16.mxu0 0
      %1789 = vmatpush1.bf16.msra.mxu0 0
      %1790 = vmatprep.subr.bf16.mxu0 0
      %1791 = vmatpush1.bf16.msra.mxu0 0
      %1792 = vmatprep.subr.bf16.mxu0 0
      %1793 = vmatpush1.bf16.msra.mxu0 0
      %1794 = vmatprep.subr.bf16.mxu0 0
      %1795 = vmatpush1.bf16.msra.mxu0 0
      %1796 = vmatprep.subr.bf16.mxu0 0
      %1797 = vmatpush1.bf16.msra.mxu0 0
      %1798 = vmatprep.subr.bf16.mxu0 0
      %1799 = vmatpush1.bf16.msra.mxu0 0
      %1800 = vmatprep.subr.bf16.mxu0 0
      %1801 = vmatpush1.bf16.msra.mxu0 0
      %1802 = vmatprep.subr.bf16.mxu0 0
      %1803 = vmatpush1.bf16.msra.mxu0 0
      %1804 = vmatprep.subr.bf16.mxu0 0
      %1805 = vmatpush1.bf16.msra.mxu0 0
      %1806 = vmatprep.subr.bf16.mxu0 0
      %1807 = vmatpush1.bf16.msra.mxu0 0
      %1808 = vmatprep.subr.bf16.mxu0 0
      %1809 = vmatpush1.bf16.msra.mxu0 0
      %1810 = vmatprep.subr.bf16.mxu0 0
      %1811 = vmatpush1.bf16.msra.mxu0 0
      %1812 = vmatprep.subr.bf16.mxu0 0
      %1813 = vmatpush1.bf16.msra.mxu0 0
      %1814 = vmatprep.mubr.bf16.mxu0 0
      %1815 = vmatmul.mubr.bf16.gmra.mrb[0].mxu0 %v1777
      %v1816 = vpop.f32.mrb[0].mxu0
      %v1817 = vadd.f32 %v682, %v1816
      %v1818 = vpop.f32.mrb[0].mxu0
      %v1819 = vpop.f32.mrb[0].mxu0
      %v1820 = vpop.f32.mrb[0].mxu0
      %1821 = vdwg.mxu0
      %v1823 = vsel %vm854, %v747, 0
      %v1826 = vsel %vm858, %v811, 0
      %1828 = vmatprep.subr.bf16.mxu0 0
      %1829 = vmatpush1.bf16.msra.mxu0 %v1826
      %1830 = vmatprep.subr.bf16.mxu0 0
      %1831 = vmatpush1.bf16.msra.mxu0 0
      %1832 = vmatprep.subr.bf16.mxu0 0
      %1833 = vmatpush1.bf16.msra.mxu0 0
      %1834 = vmatprep.subr.bf16.mxu0 0
      %1835 = vmatpush1.bf16.msra.mxu0 0
      %1836 = vmatprep.subr.bf16.mxu0 0
      %1837 = vmatpush1.bf16.msra.mxu0 0
      %1838 = vmatprep.subr.bf16.mxu0 0
      %1839 = vmatpush1.bf16.msra.mxu0 0
      %1840 = vmatprep.subr.bf16.mxu0 0
      %1841 = vmatpush1.bf16.msra.mxu0 0
      %1842 = vmatprep.subr.bf16.mxu0 0
      %1843 = vmatpush1.bf16.msra.mxu0 0
      %1844 = vmatprep.subr.bf16.mxu0 0
      %1845 = vmatpush1.bf16.msra.mxu0 0
      %1846 = vmatprep.subr.bf16.mxu0 0
      %1847 = vmatpush1.bf16.msra.mxu0 0
      %1848 = vmatprep.subr.bf16.mxu0 0
      %1849 = vmatpush1.bf16.msra.mxu0 0
      %1850 = vmatprep.subr.bf16.mxu0 0
      %1851 = vmatpush1.bf16.msra.mxu0 0
      %1852 = vmatprep.subr.bf16.mxu0 0
      %1853 = vmatpush1.bf16.msra.mxu0 0
      %1854 = vmatprep.subr.bf16.mxu0 0
      %1855 = vmatpush1.bf16.msra.mxu0 0
      %1856 = vmatprep.subr.bf16.mxu0 0
      %1857 = vmatpush1.bf16.msra.mxu0 0
      %1858 = vmatprep.subr.bf16.mxu0 0
      %1859 = vmatpush1.bf16.msra.mxu0 0
      %1860 = vmatprep.mubr.bf16.mxu0 0
      %1861 = vmatmul.mubr.bf16.gmra.mrb[0].mxu0 %v1823
      %v1862 = vpop.f32.mrb[0].mxu0
      %v1863 = vadd.f32 %v683, %v1862
      %v1864 = vpop.f32.mrb[0].mxu0
      %v1865 = vpop.f32.mrb[0].mxu0
      %v1866 = vpop.f32.mrb[0].mxu0
      %1867 = vdwg.mxu0
      %v1869 = vsel %vm854, %v748, 0
      %v1872 = vsel %vm858, %v812, 0
      %1874 = vmatprep.subr.bf16.mxu0 0
      %1875 = vmatpush1.bf16.msra.mxu0 %v1872
      %1876 = vmatprep.subr.bf16.mxu0 0
      %1877 = vmatpush1.bf16.msra.mxu0 0
      %1878 = vmatprep.subr.bf16.mxu0 0
      %1879 = vmatpush1.bf16.msra.mxu0 0
      %1880 = vmatprep.subr.bf16.mxu0 0
      %1881 = vmatpush1.bf16.msra.mxu0 0
      %1882 = vmatprep.subr.bf16.mxu0 0
      %1883 = vmatpush1.bf16.msra.mxu0 0
      %1884 = vmatprep.subr.bf16.mxu0 0
      %1885 = vmatpush1.bf16.msra.mxu0 0
      %1886 = vmatprep.subr.bf16.mxu0 0
      %1887 = vmatpush1.bf16.msra.mxu0 0
      %1888 = vmatprep.subr.bf16.mxu0 0
      %1889 = vmatpush1.bf16.msra.mxu0 0
      %1890 = vmatprep.subr.bf16.mxu0 0
      %1891 = vmatpush1.bf16.msra.mxu0 0
      %1892 = vmatprep.subr.bf16.mxu0 0
      %1893 = vmatpush1.bf16.msra.mxu0 0
      %1894 = vmatprep.subr.bf16.mxu0 0
      %1895 = vmatpush1.bf16.msra.mxu0 0
      %1896 = vmatprep.subr.bf16.mxu0 0
      %1897 = vmatpush1.bf16.msra.mxu0 0
      %1898 = vmatprep.subr.bf16.mxu0 0
      %1899 = vmatpush1.bf16.msra.mxu0 0
      %1900 = vmatprep.subr.bf16.mxu0 0
      %1901 = vmatpush1.bf16.msra.mxu0 0
      %1902 = vmatprep.subr.bf16.mxu0 0
      %1903 = vmatpush1.bf16.msra.mxu0 0
      %1904 = vmatprep.subr.bf16.mxu0 0
      %1905 = vmatpush1.bf16.msra.mxu0 0
      %1906 = vmatprep.mubr.bf16.mxu0 0
      %1907 = vmatmul.mubr.bf16.gmra.mrb[0].mxu0 %v1869
      %v1908 = vpop.f32.mrb[0].mxu0
      %v1909 = vadd.f32 %v684, %v1908
      %v1910 = vpop.f32.mrb[0].mxu0
      %v1911 = vpop.f32.mrb[0].mxu0
      %v1912 = vpop.f32.mrb[0].mxu0
      %1913 = vdwg.mxu0
      %v1915 = vsel %vm854, %v749, 0
      %v1918 = vsel %vm858, %v813, 0
      %1920 = vmatprep.subr.bf16.mxu0 0
      %1921 = vmatpush1.bf16.msra.mxu0 %v1918
      %1922 = vmatprep.subr.bf16.mxu0 0
      %1923 = vmatpush1.bf16.msra.mxu0 0
      %1924 = vmatprep.subr.bf16.mxu0 0
      %1925 = vmatpush1.bf16.msra.mxu0 0
      %1926 = vmatprep.subr.bf16.mxu0 0
      %1927 = vmatpush1.bf16.msra.mxu0 0
      %1928 = vmatprep.subr.bf16.mxu0 0
      %1929 = vmatpush1.bf16.msra.mxu0 0
      %1930 = vmatprep.subr.bf16.mxu0 0
      %1931 = vmatpush1.bf16.msra.mxu0 0
      %1932 = vmatprep.subr.bf16.mxu0 0
      %1933 = vmatpush1.bf16.msra.mxu0 0
      %1934 = vmatprep.subr.bf16.mxu0 0
      %1935 = vmatpush1.bf16.msra.mxu0 0
      %1936 = vmatprep.subr.bf16.mxu0 0
      %1937 = vmatpush1.bf16.msra.mxu0 0
      %1938 = vmatprep.subr.bf16.mxu0 0
      %1939 = vmatpush1.bf16.msra.mxu0 0
      %1940 = vmatprep.subr.bf16.mxu0 0
      %1941 = vmatpush1.bf16.msra.mxu0 0
      %1942 = vmatprep.subr.bf16.mxu0 0
      %1943 = vmatpush1.bf16.msra.mxu0 0
      %1944 = vmatprep.subr.bf16.mxu0 0
      %1945 = vmatpush1.bf16.msra.mxu0 0
      %1946 = vmatprep.subr.bf16.mxu0 0
      %1947 = vmatpush1.bf16.msra.mxu0 0
      %1948 = vmatprep.subr.bf16.mxu0 0
      %1949 = vmatpush1.bf16.msra.mxu0 0
      %1950 = vmatprep.subr.bf16.mxu0 0
      %1951 = vmatpush1.bf16.msra.mxu0 0
      %1952 = vmatprep.mubr.bf16.mxu0 0
      %1953 = vmatmul.mubr.bf16.gmra.mrb[0].mxu0 %v1915
      %v1954 = vpop.f32.mrb[0].mxu0
      %v1955 = vadd.f32 %v685, %v1954
      %v1956 = vpop.f32.mrb[0].mxu0
      %v1957 = vpop.f32.mrb[0].mxu0
      %v1958 = vpop.f32.mrb[0].mxu0
      %1959 = vdwg.mxu0
      %v1961 = vsel %vm854, %v750, 0
      %v1964 = vsel %vm858, %v814, 0
      %1966 = vmatprep.subr.bf16.mxu0 0
      %1967 = vmatpush1.bf16.msra.mxu0 %v1964
      %1968 = vmatprep.subr.bf16.mxu0 0
      %1969 = vmatpush1.bf16.msra.mxu0 0
      %1970 = vmatprep.subr.bf16.mxu0 0
      %1971 = vmatpush1.bf16.msra.mxu0 0
      %1972 = vmatprep.subr.bf16.mxu0 0
      %1973 = vmatpush1.bf16.msra.mxu0 0
      %1974 = vmatprep.subr.bf16.mxu0 0
      %1975 = vmatpush1.bf16.msra.mxu0 0
      %1976 = vmatprep.subr.bf16.mxu0 0
      %1977 = vmatpush1.bf16.msra.mxu0 0
      %1978 = vmatprep.subr.bf16.mxu0 0
      %1979 = vmatpush1.bf16.msra.mxu0 0
      %1980 = vmatprep.subr.bf16.mxu0 0
      %1981 = vmatpush1.bf16.msra.mxu0 0
      %1982 = vmatprep.subr.bf16.mxu0 0
      %1983 = vmatpush1.bf16.msra.mxu0 0
      %1984 = vmatprep.subr.bf16.mxu0 0
      %1985 = vmatpush1.bf16.msra.mxu0 0
      %1986 = vmatprep.subr.bf16.mxu0 0
      %1987 = vmatpush1.bf16.msra.mxu0 0
      %1988 = vmatprep.subr.bf16.mxu0 0
      %1989 = vmatpush1.bf16.msra.mxu0 0
      %1990 = vmatprep.subr.bf16.mxu0 0
      %1991 = vmatpush1.bf16.msra.mxu0 0
      %1992 = vmatprep.subr.bf16.mxu0 0
      %1993 = vmatpush1.bf16.msra.mxu0 0
      %1994 = vmatprep.subr.bf16.mxu0 0
      %1995 = vmatpush1.bf16.msra.mxu0 0
      %1996 = vmatprep.subr.bf16.mxu0 0
      %1997 = vmatpush1.bf16.msra.mxu0 0
      %1998 = vmatprep.mubr.bf16.mxu0 0
      %1999 = vmatmul.mubr.bf16.gmra.mrb[0].mxu0 %v1961
      %v2000 = vpop.f32.mrb[0].mxu0
      %v2001 = vadd.f32 %v686, %v2000
      %v2002 = vpop.f32.mrb[0].mxu0
      %v2003 = vpop.f32.mrb[0].mxu0
      %v2004 = vpop.f32.mrb[0].mxu0
      %2005 = vdwg.mxu0
      %v2007 = vsel %vm854, %v751, 0
      %v2010 = vsel %vm858, %v815, 0
      %2012 = vmatprep.subr.bf16.mxu0 0
      %2013 = vmatpush1.bf16.msra.mxu0 %v2010
      %2014 = vmatprep.subr.bf16.mxu0 0
      %2015 = vmatpush1.bf16.msra.mxu0 0
      %2016 = vmatprep.subr.bf16.mxu0 0
      %2017 = vmatpush1.bf16.msra.mxu0 0
      %2018 = vmatprep.subr.bf16.mxu0 0
      %2019 = vmatpush1.bf16.msra.mxu0 0
      %2020 = vmatprep.subr.bf16.mxu0 0
      %2021 = vmatpush1.bf16.msra.mxu0 0
      %2022 = vmatprep.subr.bf16.mxu0 0
      %2023 = vmatpush1.bf16.msra.mxu0 0
      %2024 = vmatprep.subr.bf16.mxu0 0
      %2025 = vmatpush1.bf16.msra.mxu0 0
      %2026 = vmatprep.subr.bf16.mxu0 0
      %2027 = vmatpush1.bf16.msra.mxu0 0
      %2028 = vmatprep.subr.bf16.mxu0 0
      %2029 = vmatpush1.bf16.msra.mxu0 0
      %2030 = vmatprep.subr.bf16.mxu0 0
      %2031 = vmatpush1.bf16.msra.mxu0 0
      %2032 = vmatprep.subr.bf16.mxu0 0
      %2033 = vmatpush1.bf16.msra.mxu0 0
      %2034 = vmatprep.subr.bf16.mxu0 0
      %2035 = vmatpush1.bf16.msra.mxu0 0
      %2036 = vmatprep.subr.bf16.mxu0 0
      %2037 = vmatpush1.bf16.msra.mxu0 0
      %2038 = vmatprep.subr.bf16.mxu0 0
      %2039 = vmatpush1.bf16.msra.mxu0 0
      %2040 = vmatprep.subr.bf16.mxu0 0
      %2041 = vmatpush1.bf16.msra.mxu0 0
      %2042 = vmatprep.subr.bf16.mxu0 0
      %2043 = vmatpush1.bf16.msra.mxu0 0
      %2044 = vmatprep.mubr.bf16.mxu0 0
      %2045 = vmatmul.mubr.bf16.gmra.mrb[0].mxu0 %v2007
      %v2046 = vpop.f32.mrb[0].mxu0
      %v2047 = vadd.f32 %v687, %v2046
      %v2048 = vpop.f32.mrb[0].mxu0
      %v2049 = vpop.f32.mrb[0].mxu0
      %v2050 = vpop.f32.mrb[0].mxu0
      %2051 = vdwg.mxu0
      %v2053 = vsel %vm854, %v752, 0
      %v2056 = vsel %vm858, %v816, 0
      %2058 = vmatprep.subr.bf16.mxu0 0
      %2059 = vmatpush1.bf16.msra.mxu0 %v2056
      %2060 = vmatprep.subr.bf16.mxu0 0
      %2061 = vmatpush1.bf16.msra.mxu0 0
      %2062 = vmatprep.subr.bf16.mxu0 0
      %2063 = vmatpush1.bf16.msra.mxu0 0
      %2064 = vmatprep.subr.bf16.mxu0 0
      %2065 = vmatpush1.bf16.msra.mxu0 0
      %2066 = vmatprep.subr.bf16.mxu0 0
      %2067 = vmatpush1.bf16.msra.mxu0 0
      %2068 = vmatprep.subr.bf16.mxu0 0
      %2069 = vmatpush1.bf16.msra.mxu0 0
      %2070 = vmatprep.subr.bf16.mxu0 0
      %2071 = vmatpush1.bf16.msra.mxu0 0
      %2072 = vmatprep.subr.bf16.mxu0 0
      %2073 = vmatpush1.bf16.msra.mxu0 0
      %2074 = vmatprep.subr.bf16.mxu0 0
      %2075 = vmatpush1.bf16.msra.mxu0 0
      %2076 = vmatprep.subr.bf16.mxu0 0
      %2077 = vmatpush1.bf16.msra.mxu0 0
      %2078 = vmatprep.subr.bf16.mxu0 0
      %2079 = vmatpush1.bf16.msra.mxu0 0
      %2080 = vmatprep.subr.bf16.mxu0 0
      %2081 = vmatpush1.bf16.msra.mxu0 0
      %2082 = vmatprep.subr.bf16.mxu0 0
      %2083 = vmatpush1.bf16.msra.mxu0 0
      %2084 = vmatprep.subr.bf16.mxu0 0
      %2085 = vmatpush1.bf16.msra.mxu0 0
      %2086 = vmatprep.subr.bf16.mxu0 0
      %2087 = vmatpush1.bf16.msra.mxu0 0
      %2088 = vmatprep.subr.bf16.mxu0 0
      %2089 = vmatpush1.bf16.msra.mxu0 0
      %2090 = vmatprep.mubr.bf16.mxu0 0
      %2091 = vmatmul.mubr.bf16.gmra.mrb[0].mxu0 %v2053
      %v2092 = vpop.f32.mrb[0].mxu0
      %v2093 = vadd.f32 %v688, %v2092
      %v2094 = vpop.f32.mrb[0].mxu0
      %v2095 = vpop.f32.mrb[0].mxu0
      %v2096 = vpop.f32.mrb[0].mxu0
      %2097 = vdwg.mxu0
      %v2099 = vsel %vm854, %v753, 0
      %v2102 = vsel %vm858, %v817, 0
      %2104 = vmatprep.subr.bf16.mxu0 0
      %2105 = vmatpush1.bf16.msra.mxu0 %v2102
      %2106 = vmatprep.subr.bf16.mxu0 0
      %2107 = vmatpush1.bf16.msra.mxu0 0
      %2108 = vmatprep.subr.bf16.mxu0 0
      %2109 = vmatpush1.bf16.msra.mxu0 0
      %2110 = vmatprep.subr.bf16.mxu0 0
      %2111 = vmatpush1.bf16.msra.mxu0 0
      %2112 = vmatprep.subr.bf16.mxu0 0
      %2113 = vmatpush1.bf16.msra.mxu0 0
      %2114 = vmatprep.subr.bf16.mxu0 0
      %2115 = vmatpush1.bf16.msra.mxu0 0
      %2116 = vmatprep.subr.bf16.mxu0 0
      %2117 = vmatpush1.bf16.msra.mxu0 0
      %2118 = vmatprep.subr.bf16.mxu0 0
      %2119 = vmatpush1.bf16.msra.mxu0 0
      %2120 = vmatprep.subr.bf16.mxu0 0
      %2121 = vmatpush1.bf16.msra.mxu0 0
      %2122 = vmatprep.subr.bf16.mxu0 0
      %2123 = vmatpush1.bf16.msra.mxu0 0
      %2124 = vmatprep.subr.bf16.mxu0 0
      %2125 = vmatpush1.bf16.msra.mxu0 0
      %2126 = vmatprep.subr.bf16.mxu0 0
      %2127 = vmatpush1.bf16.msra.mxu0 0
      %2128 = vmatprep.subr.bf16.mxu0 0
      %2129 = vmatpush1.bf16.msra.mxu0 0
      %2130 = vmatprep.subr.bf16.mxu0 0
      %2131 = vmatpush1.bf16.msra.mxu0 0
      %2132 = vmatprep.subr.bf16.mxu0 0
      %2133 = vmatpush1.bf16.msra.mxu0 0
      %2134 = vmatprep.subr.bf16.mxu0 0
      %2135 = vmatpush1.bf16.msra.mxu0 0
      %2136 = vmatprep.mubr.bf16.mxu0 0
      %2137 = vmatmul.mubr.bf16.gmra.mrb[0].mxu0 %v2099
      %v2138 = vpop.f32.mrb[0].mxu0
      %v2139 = vadd.f32 %v689, %v2138
      %v2140 = vpop.f32.mrb[0].mxu0
      %v2141 = vpop.f32.mrb[0].mxu0
      %v2142 = vpop.f32.mrb[0].mxu0
      %2143 = vdwg.mxu0
      %v2145 = vsel %vm854, %v754, 0
      %v2148 = vsel %vm858, %v818, 0
      %2150 = vmatprep.subr.bf16.mxu0 0
      %2151 = vmatpush1.bf16.msra.mxu0 %v2148
      %2152 = vmatprep.subr.bf16.mxu0 0
      %2153 = vmatpush1.bf16.msra.mxu0 0
      %2154 = vmatprep.subr.bf16.mxu0 0
      %2155 = vmatpush1.bf16.msra.mxu0 0
      %2156 = vmatprep.subr.bf16.mxu0 0
      %2157 = vmatpush1.bf16.msra.mxu0 0
      %2158 = vmatprep.subr.bf16.mxu0 0
      %2159 = vmatpush1.bf16.msra.mxu0 0
      %2160 = vmatprep.subr.bf16.mxu0 0
      %2161 = vmatpush1.bf16.msra.mxu0 0
      %2162 = vmatprep.subr.bf16.mxu0 0
      %2163 = vmatpush1.bf16.msra.mxu0 0
      %2164 = vmatprep.subr.bf16.mxu0 0
      %2165 = vmatpush1.bf16.msra.mxu0 0
      %2166 = vmatprep.subr.bf16.mxu0 0
      %2167 = vmatpush1.bf16.msra.mxu0 0
      %2168 = vmatprep.subr.bf16.mxu0 0
      %2169 = vmatpush1.bf16.msra.mxu0 0
      %2170 = vmatprep.subr.bf16.mxu0 0
      %2171 = vmatpush1.bf16.msra.mxu0 0
      %2172 = vmatprep.subr.bf16.mxu0 0
      %2173 = vmatpush1.bf16.msra.mxu0 0
      %2174 = vmatprep.subr.bf16.mxu0 0
      %2175 = vmatpush1.bf16.msra.mxu0 0
      %2176 = vmatprep.subr.bf16.mxu0 0
      %2177 = vmatpush1.bf16.msra.mxu0 0
      %2178 = vmatprep.subr.bf16.mxu0 0
      %2179 = vmatpush1.bf16.msra.mxu0 0
      %2180 = vmatprep.subr.bf16.mxu0 0
      %2181 = vmatpush1.bf16.msra.mxu0 0
      %2182 = vmatprep.mubr.bf16.mxu0 0
      %2183 = vmatmul.mubr.bf16.gmra.mrb[0].mxu0 %v2145
      %v2184 = vpop.f32.mrb[0].mxu0
      %v2185 = vadd.f32 %v690, %v2184
      %v2186 = vpop.f32.mrb[0].mxu0
      %v2187 = vpop.f32.mrb[0].mxu0
      %v2188 = vpop.f32.mrb[0].mxu0
      %2189 = vdwg.mxu0
      %v2191 = vsel %vm854, %v755, 0
      %v2194 = vsel %vm858, %v819, 0
      %2196 = vmatprep.subr.bf16.mxu0 0
      %2197 = vmatpush1.bf16.msra.mxu0 %v2194
      %2198 = vmatprep.subr.bf16.mxu0 0
      %2199 = vmatpush1.bf16.msra.mxu0 0
      %2200 = vmatprep.subr.bf16.mxu0 0
      %2201 = vmatpush1.bf16.msra.mxu0 0
      %2202 = vmatprep.subr.bf16.mxu0 0
      %2203 = vmatpush1.bf16.msra.mxu0 0
      %2204 = vmatprep.subr.bf16.mxu0 0
      %2205 = vmatpush1.bf16.msra.mxu0 0
      %2206 = vmatprep.subr.bf16.mxu0 0
      %2207 = vmatpush1.bf16.msra.mxu0 0
      %2208 = vmatprep.subr.bf16.mxu0 0
      %2209 = vmatpush1.bf16.msra.mxu0 0
      %2210 = vmatprep.subr.bf16.mxu0 0
      %2211 = vmatpush1.bf16.msra.mxu0 0
      %2212 = vmatprep.subr.bf16.mxu0 0
      %2213 = vmatpush1.bf16.msra.mxu0 0
      %2214 = vmatprep.subr.bf16.mxu0 0
      %2215 = vmatpush1.bf16.msra.mxu0 0
      %2216 = vmatprep.subr.bf16.mxu0 0
      %2217 = vmatpush1.bf16.msra.mxu0 0
      %2218 = vmatprep.subr.bf16.mxu0 0
      %2219 = vmatpush1.bf16.msra.mxu0 0
      %2220 = vmatprep.subr.bf16.mxu0 0
      %2221 = vmatpush1.bf16.msra.mxu0 0
      %2222 = vmatprep.subr.bf16.mxu0 0
      %2223 = vmatpush1.bf16.msra.mxu0 0
      %2224 = vmatprep.subr.bf16.mxu0 0
      %2225 = vmatpush1.bf16.msra.mxu0 0
      %2226 = vmatprep.subr.bf16.mxu0 0
      %2227 = vmatpush1.bf16.msra.mxu0 0
      %2228 = vmatprep.mubr.bf16.mxu0 0
      %2229 = vmatmul.mubr.bf16.gmra.mrb[0].mxu0 %v2191
      %v2230 = vpop.f32.mrb[0].mxu0
      %v2231 = vadd.f32 %v691, %v2230
      %v2232 = vpop.f32.mrb[0].mxu0
      %v2233 = vpop.f32.mrb[0].mxu0
      %v2234 = vpop.f32.mrb[0].mxu0
      %2235 = vdwg.mxu0
      %v2237 = vsel %vm854, %v756, 0
      %v2240 = vsel %vm858, %v820, 0
      %2242 = vmatprep.subr.bf16.mxu0 0
      %2243 = vmatpush1.bf16.msra.mxu0 %v2240
      %2244 = vmatprep.subr.bf16.mxu0 0
      %2245 = vmatpush1.bf16.msra.mxu0 0
      %2246 = vmatprep.subr.bf16.mxu0 0
      %2247 = vmatpush1.bf16.msra.mxu0 0
      %2248 = vmatprep.subr.bf16.mxu0 0
      %2249 = vmatpush1.bf16.msra.mxu0 0
      %2250 = vmatprep.subr.bf16.mxu0 0
      %2251 = vmatpush1.bf16.msra.mxu0 0
      %2252 = vmatprep.subr.bf16.mxu0 0
      %2253 = vmatpush1.bf16.msra.mxu0 0
      %2254 = vmatprep.subr.bf16.mxu0 0
      %2255 = vmatpush1.bf16.msra.mxu0 0
      %2256 = vmatprep.subr.bf16.mxu0 0
      %2257 = vmatpush1.bf16.msra.mxu0 0
      %2258 = vmatprep.subr.bf16.mxu0 0
      %2259 = vmatpush1.bf16.msra.mxu0 0
      %2260 = vmatprep.subr.bf16.mxu0 0
      %2261 = vmatpush1.bf16.msra.mxu0 0
      %2262 = vmatprep.subr.bf16.mxu0 0
      %2263 = vmatpush1.bf16.msra.mxu0 0
      %2264 = vmatprep.subr.bf16.mxu0 0
      %2265 = vmatpush1.bf16.msra.mxu0 0
      %2266 = vmatprep.subr.bf16.mxu0 0
      %2267 = vmatpush1.bf16.msra.mxu0 0
      %2268 = vmatprep.subr.bf16.mxu0 0
      %2269 = vmatpush1.bf16.msra.mxu0 0
      %2270 = vmatprep.subr.bf16.mxu0 0
      %2271 = vmatpush1.bf16.msra.mxu0 0
      %2272 = vmatprep.subr.bf16.mxu0 0
      %2273 = vmatpush1.bf16.msra.mxu0 0
      %2274 = vmatprep.mubr.bf16.mxu0 0
      %2275 = vmatmul.mubr.bf16.gmra.mrb[0].mxu0 %v2237
      %v2276 = vpop.f32.mrb[0].mxu0
      %v2277 = vadd.f32 %v692, %v2276
      %v2278 = vpop.f32.mrb[0].mxu0
      %v2279 = vpop.f32.mrb[0].mxu0
      %v2280 = vpop.f32.mrb[0].mxu0
      %2281 = vdwg.mxu0
      %v2283 = vsel %vm854, %v757, 0
      %v2286 = vsel %vm858, %v821, 0
      %2288 = vmatprep.subr.bf16.mxu0 0
      %2289 = vmatpush1.bf16.msra.mxu0 %v2286
      %2290 = vmatprep.subr.bf16.mxu0 0
      %2291 = vmatpush1.bf16.msra.mxu0 0
      %2292 = vmatprep.subr.bf16.mxu0 0
      %2293 = vmatpush1.bf16.msra.mxu0 0
      %2294 = vmatprep.subr.bf16.mxu0 0
      %2295 = vmatpush1.bf16.msra.mxu0 0
      %2296 = vmatprep.subr.bf16.mxu0 0
      %2297 = vmatpush1.bf16.msra.mxu0 0
      %2298 = vmatprep.subr.bf16.mxu0 0
      %2299 = vmatpush1.bf16.msra.mxu0 0
      %2300 = vmatprep.subr.bf16.mxu0 0
      %2301 = vmatpush1.bf16.msra.mxu0 0
      %2302 = vmatprep.subr.bf16.mxu0 0
      %2303 = vmatpush1.bf16.msra.mxu0 0
      %2304 = vmatprep.subr.bf16.mxu0 0
      %2305 = vmatpush1.bf16.msra.mxu0 0
      %2306 = vmatprep.subr.bf16.mxu0 0
      %2307 = vmatpush1.bf16.msra.mxu0 0
      %2308 = vmatprep.subr.bf16.mxu0 0
      %2309 = vmatpush1.bf16.msra.mxu0 0
      %2310 = vmatprep.subr.bf16.mxu0 0
      %2311 = vmatpush1.bf16.msra.mxu0 0
      %2312 = vmatprep.subr.bf16.mxu0 0
      %2313 = vmatpush1.bf16.msra.mxu0 0
      %2314 = vmatprep.subr.bf16.mxu0 0
      %2315 = vmatpush1.bf16.msra.mxu0 0
      %2316 = vmatprep.subr.bf16.mxu0 0
      %2317 = vmatpush1.bf16.msra.mxu0 0
      %2318 = vmatprep.subr.bf16.mxu0 0
      %2319 = vmatpush1.bf16.msra.mxu0 0
      %2320 = vmatprep.mubr.bf16.mxu0 0
      %2321 = vmatmul.mubr.bf16.gmra.mrb[0].mxu0 %v2283
      %v2322 = vpop.f32.mrb[0].mxu0
      %v2323 = vadd.f32 %v693, %v2322
      %v2324 = vpop.f32.mrb[0].mxu0
      %v2325 = vpop.f32.mrb[0].mxu0
      %v2326 = vpop.f32.mrb[0].mxu0
      %2327 = vdwg.mxu0
      %v2329 = vsel %vm854, %v758, 0
      %v2332 = vsel %vm858, %v822, 0
      %2334 = vmatprep.subr.bf16.mxu0 0
      %2335 = vmatpush1.bf16.msra.mxu0 %v2332
      %2336 = vmatprep.subr.bf16.mxu0 0
      %2337 = vmatpush1.bf16.msra.mxu0 0
      %2338 = vmatprep.subr.bf16.mxu0 0
      %2339 = vmatpush1.bf16.msra.mxu0 0
      %2340 = vmatprep.subr.bf16.mxu0 0
      %2341 = vmatpush1.bf16.msra.mxu0 0
      %2342 = vmatprep.subr.bf16.mxu0 0
      %2343 = vmatpush1.bf16.msra.mxu0 0
      %2344 = vmatprep.subr.bf16.mxu0 0
      %2345 = vmatpush1.bf16.msra.mxu0 0
      %2346 = vmatprep.subr.bf16.mxu0 0
      %2347 = vmatpush1.bf16.msra.mxu0 0
      %2348 = vmatprep.subr.bf16.mxu0 0
      %2349 = vmatpush1.bf16.msra.mxu0 0
      %2350 = vmatprep.subr.bf16.mxu0 0
      %2351 = vmatpush1.bf16.msra.mxu0 0
      %2352 = vmatprep.subr.bf16.mxu0 0
      %2353 = vmatpush1.bf16.msra.mxu0 0
      %2354 = vmatprep.subr.bf16.mxu0 0
      %2355 = vmatpush1.bf16.msra.mxu0 0
      %2356 = vmatprep.subr.bf16.mxu0 0
      %2357 = vmatpush1.bf16.msra.mxu0 0
      %2358 = vmatprep.subr.bf16.mxu0 0
      %2359 = vmatpush1.bf16.msra.mxu0 0
      %2360 = vmatprep.subr.bf16.mxu0 0
      %2361 = vmatpush1.bf16.msra.mxu0 0
      %2362 = vmatprep.subr.bf16.mxu0 0
      %2363 = vmatpush1.bf16.msra.mxu0 0
      %2364 = vmatprep.subr.bf16.mxu0 0
      %2365 = vmatpush1.bf16.msra.mxu0 0
      %2366 = vmatprep.mubr.bf16.mxu0 0
      %2367 = vmatmul.mubr.bf16.gmra.mrb[0].mxu0 %v2329
      %v2368 = vpop.f32.mrb[0].mxu0
      %v2369 = vadd.f32 %v694, %v2368
      %v2370 = vpop.f32.mrb[0].mxu0
      %v2371 = vpop.f32.mrb[0].mxu0
      %v2372 = vpop.f32.mrb[0].mxu0
      %2373 = vdwg.mxu0
      %v2375 = vsel %vm854, %v759, 0
      %v2378 = vsel %vm858, %v823, 0
      %2380 = vmatprep.subr.bf16.mxu0 0
      %2381 = vmatpush1.bf16.msra.mxu0 %v2378
      %2382 = vmatprep.subr.bf16.mxu0 0
      %2383 = vmatpush1.bf16.msra.mxu0 0
      %2384 = vmatprep.subr.bf16.mxu0 0
      %2385 = vmatpush1.bf16.msra.mxu0 0
      %2386 = vmatprep.subr.bf16.mxu0 0
      %2387 = vmatpush1.bf16.msra.mxu0 0
      %2388 = vmatprep.subr.bf16.mxu0 0
      %2389 = vmatpush1.bf16.msra.mxu0 0
      %2390 = vmatprep.subr.bf16.mxu0 0
      %2391 = vmatpush1.bf16.msra.mxu0 0
      %2392 = vmatprep.subr.bf16.mxu0 0
      %2393 = vmatpush1.bf16.msra.mxu0 0
      %2394 = vmatprep.subr.bf16.mxu0 0
      %2395 = vmatpush1.bf16.msra.mxu0 0
      %2396 = vmatprep.subr.bf16.mxu0 0
      %2397 = vmatpush1.bf16.msra.mxu0 0
      %2398 = vmatprep.subr.bf16.mxu0 0
      %2399 = vmatpush1.bf16.msra.mxu0 0
      %2400 = vmatprep.subr.bf16.mxu0 0
      %2401 = vmatpush1.bf16.msra.mxu0 0
      %2402 = vmatprep.subr.bf16.mxu0 0
      %2403 = vmatpush1.bf16.msra.mxu0 0
      %2404 = vmatprep.subr.bf16.mxu0 0
      %2405 = vmatpush1.bf16.msra.mxu0 0
      %2406 = vmatprep.subr.bf16.mxu0 0
      %2407 = vmatpush1.bf16.msra.mxu0 0
      %2408 = vmatprep.subr.bf16.mxu0 0
      %2409 = vmatpush1.bf16.msra.mxu0 0
      %2410 = vmatprep.subr.bf16.mxu0 0
      %2411 = vmatpush1.bf16.msra.mxu0 0
      %2412 = vmatprep.mubr.bf16.mxu0 0
      %2413 = vmatmul.mubr.bf16.gmra.mrb[0].mxu0 %v2375
      %v2414 = vpop.f32.mrb[0].mxu0
      %v2415 = vadd.f32 %v695, %v2414
      %v2416 = vpop.f32.mrb[0].mxu0
      %v2417 = vpop.f32.mrb[0].mxu0
      %v2418 = vpop.f32.mrb[0].mxu0
      %2419 = vdwg.mxu0
      %v2421 = vsel %vm854, %v760, 0
      %v2424 = vsel %vm858, %v824, 0
      %2426 = vmatprep.subr.bf16.mxu0 0
      %2427 = vmatpush1.bf16.msra.mxu0 %v2424
      %2428 = vmatprep.subr.bf16.mxu0 0
      %2429 = vmatpush1.bf16.msra.mxu0 0
      %2430 = vmatprep.subr.bf16.mxu0 0
      %2431 = vmatpush1.bf16.msra.mxu0 0
      %2432 = vmatprep.subr.bf16.mxu0 0
      %2433 = vmatpush1.bf16.msra.mxu0 0
      %2434 = vmatprep.subr.bf16.mxu0 0
      %2435 = vmatpush1.bf16.msra.mxu0 0
      %2436 = vmatprep.subr.bf16.mxu0 0
      %2437 = vmatpush1.bf16.msra.mxu0 0
      %2438 = vmatprep.subr.bf16.mxu0 0
      %2439 = vmatpush1.bf16.msra.mxu0 0
      %2440 = vmatprep.subr.bf16.mxu0 0
      %2441 = vmatpush1.bf16.msra.mxu0 0
      %2442 = vmatprep.subr.bf16.mxu0 0
      %2443 = vmatpush1.bf16.msra.mxu0 0
      %2444 = vmatprep.subr.bf16.mxu0 0
      %2445 = vmatpush1.bf16.msra.mxu0 0
      %2446 = vmatprep.subr.bf16.mxu0 0
      %2447 = vmatpush1.bf16.msra.mxu0 0
      %2448 = vmatprep.subr.bf16.mxu0 0
      %2449 = vmatpush1.bf16.msra.mxu0 0
      %2450 = vmatprep.subr.bf16.mxu0 0
      %2451 = vmatpush1.bf16.msra.mxu0 0
      %2452 = vmatprep.subr.bf16.mxu0 0
      %2453 = vmatpush1.bf16.msra.mxu0 0
      %2454 = vmatprep.subr.bf16.mxu0 0
      %2455 = vmatpush1.bf16.msra.mxu0 0
      %2456 = vmatprep.subr.bf16.mxu0 0
      %2457 = vmatpush1.bf16.msra.mxu0 0
      %2458 = vmatprep.mubr.bf16.mxu0 0
      %2459 = vmatmul.mubr.bf16.gmra.mrb[0].mxu0 %v2421
      %v2460 = vpop.f32.mrb[0].mxu0
      %v2461 = vadd.f32 %v696, %v2460
      %v2462 = vpop.f32.mrb[0].mxu0
      %v2463 = vpop.f32.mrb[0].mxu0
      %v2464 = vpop.f32.mrb[0].mxu0
      %2465 = vdwg.mxu0
      %v2467 = vsel %vm854, %v761, 0
      %v2470 = vsel %vm858, %v825, 0
      %2472 = vmatprep.subr.bf16.mxu0 0
      %2473 = vmatpush1.bf16.msra.mxu0 %v2470
      %2474 = vmatprep.subr.bf16.mxu0 0
      %2475 = vmatpush1.bf16.msra.mxu0 0
      %2476 = vmatprep.subr.bf16.mxu0 0
      %2477 = vmatpush1.bf16.msra.mxu0 0
      %2478 = vmatprep.subr.bf16.mxu0 0
      %2479 = vmatpush1.bf16.msra.mxu0 0
      %2480 = vmatprep.subr.bf16.mxu0 0
      %2481 = vmatpush1.bf16.msra.mxu0 0
      %2482 = vmatprep.subr.bf16.mxu0 0
      %2483 = vmatpush1.bf16.msra.mxu0 0
      %2484 = vmatprep.subr.bf16.mxu0 0
      %2485 = vmatpush1.bf16.msra.mxu0 0
      %2486 = vmatprep.subr.bf16.mxu0 0
      %2487 = vmatpush1.bf16.msra.mxu0 0
      %2488 = vmatprep.subr.bf16.mxu0 0
      %2489 = vmatpush1.bf16.msra.mxu0 0
      %2490 = vmatprep.subr.bf16.mxu0 0
      %2491 = vmatpush1.bf16.msra.mxu0 0
      %2492 = vmatprep.subr.bf16.mxu0 0
      %2493 = vmatpush1.bf16.msra.mxu0 0
      %2494 = vmatprep.subr.bf16.mxu0 0
      %2495 = vmatpush1.bf16.msra.mxu0 0
      %2496 = vmatprep.subr.bf16.mxu0 0
      %2497 = vmatpush1.bf16.msra.mxu0 0
      %2498 = vmatprep.subr.bf16.mxu0 0
      %2499 = vmatpush1.bf16.msra.mxu0 0
      %2500 = vmatprep.subr.bf16.mxu0 0
      %2501 = vmatpush1.bf16.msra.mxu0 0
      %2502 = vmatprep.subr.bf16.mxu0 0
      %2503 = vmatpush1.bf16.msra.mxu0 0
      %2504 = vmatprep.mubr.bf16.mxu0 0
      %2505 = vmatmul.mubr.bf16.gmra.mrb[0].mxu0 %v2467
      %v2506 = vpop.f32.mrb[0].mxu0
      %v2507 = vadd.f32 %v697, %v2506
      %v2508 = vpop.f32.mrb[0].mxu0
      %v2509 = vpop.f32.mrb[0].mxu0
      %v2510 = vpop.f32.mrb[0].mxu0
      %2511 = vdwg.mxu0
      %v2513 = vsel %vm854, %v762, 0
      %v2516 = vsel %vm858, %v826, 0
      %2518 = vmatprep.subr.bf16.mxu0 0
      %2519 = vmatpush1.bf16.msra.mxu0 %v2516
      %2520 = vmatprep.subr.bf16.mxu0 0
      %2521 = vmatpush1.bf16.msra.mxu0 0
      %2522 = vmatprep.subr.bf16.mxu0 0
      %2523 = vmatpush1.bf16.msra.mxu0 0
      %2524 = vmatprep.subr.bf16.mxu0 0
      %2525 = vmatpush1.bf16.msra.mxu0 0
      %2526 = vmatprep.subr.bf16.mxu0 0
      %2527 = vmatpush1.bf16.msra.mxu0 0
      %2528 = vmatprep.subr.bf16.mxu0 0
      %2529 = vmatpush1.bf16.msra.mxu0 0
      %2530 = vmatprep.subr.bf16.mxu0 0
      %2531 = vmatpush1.bf16.msra.mxu0 0
      %2532 = vmatprep.subr.bf16.mxu0 0
      %2533 = vmatpush1.bf16.msra.mxu0 0
      %2534 = vmatprep.subr.bf16.mxu0 0
      %2535 = vmatpush1.bf16.msra.mxu0 0
      %2536 = vmatprep.subr.bf16.mxu0 0
      %2537 = vmatpush1.bf16.msra.mxu0 0
      %2538 = vmatprep.subr.bf16.mxu0 0
      %2539 = vmatpush1.bf16.msra.mxu0 0
      %2540 = vmatprep.subr.bf16.mxu0 0
      %2541 = vmatpush1.bf16.msra.mxu0 0
      %2542 = vmatprep.subr.bf16.mxu0 0
      %2543 = vmatpush1.bf16.msra.mxu0 0
      %2544 = vmatprep.subr.bf16.mxu0 0
      %2545 = vmatpush1.bf16.msra.mxu0 0
      %2546 = vmatprep.subr.bf16.mxu0 0
      %2547 = vmatpush1.bf16.msra.mxu0 0
      %2548 = vmatprep.subr.bf16.mxu0 0
      %2549 = vmatpush1.bf16.msra.mxu0 0
      %2550 = vmatprep.mubr.bf16.mxu0 0
      %2551 = vmatmul.mubr.bf16.gmra.mrb[0].mxu0 %v2513
      %v2552 = vpop.f32.mrb[0].mxu0
      %v2553 = vadd.f32 %v698, %v2552
      %v2554 = vpop.f32.mrb[0].mxu0
      %v2555 = vpop.f32.mrb[0].mxu0
      %v2556 = vpop.f32.mrb[0].mxu0
      %2557 = vdwg.mxu0
      %v2559 = vsel %vm854, %v763, 0
      %v2562 = vsel %vm858, %v827, 0
      %2564 = vmatprep.subr.bf16.mxu0 0
      %2565 = vmatpush1.bf16.msra.mxu0 %v2562
      %2566 = vmatprep.subr.bf16.mxu0 0
      %2567 = vmatpush1.bf16.msra.mxu0 0
      %2568 = vmatprep.subr.bf16.mxu0 0
      %2569 = vmatpush1.bf16.msra.mxu0 0
      %2570 = vmatprep.subr.bf16.mxu0 0
      %2571 = vmatpush1.bf16.msra.mxu0 0
      %2572 = vmatprep.subr.bf16.mxu0 0
      %2573 = vmatpush1.bf16.msra.mxu0 0
      %2574 = vmatprep.subr.bf16.mxu0 0
      %2575 = vmatpush1.bf16.msra.mxu0 0
      %2576 = vmatprep.subr.bf16.mxu0 0
      %2577 = vmatpush1.bf16.msra.mxu0 0
      %2578 = vmatprep.subr.bf16.mxu0 0
      %2579 = vmatpush1.bf16.msra.mxu0 0
      %2580 = vmatprep.subr.bf16.mxu0 0
      %2581 = vmatpush1.bf16.msra.mxu0 0
      %2582 = vmatprep.subr.bf16.mxu0 0
      %2583 = vmatpush1.bf16.msra.mxu0 0
      %2584 = vmatprep.subr.bf16.mxu0 0
      %2585 = vmatpush1.bf16.msra.mxu0 0
      %2586 = vmatprep.subr.bf16.mxu0 0
      %2587 = vmatpush1.bf16.msra.mxu0 0
      %2588 = vmatprep.subr.bf16.mxu0 0
      %2589 = vmatpush1.bf16.msra.mxu0 0
      %2590 = vmatprep.subr.bf16.mxu0 0
      %2591 = vmatpush1.bf16.msra.mxu0 0
      %2592 = vmatprep.subr.bf16.mxu0 0
      %2593 = vmatpush1.bf16.msra.mxu0 0
      %2594 = vmatprep.subr.bf16.mxu0 0
      %2595 = vmatpush1.bf16.msra.mxu0 0
      %2596 = vmatprep.mubr.bf16.mxu0 0
      %2597 = vmatmul.mubr.bf16.gmra.mrb[0].mxu0 %v2559
      %v2598 = vpop.f32.mrb[0].mxu0
      %v2599 = vadd.f32 %v699, %v2598
      %v2600 = vpop.f32.mrb[0].mxu0
      %v2601 = vpop.f32.mrb[0].mxu0
      %v2602 = vpop.f32.mrb[0].mxu0
      %2603 = vdwg.mxu0
      %v2605 = vsel %vm854, %v764, 0
      %v2608 = vsel %vm858, %v828, 0
      %2610 = vmatprep.subr.bf16.mxu0 0
      %2611 = vmatpush1.bf16.msra.mxu0 %v2608
      %2612 = vmatprep.subr.bf16.mxu0 0
      %2613 = vmatpush1.bf16.msra.mxu0 0
      %2614 = vmatprep.subr.bf16.mxu0 0
      %2615 = vmatpush1.bf16.msra.mxu0 0
      %2616 = vmatprep.subr.bf16.mxu0 0
      %2617 = vmatpush1.bf16.msra.mxu0 0
      %2618 = vmatprep.subr.bf16.mxu0 0
      %2619 = vmatpush1.bf16.msra.mxu0 0
      %2620 = vmatprep.subr.bf16.mxu0 0
      %2621 = vmatpush1.bf16.msra.mxu0 0
      %2622 = vmatprep.subr.bf16.mxu0 0
      %2623 = vmatpush1.bf16.msra.mxu0 0
      %2624 = vmatprep.subr.bf16.mxu0 0
      %2625 = vmatpush1.bf16.msra.mxu0 0
      %2626 = vmatprep.subr.bf16.mxu0 0
      %2627 = vmatpush1.bf16.msra.mxu0 0
      %2628 = vmatprep.subr.bf16.mxu0 0
      %2629 = vmatpush1.bf16.msra.mxu0 0
      %2630 = vmatprep.subr.bf16.mxu0 0
      %2631 = vmatpush1.bf16.msra.mxu0 0
      %2632 = vmatprep.subr.bf16.mxu0 0
      %2633 = vmatpush1.bf16.msra.mxu0 0
      %2634 = vmatprep.subr.bf16.mxu0 0
      %2635 = vmatpush1.bf16.msra.mxu0 0
      %2636 = vmatprep.subr.bf16.mxu0 0
      %2637 = vmatpush1.bf16.msra.mxu0 0
      %2638 = vmatprep.subr.bf16.mxu0 0
      %2639 = vmatpush1.bf16.msra.mxu0 0
      %2640 = vmatprep.subr.bf16.mxu0 0
      %2641 = vmatpush1.bf16.msra.mxu0 0
      %2642 = vmatprep.mubr.bf16.mxu0 0
      %2643 = vmatmul.mubr.bf16.gmra.mrb[0].mxu0 %v2605
      %v2644 = vpop.f32.mrb[0].mxu0
      %v2645 = vadd.f32 %v700, %v2644
      %v2646 = vpop.f32.mrb[0].mxu0
      %v2647 = vpop.f32.mrb[0].mxu0
      %v2648 = vpop.f32.mrb[0].mxu0
      %2649 = vdwg.mxu0
      %v2651 = vsel %vm854, %v765, 0
      %v2654 = vsel %vm858, %v829, 0
      %2656 = vmatprep.subr.bf16.mxu0 0
      %2657 = vmatpush1.bf16.msra.mxu0 %v2654
      %2658 = vmatprep.subr.bf16.mxu0 0
      %2659 = vmatpush1.bf16.msra.mxu0 0
      %2660 = vmatprep.subr.bf16.mxu0 0
      %2661 = vmatpush1.bf16.msra.mxu0 0
      %2662 = vmatprep.subr.bf16.mxu0 0
      %2663 = vmatpush1.bf16.msra.mxu0 0
      %2664 = vmatprep.subr.bf16.mxu0 0
      %2665 = vmatpush1.bf16.msra.mxu0 0
      %2666 = vmatprep.subr.bf16.mxu0 0
      %2667 = vmatpush1.bf16.msra.mxu0 0
      %2668 = vmatprep.subr.bf16.mxu0 0
      %2669 = vmatpush1.bf16.msra.mxu0 0
      %2670 = vmatprep.subr.bf16.mxu0 0
      %2671 = vmatpush1.bf16.msra.mxu0 0
      %2672 = vmatprep.subr.bf16.mxu0 0
      %2673 = vmatpush1.bf16.msra.mxu0 0
      %2674 = vmatprep.subr.bf16.mxu0 0
      %2675 = vmatpush1.bf16.msra.mxu0 0
      %2676 = vmatprep.subr.bf16.mxu0 0
      %2677 = vmatpush1.bf16.msra.mxu0 0
      %2678 = vmatprep.subr.bf16.mxu0 0
      %2679 = vmatpush1.bf16.msra.mxu0 0
      %2680 = vmatprep.subr.bf16.mxu0 0
      %2681 = vmatpush1.bf16.msra.mxu0 0
      %2682 = vmatprep.subr.bf16.mxu0 0
      %2683 = vmatpush1.bf16.msra.mxu0 0
      %2684 = vmatprep.subr.bf16.mxu0 0
      %2685 = vmatpush1.bf16.msra.mxu0 0
      %2686 = vmatprep.subr.bf16.mxu0 0
      %2687 = vmatpush1.bf16.msra.mxu0 0
      %2688 = vmatprep.mubr.bf16.mxu0 0
      %2689 = vmatmul.mubr.bf16.gmra.mrb[0].mxu0 %v2651
      %v2690 = vpop.f32.mrb[0].mxu0
      %v2691 = vadd.f32 %v701, %v2690
      %v2692 = vpop.f32.mrb[0].mxu0
      %v2693 = vpop.f32.mrb[0].mxu0
      %v2694 = vpop.f32.mrb[0].mxu0
      %2695 = vdwg.mxu0
      %v2697 = vsel %vm854, %v766, 0
      %v2700 = vsel %vm858, %v830, 0
      %2702 = vmatprep.subr.bf16.mxu0 0
      %2703 = vmatpush1.bf16.msra.mxu0 %v2700
      %2704 = vmatprep.subr.bf16.mxu0 0
      %2705 = vmatpush1.bf16.msra.mxu0 0
      %2706 = vmatprep.subr.bf16.mxu0 0
      %2707 = vmatpush1.bf16.msra.mxu0 0
      %2708 = vmatprep.subr.bf16.mxu0 0
      %2709 = vmatpush1.bf16.msra.mxu0 0
      %2710 = vmatprep.subr.bf16.mxu0 0
      %2711 = vmatpush1.bf16.msra.mxu0 0
      %2712 = vmatprep.subr.bf16.mxu0 0
      %2713 = vmatpush1.bf16.msra.mxu0 0
      %2714 = vmatprep.subr.bf16.mxu0 0
      %2715 = vmatpush1.bf16.msra.mxu0 0
      %2716 = vmatprep.subr.bf16.mxu0 0
      %2717 = vmatpush1.bf16.msra.mxu0 0
      %2718 = vmatprep.subr.bf16.mxu0 0
      %2719 = vmatpush1.bf16.msra.mxu0 0
      %2720 = vmatprep.subr.bf16.mxu0 0
      %2721 = vmatpush1.bf16.msra.mxu0 0
      %2722 = vmatprep.subr.bf16.mxu0 0
      %2723 = vmatpush1.bf16.msra.mxu0 0
      %2724 = vmatprep.subr.bf16.mxu0 0
      %2725 = vmatpush1.bf16.msra.mxu0 0
      %2726 = vmatprep.subr.bf16.mxu0 0
      %2727 = vmatpush1.bf16.msra.mxu0 0
      %2728 = vmatprep.subr.bf16.mxu0 0
      %2729 = vmatpush1.bf16.msra.mxu0 0
      %2730 = vmatprep.subr.bf16.mxu0 0
      %2731 = vmatpush1.bf16.msra.mxu0 0
      %2732 = vmatprep.subr.bf16.mxu0 0
      %2733 = vmatpush1.bf16.msra.mxu0 0
      %2734 = vmatprep.mubr.bf16.mxu0 0
      %2735 = vmatmul.mubr.bf16.gmra.mrb[0].mxu0 %v2697
      %v2736 = vpop.f32.mrb[0].mxu0
      %v2737 = vadd.f32 %v702, %v2736
      %v2738 = vpop.f32.mrb[0].mxu0
      %v2739 = vpop.f32.mrb[0].mxu0
      %v2740 = vpop.f32.mrb[0].mxu0
      %2741 = vdwg.mxu0
      %v2743 = vsel %vm854, %v767, 0
      %v2746 = vsel %vm858, %v831, 0
      %2748 = vmatprep.subr.bf16.mxu0 0
      %2749 = vmatpush1.bf16.msra.mxu0 %v2746
      %2750 = vmatprep.subr.bf16.mxu0 0
      %2751 = vmatpush1.bf16.msra.mxu0 0
      %2752 = vmatprep.subr.bf16.mxu0 0
      %2753 = vmatpush1.bf16.msra.mxu0 0
      %2754 = vmatprep.subr.bf16.mxu0 0
      %2755 = vmatpush1.bf16.msra.mxu0 0
      %2756 = vmatprep.subr.bf16.mxu0 0
      %2757 = vmatpush1.bf16.msra.mxu0 0
      %2758 = vmatprep.subr.bf16.mxu0 0
      %2759 = vmatpush1.bf16.msra.mxu0 0
      %2760 = vmatprep.subr.bf16.mxu0 0
      %2761 = vmatpush1.bf16.msra.mxu0 0
      %2762 = vmatprep.subr.bf16.mxu0 0
      %2763 = vmatpush1.bf16.msra.mxu0 0
      %2764 = vmatprep.subr.bf16.mxu0 0
      %2765 = vmatpush1.bf16.msra.mxu0 0
      %2766 = vmatprep.subr.bf16.mxu0 0
      %2767 = vmatpush1.bf16.msra.mxu0 0
      %2768 = vmatprep.subr.bf16.mxu0 0
      %2769 = vmatpush1.bf16.msra.mxu0 0
      %2770 = vmatprep.subr.bf16.mxu0 0
      %2771 = vmatpush1.bf16.msra.mxu0 0
      %2772 = vmatprep.subr.bf16.mxu0 0
      %2773 = vmatpush1.bf16.msra.mxu0 0
      %2774 = vmatprep.subr.bf16.mxu0 0
      %2775 = vmatpush1.bf16.msra.mxu0 0
      %2776 = vmatprep.subr.bf16.mxu0 0
      %2777 = vmatpush1.bf16.msra.mxu0 0
      %2778 = vmatprep.subr.bf16.mxu0 0
      %2779 = vmatpush1.bf16.msra.mxu0 0
      %2780 = vmatprep.mubr.bf16.mxu0 0
      %2781 = vmatmul.mubr.bf16.gmra.mrb[0].mxu0 %v2743
      %v2782 = vpop.f32.mrb[0].mxu0
      %v2783 = vadd.f32 %v703, %v2782
      %v2784 = vpop.f32.mrb[0].mxu0
      %v2785 = vpop.f32.mrb[0].mxu0
      %v2786 = vpop.f32.mrb[0].mxu0
      %2787 = vdwg.mxu0
      %v2789 = vsel %vm854, %v768, 0
      %v2792 = vsel %vm858, %v832, 0
      %2794 = vmatprep.subr.bf16.mxu0 0
      %2795 = vmatpush1.bf16.msra.mxu0 %v2792
      %2796 = vmatprep.subr.bf16.mxu0 0
      %2797 = vmatpush1.bf16.msra.mxu0 0
      %2798 = vmatprep.subr.bf16.mxu0 0
      %2799 = vmatpush1.bf16.msra.mxu0 0
      %2800 = vmatprep.subr.bf16.mxu0 0
      %2801 = vmatpush1.bf16.msra.mxu0 0
      %2802 = vmatprep.subr.bf16.mxu0 0
      %2803 = vmatpush1.bf16.msra.mxu0 0
      %2804 = vmatprep.subr.bf16.mxu0 0
      %2805 = vmatpush1.bf16.msra.mxu0 0
      %2806 = vmatprep.subr.bf16.mxu0 0
      %2807 = vmatpush1.bf16.msra.mxu0 0
      %2808 = vmatprep.subr.bf16.mxu0 0
      %2809 = vmatpush1.bf16.msra.mxu0 0
      %2810 = vmatprep.subr.bf16.mxu0 0
      %2811 = vmatpush1.bf16.msra.mxu0 0
      %2812 = vmatprep.subr.bf16.mxu0 0
      %2813 = vmatpush1.bf16.msra.mxu0 0
      %2814 = vmatprep.subr.bf16.mxu0 0
      %2815 = vmatpush1.bf16.msra.mxu0 0
      %2816 = vmatprep.subr.bf16.mxu0 0
      %2817 = vmatpush1.bf16.msra.mxu0 0
      %2818 = vmatprep.subr.bf16.mxu0 0
      %2819 = vmatpush1.bf16.msra.mxu0 0
      %2820 = vmatprep.subr.bf16.mxu0 0
      %2821 = vmatpush1.bf16.msra.mxu0 0
      %2822 = vmatprep.subr.bf16.mxu0 0
      %2823 = vmatpush1.bf16.msra.mxu0 0
      %2824 = vmatprep.subr.bf16.mxu0 0
      %2825 = vmatpush1.bf16.msra.mxu0 0
      %2826 = vmatprep.mubr.bf16.mxu0 0
      %2827 = vmatmul.mubr.bf16.gmra.mrb[0].mxu0 %v2789
      %v2828 = vpop.f32.mrb[0].mxu0
      %v2829 = vadd.f32 %v704, %v2828
      %v2830 = vpop.f32.mrb[0].mxu0
      %v2831 = vpop.f32.mrb[0].mxu0
      %v2832 = vpop.f32.mrb[0].mxu0
      %2833 = vdwg.mxu0
      %v2835 = vsel %vm854, %v769, 0
      %v2838 = vsel %vm858, %v833, 0
      %2840 = vmatprep.subr.bf16.mxu0 0
      %2841 = vmatpush1.bf16.msra.mxu0 %v2838
      %2842 = vmatprep.subr.bf16.mxu0 0
      %2843 = vmatpush1.bf16.msra.mxu0 0
      %2844 = vmatprep.subr.bf16.mxu0 0
      %2845 = vmatpush1.bf16.msra.mxu0 0
      %2846 = vmatprep.subr.bf16.mxu0 0
      %2847 = vmatpush1.bf16.msra.mxu0 0
      %2848 = vmatprep.subr.bf16.mxu0 0
      %2849 = vmatpush1.bf16.msra.mxu0 0
      %2850 = vmatprep.subr.bf16.mxu0 0
      %2851 = vmatpush1.bf16.msra.mxu0 0
      %2852 = vmatprep.subr.bf16.mxu0 0
      %2853 = vmatpush1.bf16.msra.mxu0 0
      %2854 = vmatprep.subr.bf16.mxu0 0
      %2855 = vmatpush1.bf16.msra.mxu0 0
      %2856 = vmatprep.subr.bf16.mxu0 0
      %2857 = vmatpush1.bf16.msra.mxu0 0
      %2858 = vmatprep.subr.bf16.mxu0 0
      %2859 = vmatpush1.bf16.msra.mxu0 0
      %2860 = vmatprep.subr.bf16.mxu0 0
      %2861 = vmatpush1.bf16.msra.mxu0 0
      %2862 = vmatprep.subr.bf16.mxu0 0
      %2863 = vmatpush1.bf16.msra.mxu0 0
      %2864 = vmatprep.subr.bf16.mxu0 0
      %2865 = vmatpush1.bf16.msra.mxu0 0
      %2866 = vmatprep.subr.bf16.mxu0 0
      %2867 = vmatpush1.bf16.msra.mxu0 0
      %2868 = vmatprep.subr.bf16.mxu0 0
      %2869 = vmatpush1.bf16.msra.mxu0 0
      %2870 = vmatprep.subr.bf16.mxu0 0
      %2871 = vmatpush1.bf16.msra.mxu0 0
      %2872 = vmatprep.mubr.bf16.mxu0 0
      %2873 = vmatmul.mubr.bf16.gmra.mrb[0].mxu0 %v2835
      %v2874 = vpop.f32.mrb[0].mxu0
      %v2875 = vadd.f32 %v705, %v2874
      %v2876 = vpop.f32.mrb[0].mxu0
      %v2877 = vpop.f32.mrb[0].mxu0
      %v2878 = vpop.f32.mrb[0].mxu0
      %2879 = vdwg.mxu0
      %v2881 = vsel %vm854, %v770, 0
      %v2884 = vsel %vm858, %v834, 0
      %2886 = vmatprep.subr.bf16.mxu0 0
      %2887 = vmatpush1.bf16.msra.mxu0 %v2884
      %2888 = vmatprep.subr.bf16.mxu0 0
      %2889 = vmatpush1.bf16.msra.mxu0 0
      %2890 = vmatprep.subr.bf16.mxu0 0
      %2891 = vmatpush1.bf16.msra.mxu0 0
      %2892 = vmatprep.subr.bf16.mxu0 0
      %2893 = vmatpush1.bf16.msra.mxu0 0
      %2894 = vmatprep.subr.bf16.mxu0 0
      %2895 = vmatpush1.bf16.msra.mxu0 0
      %2896 = vmatprep.subr.bf16.mxu0 0
      %2897 = vmatpush1.bf16.msra.mxu0 0
      %2898 = vmatprep.subr.bf16.mxu0 0
      %2899 = vmatpush1.bf16.msra.mxu0 0
      %2900 = vmatprep.subr.bf16.mxu0 0
      %2901 = vmatpush1.bf16.msra.mxu0 0
      %2902 = vmatprep.subr.bf16.mxu0 0
      %2903 = vmatpush1.bf16.msra.mxu0 0
      %2904 = vmatprep.subr.bf16.mxu0 0
      %2905 = vmatpush1.bf16.msra.mxu0 0
      %2906 = vmatprep.subr.bf16.mxu0 0
      %2907 = vmatpush1.bf16.msra.mxu0 0
      %2908 = vmatprep.subr.bf16.mxu0 0
      %2909 = vmatpush1.bf16.msra.mxu0 0
      %2910 = vmatprep.subr.bf16.mxu0 0
      %2911 = vmatpush1.bf16.msra.mxu0 0
      %2912 = vmatprep.subr.bf16.mxu0 0
      %2913 = vmatpush1.bf16.msra.mxu0 0
      %2914 = vmatprep.subr.bf16.mxu0 0
      %2915 = vmatpush1.bf16.msra.mxu0 0
      %2916 = vmatprep.subr.bf16.mxu0 0
      %2917 = vmatpush1.bf16.msra.mxu0 0
      %2918 = vmatprep.mubr.bf16.mxu0 0
      %2919 = vmatmul.mubr.bf16.gmra.mrb[0].mxu0 %v2881
      %v2920 = vpop.f32.mrb[0].mxu0
      %v2921 = vadd.f32 %v706, %v2920
      %v2922 = vpop.f32.mrb[0].mxu0
      %v2923 = vpop.f32.mrb[0].mxu0
      %v2924 = vpop.f32.mrb[0].mxu0
      %2925 = vdwg.mxu0
      %v2927 = vsel %vm854, %v771, 0
      %v2930 = vsel %vm858, %v835, 0
      %2932 = vmatprep.subr.bf16.mxu0 0
      %2933 = vmatpush1.bf16.msra.mxu0 %v2930
      %2934 = vmatprep.subr.bf16.mxu0 0
      %2935 = vmatpush1.bf16.msra.mxu0 0
      %2936 = vmatprep.subr.bf16.mxu0 0
      %2937 = vmatpush1.bf16.msra.mxu0 0
      %2938 = vmatprep.subr.bf16.mxu0 0
      %2939 = vmatpush1.bf16.msra.mxu0 0
      %2940 = vmatprep.subr.bf16.mxu0 0
      %2941 = vmatpush1.bf16.msra.mxu0 0
      %2942 = vmatprep.subr.bf16.mxu0 0
      %2943 = vmatpush1.bf16.msra.mxu0 0
      %2944 = vmatprep.subr.bf16.mxu0 0
      %2945 = vmatpush1.bf16.msra.mxu0 0
      %2946 = vmatprep.subr.bf16.mxu0 0
      %2947 = vmatpush1.bf16.msra.mxu0 0
      %2948 = vmatprep.subr.bf16.mxu0 0
      %2949 = vmatpush1.bf16.msra.mxu0 0
      %2950 = vmatprep.subr.bf16.mxu0 0
      %2951 = vmatpush1.bf16.msra.mxu0 0
      %2952 = vmatprep.subr.bf16.mxu0 0
      %2953 = vmatpush1.bf16.msra.mxu0 0
      %2954 = vmatprep.subr.bf16.mxu0 0
      %2955 = vmatpush1.bf16.msra.mxu0 0
      %2956 = vmatprep.subr.bf16.mxu0 0
      %2957 = vmatpush1.bf16.msra.mxu0 0
      %2958 = vmatprep.subr.bf16.mxu0 0
      %2959 = vmatpush1.bf16.msra.mxu0 0
      %2960 = vmatprep.subr.bf16.mxu0 0
      %2961 = vmatpush1.bf16.msra.mxu0 0
      %2962 = vmatprep.subr.bf16.mxu0 0
      %2963 = vmatpush1.bf16.msra.mxu0 0
      %2964 = vmatprep.mubr.bf16.mxu0 0
      %2965 = vmatmul.mubr.bf16.gmra.mrb[0].mxu0 %v2927
      %v2966 = vpop.f32.mrb[0].mxu0
      %v2967 = vadd.f32 %v707, %v2966
      %v2968 = vpop.f32.mrb[0].mxu0
      %v2969 = vpop.f32.mrb[0].mxu0
      %v2970 = vpop.f32.mrb[0].mxu0
      %2971 = vdwg.mxu0
      %v2973 = vsel %vm854, %v772, 0
      %v2976 = vsel %vm858, %v836, 0
      %2978 = vmatprep.subr.bf16.mxu0 0
      %2979 = vmatpush1.bf16.msra.mxu0 %v2976
      %2980 = vmatprep.subr.bf16.mxu0 0
      %2981 = vmatpush1.bf16.msra.mxu0 0
      %2982 = vmatprep.subr.bf16.mxu0 0
      %2983 = vmatpush1.bf16.msra.mxu0 0
      %2984 = vmatprep.subr.bf16.mxu0 0
      %2985 = vmatpush1.bf16.msra.mxu0 0
      %2986 = vmatprep.subr.bf16.mxu0 0
      %2987 = vmatpush1.bf16.msra.mxu0 0
      %2988 = vmatprep.subr.bf16.mxu0 0
      %2989 = vmatpush1.bf16.msra.mxu0 0
      %2990 = vmatprep.subr.bf16.mxu0 0
      %2991 = vmatpush1.bf16.msra.mxu0 0
      %2992 = vmatprep.subr.bf16.mxu0 0
      %2993 = vmatpush1.bf16.msra.mxu0 0
      %2994 = vmatprep.subr.bf16.mxu0 0
      %2995 = vmatpush1.bf16.msra.mxu0 0
      %2996 = vmatprep.subr.bf16.mxu0 0
      %2997 = vmatpush1.bf16.msra.mxu0 0
      %2998 = vmatprep.subr.bf16.mxu0 0
      %2999 = vmatpush1.bf16.msra.mxu0 0
      %3000 = vmatprep.subr.bf16.mxu0 0
      %3001 = vmatpush1.bf16.msra.mxu0 0
      %3002 = vmatprep.subr.bf16.mxu0 0
      %3003 = vmatpush1.bf16.msra.mxu0 0
      %3004 = vmatprep.subr.bf16.mxu0 0
      %3005 = vmatpush1.bf16.msra.mxu0 0
      %3006 = vmatprep.subr.bf16.mxu0 0
      %3007 = vmatpush1.bf16.msra.mxu0 0
      %3008 = vmatprep.subr.bf16.mxu0 0
      %3009 = vmatpush1.bf16.msra.mxu0 0
      %3010 = vmatprep.mubr.bf16.mxu0 0
      %3011 = vmatmul.mubr.bf16.gmra.mrb[0].mxu0 %v2973
      %v3012 = vpop.f32.mrb[0].mxu0
      %v3013 = vadd.f32 %v708, %v3012
      %v3014 = vpop.f32.mrb[0].mxu0
      %v3015 = vpop.f32.mrb[0].mxu0
      %v3016 = vpop.f32.mrb[0].mxu0
      %3017 = vdwg.mxu0
      %v3019 = vsel %vm854, %v773, 0
      %v3022 = vsel %vm858, %v837, 0
      %3024 = vmatprep.subr.bf16.mxu0 0
      %3025 = vmatpush1.bf16.msra.mxu0 %v3022
      %3026 = vmatprep.subr.bf16.mxu0 0
      %3027 = vmatpush1.bf16.msra.mxu0 0
      %3028 = vmatprep.subr.bf16.mxu0 0
      %3029 = vmatpush1.bf16.msra.mxu0 0
      %3030 = vmatprep.subr.bf16.mxu0 0
      %3031 = vmatpush1.bf16.msra.mxu0 0
      %3032 = vmatprep.subr.bf16.mxu0 0
      %3033 = vmatpush1.bf16.msra.mxu0 0
      %3034 = vmatprep.subr.bf16.mxu0 0
      %3035 = vmatpush1.bf16.msra.mxu0 0
      %3036 = vmatprep.subr.bf16.mxu0 0
      %3037 = vmatpush1.bf16.msra.mxu0 0
      %3038 = vmatprep.subr.bf16.mxu0 0
      %3039 = vmatpush1.bf16.msra.mxu0 0
      %3040 = vmatprep.subr.bf16.mxu0 0
      %3041 = vmatpush1.bf16.msra.mxu0 0
      %3042 = vmatprep.subr.bf16.mxu0 0
      %3043 = vmatpush1.bf16.msra.mxu0 0
      %3044 = vmatprep.subr.bf16.mxu0 0
      %3045 = vmatpush1.bf16.msra.mxu0 0
      %3046 = vmatprep.subr.bf16.mxu0 0
      %3047 = vmatpush1.bf16.msra.mxu0 0
      %3048 = vmatprep.subr.bf16.mxu0 0
      %3049 = vmatpush1.bf16.msra.mxu0 0
      %3050 = vmatprep.subr.bf16.mxu0 0
      %3051 = vmatpush1.bf16.msra.mxu0 0
      %3052 = vmatprep.subr.bf16.mxu0 0
      %3053 = vmatpush1.bf16.msra.mxu0 0
      %3054 = vmatprep.subr.bf16.mxu0 0
      %3055 = vmatpush1.bf16.msra.mxu0 0
      %3056 = vmatprep.mubr.bf16.mxu0 0
      %3057 = vmatmul.mubr.bf16.gmra.mrb[0].mxu0 %v3019
      %v3058 = vpop.f32.mrb[0].mxu0
      %v3059 = vadd.f32 %v709, %v3058
      %v3060 = vpop.f32.mrb[0].mxu0
      %v3061 = vpop.f32.mrb[0].mxu0
      %v3062 = vpop.f32.mrb[0].mxu0
      %3063 = vdwg.mxu0
      %v3065 = vsel %vm854, %v774, 0
      %v3068 = vsel %vm858, %v838, 0
      %3070 = vmatprep.subr.bf16.mxu0 0
      %3071 = vmatpush1.bf16.msra.mxu0 %v3068
      %3072 = vmatprep.subr.bf16.mxu0 0
      %3073 = vmatpush1.bf16.msra.mxu0 0
      %3074 = vmatprep.subr.bf16.mxu0 0
      %3075 = vmatpush1.bf16.msra.mxu0 0
      %3076 = vmatprep.subr.bf16.mxu0 0
      %3077 = vmatpush1.bf16.msra.mxu0 0
      %3078 = vmatprep.subr.bf16.mxu0 0
      %3079 = vmatpush1.bf16.msra.mxu0 0
      %3080 = vmatprep.subr.bf16.mxu0 0
      %3081 = vmatpush1.bf16.msra.mxu0 0
      %3082 = vmatprep.subr.bf16.mxu0 0
      %3083 = vmatpush1.bf16.msra.mxu0 0
      %3084 = vmatprep.subr.bf16.mxu0 0
      %3085 = vmatpush1.bf16.msra.mxu0 0
      %3086 = vmatprep.subr.bf16.mxu0 0
      %3087 = vmatpush1.bf16.msra.mxu0 0
      %3088 = vmatprep.subr.bf16.mxu0 0
      %3089 = vmatpush1.bf16.msra.mxu0 0
      %3090 = vmatprep.subr.bf16.mxu0 0
      %3091 = vmatpush1.bf16.msra.mxu0 0
      %3092 = vmatprep.subr.bf16.mxu0 0
      %3093 = vmatpush1.bf16.msra.mxu0 0
      %3094 = vmatprep.subr.bf16.mxu0 0
      %3095 = vmatpush1.bf16.msra.mxu0 0
      %3096 = vmatprep.subr.bf16.mxu0 0
      %3097 = vmatpush1.bf16.msra.mxu0 0
      %3098 = vmatprep.subr.bf16.mxu0 0
      %3099 = vmatpush1.bf16.msra.mxu0 0
      %3100 = vmatprep.subr.bf16.mxu0 0
      %3101 = vmatpush1.bf16.msra.mxu0 0
      %3102 = vmatprep.mubr.bf16.mxu0 0
      %3103 = vmatmul.mubr.bf16.gmra.mrb[0].mxu0 %v3065
      %v3104 = vpop.f32.mrb[0].mxu0
      %v3105 = vadd.f32 %v710, %v3104
      %v3106 = vpop.f32.mrb[0].mxu0
      %v3107 = vpop.f32.mrb[0].mxu0
      %v3108 = vpop.f32.mrb[0].mxu0
      %3109 = vdwg.mxu0
      %v3111 = vsel %vm854, %v775, 0
      %v3114 = vsel %vm858, %v839, 0
      %3116 = vmatprep.subr.bf16.mxu0 0
      %3117 = vmatpush1.bf16.msra.mxu0 %v3114
      %3118 = vmatprep.subr.bf16.mxu0 0
      %3119 = vmatpush1.bf16.msra.mxu0 0
      %3120 = vmatprep.subr.bf16.mxu0 0
      %3121 = vmatpush1.bf16.msra.mxu0 0
      %3122 = vmatprep.subr.bf16.mxu0 0
      %3123 = vmatpush1.bf16.msra.mxu0 0
      %3124 = vmatprep.subr.bf16.mxu0 0
      %3125 = vmatpush1.bf16.msra.mxu0 0
      %3126 = vmatprep.subr.bf16.mxu0 0
      %3127 = vmatpush1.bf16.msra.mxu0 0
      %3128 = vmatprep.subr.bf16.mxu0 0
      %3129 = vmatpush1.bf16.msra.mxu0 0
      %3130 = vmatprep.subr.bf16.mxu0 0
      %3131 = vmatpush1.bf16.msra.mxu0 0
      %3132 = vmatprep.subr.bf16.mxu0 0
      %3133 = vmatpush1.bf16.msra.mxu0 0
      %3134 = vmatprep.subr.bf16.mxu0 0
      %3135 = vmatpush1.bf16.msra.mxu0 0
      %3136 = vmatprep.subr.bf16.mxu0 0
      %3137 = vmatpush1.bf16.msra.mxu0 0
      %3138 = vmatprep.subr.bf16.mxu0 0
      %3139 = vmatpush1.bf16.msra.mxu0 0
      %3140 = vmatprep.subr.bf16.mxu0 0
      %3141 = vmatpush1.bf16.msra.mxu0 0
      %3142 = vmatprep.subr.bf16.mxu0 0
      %3143 = vmatpush1.bf16.msra.mxu0 0
      %3144 = vmatprep.subr.bf16.mxu0 0
      %3145 = vmatpush1.bf16.msra.mxu0 0
      %3146 = vmatprep.subr.bf16.mxu0 0
      %3147 = vmatpush1.bf16.msra.mxu0 0
      %3148 = vmatprep.mubr.bf16.mxu0 0
      %3149 = vmatmul.mubr.bf16.gmra.mrb[0].mxu0 %v3111
      %v3150 = vpop.f32.mrb[0].mxu0
      %v3151 = vadd.f32 %v711, %v3150
      %v3152 = vpop.f32.mrb[0].mxu0
      %v3153 = vpop.f32.mrb[0].mxu0
      %v3154 = vpop.f32.mrb[0].mxu0
      %3155 = vdwg.mxu0
      %v3157 = vsel %vm854, %v776, 0
      %v3160 = vsel %vm858, %v840, 0
      %3162 = vmatprep.subr.bf16.mxu0 0
      %3163 = vmatpush1.bf16.msra.mxu0 %v3160
      %3164 = vmatprep.subr.bf16.mxu0 0
      %3165 = vmatpush1.bf16.msra.mxu0 0
      %3166 = vmatprep.subr.bf16.mxu0 0
      %3167 = vmatpush1.bf16.msra.mxu0 0
      %3168 = vmatprep.subr.bf16.mxu0 0
      %3169 = vmatpush1.bf16.msra.mxu0 0
      %3170 = vmatprep.subr.bf16.mxu0 0
      %3171 = vmatpush1.bf16.msra.mxu0 0
      %3172 = vmatprep.subr.bf16.mxu0 0
      %3173 = vmatpush1.bf16.msra.mxu0 0
      %3174 = vmatprep.subr.bf16.mxu0 0
      %3175 = vmatpush1.bf16.msra.mxu0 0
      %3176 = vmatprep.subr.bf16.mxu0 0
      %3177 = vmatpush1.bf16.msra.mxu0 0
      %3178 = vmatprep.subr.bf16.mxu0 0
      %3179 = vmatpush1.bf16.msra.mxu0 0
      %3180 = vmatprep.subr.bf16.mxu0 0
      %3181 = vmatpush1.bf16.msra.mxu0 0
      %3182 = vmatprep.subr.bf16.mxu0 0
      %3183 = vmatpush1.bf16.msra.mxu0 0
      %3184 = vmatprep.subr.bf16.mxu0 0
      %3185 = vmatpush1.bf16.msra.mxu0 0
      %3186 = vmatprep.subr.bf16.mxu0 0
      %3187 = vmatpush1.bf16.msra.mxu0 0
      %3188 = vmatprep.subr.bf16.mxu0 0
      %3189 = vmatpush1.bf16.msra.mxu0 0
      %3190 = vmatprep.subr.bf16.mxu0 0
      %3191 = vmatpush1.bf16.msra.mxu0 0
      %3192 = vmatprep.subr.bf16.mxu0 0
      %3193 = vmatpush1.bf16.msra.mxu0 0
      %3194 = vmatprep.mubr.bf16.mxu0 0
      %3195 = vmatmul.mubr.bf16.gmra.mrb[0].mxu0 %v3157
      %v3196 = vpop.f32.mrb[0].mxu0
      %v3197 = vadd.f32 %v712, %v3196
      %v3198 = vpop.f32.mrb[0].mxu0
      %v3199 = vpop.f32.mrb[0].mxu0
      %v3200 = vpop.f32.mrb[0].mxu0
      %3201 = vdwg.mxu0
      %v3203 = vsel %vm854, %v777, 0
      %v3206 = vsel %vm858, %v841, 0
      %3208 = vmatprep.subr.bf16.mxu0 0
      %3209 = vmatpush1.bf16.msra.mxu0 %v3206
      %3210 = vmatprep.subr.bf16.mxu0 0
      %3211 = vmatpush1.bf16.msra.mxu0 0
      %3212 = vmatprep.subr.bf16.mxu0 0
      %3213 = vmatpush1.bf16.msra.mxu0 0
      %3214 = vmatprep.subr.bf16.mxu0 0
      %3215 = vmatpush1.bf16.msra.mxu0 0
      %3216 = vmatprep.subr.bf16.mxu0 0
      %3217 = vmatpush1.bf16.msra.mxu0 0
      %3218 = vmatprep.subr.bf16.mxu0 0
      %3219 = vmatpush1.bf16.msra.mxu0 0
      %3220 = vmatprep.subr.bf16.mxu0 0
      %3221 = vmatpush1.bf16.msra.mxu0 0
      %3222 = vmatprep.subr.bf16.mxu0 0
      %3223 = vmatpush1.bf16.msra.mxu0 0
      %3224 = vmatprep.subr.bf16.mxu0 0
      %3225 = vmatpush1.bf16.msra.mxu0 0
      %3226 = vmatprep.subr.bf16.mxu0 0
      %3227 = vmatpush1.bf16.msra.mxu0 0
      %3228 = vmatprep.subr.bf16.mxu0 0
      %3229 = vmatpush1.bf16.msra.mxu0 0
      %3230 = vmatprep.subr.bf16.mxu0 0
      %3231 = vmatpush1.bf16.msra.mxu0 0
      %3232 = vmatprep.subr.bf16.mxu0 0
      %3233 = vmatpush1.bf16.msra.mxu0 0
      %3234 = vmatprep.subr.bf16.mxu0 0
      %3235 = vmatpush1.bf16.msra.mxu0 0
      %3236 = vmatprep.subr.bf16.mxu0 0
      %3237 = vmatpush1.bf16.msra.mxu0 0
      %3238 = vmatprep.subr.bf16.mxu0 0
      %3239 = vmatpush1.bf16.msra.mxu0 0
      %3240 = vmatprep.mubr.bf16.mxu0 0
      %3241 = vmatmul.mubr.bf16.gmra.mrb[0].mxu0 %v3203
      %v3242 = vpop.f32.mrb[0].mxu0
      %v3243 = vadd.f32 %v713, %v3242
      %v3244 = vpop.f32.mrb[0].mxu0
      %v3245 = vpop.f32.mrb[0].mxu0
      %v3246 = vpop.f32.mrb[0].mxu0
      %3247 = vdwg.mxu0
      %v3249 = vsel %vm854, %v778, 0
      %v3252 = vsel %vm858, %v842, 0
      %3254 = vmatprep.subr.bf16.mxu0 0
      %3255 = vmatpush1.bf16.msra.mxu0 %v3252
      %3256 = vmatprep.subr.bf16.mxu0 0
      %3257 = vmatpush1.bf16.msra.mxu0 0
      %3258 = vmatprep.subr.bf16.mxu0 0
      %3259 = vmatpush1.bf16.msra.mxu0 0
      %3260 = vmatprep.subr.bf16.mxu0 0
      %3261 = vmatpush1.bf16.msra.mxu0 0
      %3262 = vmatprep.subr.bf16.mxu0 0
      %3263 = vmatpush1.bf16.msra.mxu0 0
      %3264 = vmatprep.subr.bf16.mxu0 0
      %3265 = vmatpush1.bf16.msra.mxu0 0
      %3266 = vmatprep.subr.bf16.mxu0 0
      %3267 = vmatpush1.bf16.msra.mxu0 0
      %3268 = vmatprep.subr.bf16.mxu0 0
      %3269 = vmatpush1.bf16.msra.mxu0 0
      %3270 = vmatprep.subr.bf16.mxu0 0
      %3271 = vmatpush1.bf16.msra.mxu0 0
      %3272 = vmatprep.subr.bf16.mxu0 0
      %3273 = vmatpush1.bf16.msra.mxu0 0
      %3274 = vmatprep.subr.bf16.mxu0 0
      %3275 = vmatpush1.bf16.msra.mxu0 0
      %3276 = vmatprep.subr.bf16.mxu0 0
      %3277 = vmatpush1.bf16.msra.mxu0 0
      %3278 = vmatprep.subr.bf16.mxu0 0
      %3279 = vmatpush1.bf16.msra.mxu0 0
      %3280 = vmatprep.subr.bf16.mxu0 0
      %3281 = vmatpush1.bf16.msra.mxu0 0
      %3282 = vmatprep.subr.bf16.mxu0 0
      %3283 = vmatpush1.bf16.msra.mxu0 0
      %3284 = vmatprep.subr.bf16.mxu0 0
      %3285 = vmatpush1.bf16.msra.mxu0 0
      %3286 = vmatprep.mubr.bf16.mxu0 0
      %3287 = vmatmul.mubr.bf16.gmra.mrb[0].mxu0 %v3249
      %v3288 = vpop.f32.mrb[0].mxu0
      %v3289 = vadd.f32 %v714, %v3288
      %v3290 = vpop.f32.mrb[0].mxu0
      %v3291 = vpop.f32.mrb[0].mxu0
      %v3292 = vpop.f32.mrb[0].mxu0
      %3293 = vdwg.mxu0
      %v3295 = vsel %vm854, %v779, 0
      %v3298 = vsel %vm858, %v843, 0
      %3300 = vmatprep.subr.bf16.mxu0 0
      %3301 = vmatpush1.bf16.msra.mxu0 %v3298
      %3302 = vmatprep.subr.bf16.mxu0 0
      %3303 = vmatpush1.bf16.msra.mxu0 0
      %3304 = vmatprep.subr.bf16.mxu0 0
      %3305 = vmatpush1.bf16.msra.mxu0 0
      %3306 = vmatprep.subr.bf16.mxu0 0
      %3307 = vmatpush1.bf16.msra.mxu0 0
      %3308 = vmatprep.subr.bf16.mxu0 0
      %3309 = vmatpush1.bf16.msra.mxu0 0
      %3310 = vmatprep.subr.bf16.mxu0 0
      %3311 = vmatpush1.bf16.msra.mxu0 0
      %3312 = vmatprep.subr.bf16.mxu0 0
      %3313 = vmatpush1.bf16.msra.mxu0 0
      %3314 = vmatprep.subr.bf16.mxu0 0
      %3315 = vmatpush1.bf16.msra.mxu0 0
      %3316 = vmatprep.subr.bf16.mxu0 0
      %3317 = vmatpush1.bf16.msra.mxu0 0
      %3318 = vmatprep.subr.bf16.mxu0 0
      %3319 = vmatpush1.bf16.msra.mxu0 0
      %3320 = vmatprep.subr.bf16.mxu0 0
      %3321 = vmatpush1.bf16.msra.mxu0 0
      %3322 = vmatprep.subr.bf16.mxu0 0
      %3323 = vmatpush1.bf16.msra.mxu0 0
      %3324 = vmatprep.subr.bf16.mxu0 0
      %3325 = vmatpush1.bf16.msra.mxu0 0
      %3326 = vmatprep.subr.bf16.mxu0 0
      %3327 = vmatpush1.bf16.msra.mxu0 0
      %3328 = vmatprep.subr.bf16.mxu0 0
      %3329 = vmatpush1.bf16.msra.mxu0 0
      %3330 = vmatprep.subr.bf16.mxu0 0
      %3331 = vmatpush1.bf16.msra.mxu0 0
      %3332 = vmatprep.mubr.bf16.mxu0 0
      %3333 = vmatmul.mubr.bf16.gmra.mrb[0].mxu0 %v3295
      %v3334 = vpop.f32.mrb[0].mxu0
      %v3335 = vadd.f32 %v715, %v3334
      %v3336 = vpop.f32.mrb[0].mxu0
      %v3337 = vpop.f32.mrb[0].mxu0
      %v3338 = vpop.f32.mrb[0].mxu0
      %3339 = vdwg.mxu0
      %v3341 = vsel %vm854, %v780, 0
      %v3344 = vsel %vm858, %v844, 0
      %3346 = vmatprep.subr.bf16.mxu0 0
      %3347 = vmatpush1.bf16.msra.mxu0 %v3344
      %3348 = vmatprep.subr.bf16.mxu0 0
      %3349 = vmatpush1.bf16.msra.mxu0 0
      %3350 = vmatprep.subr.bf16.mxu0 0
      %3351 = vmatpush1.bf16.msra.mxu0 0
      %3352 = vmatprep.subr.bf16.mxu0 0
      %3353 = vmatpush1.bf16.msra.mxu0 0
      %3354 = vmatprep.subr.bf16.mxu0 0
      %3355 = vmatpush1.bf16.msra.mxu0 0
      %3356 = vmatprep.subr.bf16.mxu0 0
      %3357 = vmatpush1.bf16.msra.mxu0 0
      %3358 = vmatprep.subr.bf16.mxu0 0
      %3359 = vmatpush1.bf16.msra.mxu0 0
      %3360 = vmatprep.subr.bf16.mxu0 0
      %3361 = vmatpush1.bf16.msra.mxu0 0
      %3362 = vmatprep.subr.bf16.mxu0 0
      %3363 = vmatpush1.bf16.msra.mxu0 0
      %3364 = vmatprep.subr.bf16.mxu0 0
      %3365 = vmatpush1.bf16.msra.mxu0 0
      %3366 = vmatprep.subr.bf16.mxu0 0
      %3367 = vmatpush1.bf16.msra.mxu0 0
      %3368 = vmatprep.subr.bf16.mxu0 0
      %3369 = vmatpush1.bf16.msra.mxu0 0
      %3370 = vmatprep.subr.bf16.mxu0 0
      %3371 = vmatpush1.bf16.msra.mxu0 0
      %3372 = vmatprep.subr.bf16.mxu0 0
      %3373 = vmatpush1.bf16.msra.mxu0 0
      %3374 = vmatprep.subr.bf16.mxu0 0
      %3375 = vmatpush1.bf16.msra.mxu0 0
      %3376 = vmatprep.subr.bf16.mxu0 0
      %3377 = vmatpush1.bf16.msra.mxu0 0
      %3378 = vmatprep.mubr.bf16.mxu0 0
      %3379 = vmatmul.mubr.bf16.gmra.mrb[0].mxu0 %v3341
      %v3380 = vpop.f32.mrb[0].mxu0
      %v3381 = vadd.f32 %v716, %v3380
      %v3382 = vpop.f32.mrb[0].mxu0
      %v3383 = vpop.f32.mrb[0].mxu0
      %v3384 = vpop.f32.mrb[0].mxu0
      %3385 = vdwg.mxu0
      %v3387 = vsel %vm854, %v781, 0
      %v3390 = vsel %vm858, %v845, 0
      %3392 = vmatprep.subr.bf16.mxu0 0
      %3393 = vmatpush1.bf16.msra.mxu0 %v3390
      %3394 = vmatprep.subr.bf16.mxu0 0
      %3395 = vmatpush1.bf16.msra.mxu0 0
      %3396 = vmatprep.subr.bf16.mxu0 0
      %3397 = vmatpush1.bf16.msra.mxu0 0
      %3398 = vmatprep.subr.bf16.mxu0 0
      %3399 = vmatpush1.bf16.msra.mxu0 0
      %3400 = vmatprep.subr.bf16.mxu0 0
      %3401 = vmatpush1.bf16.msra.mxu0 0
      %3402 = vmatprep.subr.bf16.mxu0 0
      %3403 = vmatpush1.bf16.msra.mxu0 0
      %3404 = vmatprep.subr.bf16.mxu0 0
      %3405 = vmatpush1.bf16.msra.mxu0 0
      %3406 = vmatprep.subr.bf16.mxu0 0
      %3407 = vmatpush1.bf16.msra.mxu0 0
      %3408 = vmatprep.subr.bf16.mxu0 0
      %3409 = vmatpush1.bf16.msra.mxu0 0
      %3410 = vmatprep.subr.bf16.mxu0 0
      %3411 = vmatpush1.bf16.msra.mxu0 0
      %3412 = vmatprep.subr.bf16.mxu0 0
      %3413 = vmatpush1.bf16.msra.mxu0 0
      %3414 = vmatprep.subr.bf16.mxu0 0
      %3415 = vmatpush1.bf16.msra.mxu0 0
      %3416 = vmatprep.subr.bf16.mxu0 0
      %3417 = vmatpush1.bf16.msra.mxu0 0
      %3418 = vmatprep.subr.bf16.mxu0 0
      %3419 = vmatpush1.bf16.msra.mxu0 0
      %3420 = vmatprep.subr.bf16.mxu0 0
      %3421 = vmatpush1.bf16.msra.mxu0 0
      %3422 = vmatprep.subr.bf16.mxu0 0
      %3423 = vmatpush1.bf16.msra.mxu0 0
      %3424 = vmatprep.mubr.bf16.mxu0 0
      %3425 = vmatmul.mubr.bf16.gmra.mrb[0].mxu0 %v3387
      %v3426 = vpop.f32.mrb[0].mxu0
      %v3427 = vadd.f32 %v717, %v3426
      %v3428 = vpop.f32.mrb[0].mxu0
      %v3429 = vpop.f32.mrb[0].mxu0
      %v3430 = vpop.f32.mrb[0].mxu0
      %3431 = vdwg.mxu0
      %v3433 = vsel %vm854, %v782, 0
      %v3436 = vsel %vm858, %v846, 0
      %3438 = vmatprep.subr.bf16.mxu0 0
      %3439 = vmatpush1.bf16.msra.mxu0 %v3436
      %3440 = vmatprep.subr.bf16.mxu0 0
      %3441 = vmatpush1.bf16.msra.mxu0 0
      %3442 = vmatprep.subr.bf16.mxu0 0
      %3443 = vmatpush1.bf16.msra.mxu0 0
      %3444 = vmatprep.subr.bf16.mxu0 0
      %3445 = vmatpush1.bf16.msra.mxu0 0
      %3446 = vmatprep.subr.bf16.mxu0 0
      %3447 = vmatpush1.bf16.msra.mxu0 0
      %3448 = vmatprep.subr.bf16.mxu0 0
      %3449 = vmatpush1.bf16.msra.mxu0 0
      %3450 = vmatprep.subr.bf16.mxu0 0
      %3451 = vmatpush1.bf16.msra.mxu0 0
      %3452 = vmatprep.subr.bf16.mxu0 0
      %3453 = vmatpush1.bf16.msra.mxu0 0
      %3454 = vmatprep.subr.bf16.mxu0 0
      %3455 = vmatpush1.bf16.msra.mxu0 0
      %3456 = vmatprep.subr.bf16.mxu0 0
      %3457 = vmatpush1.bf16.msra.mxu0 0
      %3458 = vmatprep.subr.bf16.mxu0 0
      %3459 = vmatpush1.bf16.msra.mxu0 0
      %3460 = vmatprep.subr.bf16.mxu0 0
      %3461 = vmatpush1.bf16.msra.mxu0 0
      %3462 = vmatprep.subr.bf16.mxu0 0
      %3463 = vmatpush1.bf16.msra.mxu0 0
      %3464 = vmatprep.subr.bf16.mxu0 0
      %3465 = vmatpush1.bf16.msra.mxu0 0
      %3466 = vmatprep.subr.bf16.mxu0 0
      %3467 = vmatpush1.bf16.msra.mxu0 0
      %3468 = vmatprep.subr.bf16.mxu0 0
      %3469 = vmatpush1.bf16.msra.mxu0 0
      %3470 = vmatprep.mubr.bf16.mxu0 0
      %3471 = vmatmul.mubr.bf16.gmra.mrb[0].mxu0 %v3433
      %v3472 = vpop.f32.mrb[0].mxu0
      %v3473 = vadd.f32 %v718, %v3472
      %v3474 = vpop.f32.mrb[0].mxu0
      %v3475 = vpop.f32.mrb[0].mxu0
      %v3476 = vpop.f32.mrb[0].mxu0
      %3477 = vdwg.mxu0
      %v3479 = vsel %vm854, %v783, 0
      %v3482 = vsel %vm858, %v847, 0
      %3484 = vmatprep.subr.bf16.mxu0 0
      %3485 = vmatpush1.bf16.msra.mxu0 %v3482
      %3486 = vmatprep.subr.bf16.mxu0 0
      %3487 = vmatpush1.bf16.msra.mxu0 0
      %3488 = vmatprep.subr.bf16.mxu0 0
      %3489 = vmatpush1.bf16.msra.mxu0 0
      %3490 = vmatprep.subr.bf16.mxu0 0
      %3491 = vmatpush1.bf16.msra.mxu0 0
      %3492 = vmatprep.subr.bf16.mxu0 0
      %3493 = vmatpush1.bf16.msra.mxu0 0
      %3494 = vmatprep.subr.bf16.mxu0 0
      %3495 = vmatpush1.bf16.msra.mxu0 0
      %3496 = vmatprep.subr.bf16.mxu0 0
      %3497 = vmatpush1.bf16.msra.mxu0 0
      %3498 = vmatprep.subr.bf16.mxu0 0
      %3499 = vmatpush1.bf16.msra.mxu0 0
      %3500 = vmatprep.subr.bf16.mxu0 0
      %3501 = vmatpush1.bf16.msra.mxu0 0
      %3502 = vmatprep.subr.bf16.mxu0 0
      %3503 = vmatpush1.bf16.msra.mxu0 0
      %3504 = vmatprep.subr.bf16.mxu0 0
      %3505 = vmatpush1.bf16.msra.mxu0 0
      %3506 = vmatprep.subr.bf16.mxu0 0
      %3507 = vmatpush1.bf16.msra.mxu0 0
      %3508 = vmatprep.subr.bf16.mxu0 0
      %3509 = vmatpush1.bf16.msra.mxu0 0
      %3510 = vmatprep.subr.bf16.mxu0 0
      %3511 = vmatpush1.bf16.msra.mxu0 0
      %3512 = vmatprep.subr.bf16.mxu0 0
      %3513 = vmatpush1.bf16.msra.mxu0 0
      %3514 = vmatprep.subr.bf16.mxu0 0
      %3515 = vmatpush1.bf16.msra.mxu0 0
      %3516 = vmatprep.mubr.bf16.mxu0 0
      %3517 = vmatmul.mubr.bf16.gmra.mrb[0].mxu0 %v3479
      %v3518 = vpop.f32.mrb[0].mxu0
      %v3519 = vadd.f32 %v719, %v3518
      %v3520 = vpop.f32.mrb[0].mxu0
      %v3521 = vpop.f32.mrb[0].mxu0
      %v3522 = vpop.f32.mrb[0].mxu0
      %3523 = vdwg.mxu0
      %v3525 = vsel %vm854, %v784, 0
      %v3528 = vsel %vm858, %v848, 0
      %3530 = vmatprep.subr.bf16.mxu0 0
      %3531 = vmatpush1.bf16.msra.mxu0 %v3528
      %3532 = vmatprep.subr.bf16.mxu0 0
      %3533 = vmatpush1.bf16.msra.mxu0 0
      %3534 = vmatprep.subr.bf16.mxu0 0
      %3535 = vmatpush1.bf16.msra.mxu0 0
      %3536 = vmatprep.subr.bf16.mxu0 0
      %3537 = vmatpush1.bf16.msra.mxu0 0
      %3538 = vmatprep.subr.bf16.mxu0 0
      %3539 = vmatpush1.bf16.msra.mxu0 0
      %3540 = vmatprep.subr.bf16.mxu0 0
      %3541 = vmatpush1.bf16.msra.mxu0 0
      %3542 = vmatprep.subr.bf16.mxu0 0
      %3543 = vmatpush1.bf16.msra.mxu0 0
      %3544 = vmatprep.subr.bf16.mxu0 0
      %3545 = vmatpush1.bf16.msra.mxu0 0
      %3546 = vmatprep.subr.bf16.mxu0 0
      %3547 = vmatpush1.bf16.msra.mxu0 0
      %3548 = vmatprep.subr.bf16.mxu0 0
      %3549 = vmatpush1.bf16.msra.mxu0 0
      %3550 = vmatprep.subr.bf16.mxu0 0
      %3551 = vmatpush1.bf16.msra.mxu0 0
      %3552 = vmatprep.subr.bf16.mxu0 0
      %3553 = vmatpush1.bf16.msra.mxu0 0
      %3554 = vmatprep.subr.bf16.mxu0 0
      %3555 = vmatpush1.bf16.msra.mxu0 0
      %3556 = vmatprep.subr.bf16.mxu0 0
      %3557 = vmatpush1.bf16.msra.mxu0 0
      %3558 = vmatprep.subr.bf16.mxu0 0
      %3559 = vmatpush1.bf16.msra.mxu0 0
      %3560 = vmatprep.subr.bf16.mxu0 0
      %3561 = vmatpush1.bf16.msra.mxu0 0
      %3562 = vmatprep.mubr.bf16.mxu0 0
      %3563 = vmatmul.mubr.bf16.gmra.mrb[0].mxu0 %v3525
      %v3564 = vpop.f32.mrb[0].mxu0
      %v3565 = vadd.f32 %v720, %v3564
      %v3566 = vpop.f32.mrb[0].mxu0
      %v3567 = vpop.f32.mrb[0].mxu0
      %v3568 = vpop.f32.mrb[0].mxu0
      %3569 = vdwg.mxu0
      %v3571 = vsel %vm854, %v785, 0
      %v3574 = vsel %vm858, %v849, 0
      %3576 = vmatprep.subr.bf16.mxu0 0
      %3577 = vmatpush1.bf16.msra.mxu0 %v3574
      %3578 = vmatprep.subr.bf16.mxu0 0
      %3579 = vmatpush1.bf16.msra.mxu0 0
      %3580 = vmatprep.subr.bf16.mxu0 0
      %3581 = vmatpush1.bf16.msra.mxu0 0
      %3582 = vmatprep.subr.bf16.mxu0 0
      %3583 = vmatpush1.bf16.msra.mxu0 0
      %3584 = vmatprep.subr.bf16.mxu0 0
      %3585 = vmatpush1.bf16.msra.mxu0 0
      %3586 = vmatprep.subr.bf16.mxu0 0
      %3587 = vmatpush1.bf16.msra.mxu0 0
      %3588 = vmatprep.subr.bf16.mxu0 0
      %3589 = vmatpush1.bf16.msra.mxu0 0
      %3590 = vmatprep.subr.bf16.mxu0 0
      %3591 = vmatpush1.bf16.msra.mxu0 0
      %3592 = vmatprep.subr.bf16.mxu0 0
      %3593 = vmatpush1.bf16.msra.mxu0 0
      %3594 = vmatprep.subr.bf16.mxu0 0
      %3595 = vmatpush1.bf16.msra.mxu0 0
      %3596 = vmatprep.subr.bf16.mxu0 0
      %3597 = vmatpush1.bf16.msra.mxu0 0
      %3598 = vmatprep.subr.bf16.mxu0 0
      %3599 = vmatpush1.bf16.msra.mxu0 0
      %3600 = vmatprep.subr.bf16.mxu0 0
      %3601 = vmatpush1.bf16.msra.mxu0 0
      %3602 = vmatprep.subr.bf16.mxu0 0
      %3603 = vmatpush1.bf16.msra.mxu0 0
      %3604 = vmatprep.subr.bf16.mxu0 0
      %3605 = vmatpush1.bf16.msra.mxu0 0
      %3606 = vmatprep.subr.bf16.mxu0 0
      %3607 = vmatpush1.bf16.msra.mxu0 0
      %3608 = vmatprep.mubr.bf16.mxu0 0
      %3609 = vmatmul.mubr.bf16.gmra.mrb[0].mxu0 %v3571
      %v3610 = vpop.f32.mrb[0].mxu0
      %v3611 = vadd.f32 %v721, %v3610
      %v3612 = vpop.f32.mrb[0].mxu0
      %v3613 = vpop.f32.mrb[0].mxu0
      %v3614 = vpop.f32.mrb[0].mxu0
      %3615 = vdwg.mxu0
      %v3617 = vsel %vm854, %v786, 0
      %v3620 = vsel %vm858, %v850, 0
      %3622 = vmatprep.subr.bf16.mxu0 0
      %3623 = vmatpush1.bf16.msra.mxu0 %v3620
      %3624 = vmatprep.subr.bf16.mxu0 0
      %3625 = vmatpush1.bf16.msra.mxu0 0
      %3626 = vmatprep.subr.bf16.mxu0 0
      %3627 = vmatpush1.bf16.msra.mxu0 0
      %3628 = vmatprep.subr.bf16.mxu0 0
      %3629 = vmatpush1.bf16.msra.mxu0 0
      %3630 = vmatprep.subr.bf16.mxu0 0
      %3631 = vmatpush1.bf16.msra.mxu0 0
      %3632 = vmatprep.subr.bf16.mxu0 0
      %3633 = vmatpush1.bf16.msra.mxu0 0
      %3634 = vmatprep.subr.bf16.mxu0 0
      %3635 = vmatpush1.bf16.msra.mxu0 0
      %3636 = vmatprep.subr.bf16.mxu0 0
      %3637 = vmatpush1.bf16.msra.mxu0 0
      %3638 = vmatprep.subr.bf16.mxu0 0
      %3639 = vmatpush1.bf16.msra.mxu0 0
      %3640 = vmatprep.subr.bf16.mxu0 0
      %3641 = vmatpush1.bf16.msra.mxu0 0
      %3642 = vmatprep.subr.bf16.mxu0 0
      %3643 = vmatpush1.bf16.msra.mxu0 0
      %3644 = vmatprep.subr.bf16.mxu0 0
      %3645 = vmatpush1.bf16.msra.mxu0 0
      %3646 = vmatprep.subr.bf16.mxu0 0
      %3647 = vmatpush1.bf16.msra.mxu0 0
      %3648 = vmatprep.subr.bf16.mxu0 0
      %3649 = vmatpush1.bf16.msra.mxu0 0
      %3650 = vmatprep.subr.bf16.mxu0 0
      %3651 = vmatpush1.bf16.msra.mxu0 0
      %3652 = vmatprep.subr.bf16.mxu0 0
      %3653 = vmatpush1.bf16.msra.mxu0 0
      %3654 = vmatprep.mubr.bf16.mxu0 0
      %3655 = vmatmul.mubr.bf16.gmra.mrb[0].mxu0 %v3617
      %v3656 = vpop.f32.mrb[0].mxu0
      %v3657 = vadd.f32 %v722, %v3656
      %v3658 = vpop.f32.mrb[0].mxu0
      %v3659 = vpop.f32.mrb[0].mxu0
      %v3660 = vpop.f32.mrb[0].mxu0
      %3661 = vdwg.mxu0
      %v3663 = vsel %vm854, %v787, 0
      %v3666 = vsel %vm858, %v851, 0
      %3668 = vmatprep.subr.bf16.mxu0 0
      %3669 = vmatpush1.bf16.msra.mxu0 %v3666
      %3670 = vmatprep.subr.bf16.mxu0 0
      %3671 = vmatpush1.bf16.msra.mxu0 0
      %3672 = vmatprep.subr.bf16.mxu0 0
      %3673 = vmatpush1.bf16.msra.mxu0 0
      %3674 = vmatprep.subr.bf16.mxu0 0
      %3675 = vmatpush1.bf16.msra.mxu0 0
      %3676 = vmatprep.subr.bf16.mxu0 0
      %3677 = vmatpush1.bf16.msra.mxu0 0
      %3678 = vmatprep.subr.bf16.mxu0 0
      %3679 = vmatpush1.bf16.msra.mxu0 0
      %3680 = vmatprep.subr.bf16.mxu0 0
      %3681 = vmatpush1.bf16.msra.mxu0 0
      %3682 = vmatprep.subr.bf16.mxu0 0
      %3683 = vmatpush1.bf16.msra.mxu0 0
      %3684 = vmatprep.subr.bf16.mxu0 0
      %3685 = vmatpush1.bf16.msra.mxu0 0
      %3686 = vmatprep.subr.bf16.mxu0 0
      %3687 = vmatpush1.bf16.msra.mxu0 0
      %3688 = vmatprep.subr.bf16.mxu0 0
      %3689 = vmatpush1.bf16.msra.mxu0 0
      %3690 = vmatprep.subr.bf16.mxu0 0
      %3691 = vmatpush1.bf16.msra.mxu0 0
      %3692 = vmatprep.subr.bf16.mxu0 0
      %3693 = vmatpush1.bf16.msra.mxu0 0
      %3694 = vmatprep.subr.bf16.mxu0 0
      %3695 = vmatpush1.bf16.msra.mxu0 0
      %3696 = vmatprep.subr.bf16.mxu0 0
      %3697 = vmatpush1.bf16.msra.mxu0 0
      %3698 = vmatprep.subr.bf16.mxu0 0
      %3699 = vmatpush1.bf16.msra.mxu0 0
      %3700 = vmatprep.mubr.bf16.mxu0 0
      %3701 = vmatmul.mubr.bf16.gmra.mrb[0].mxu0 %v3663
      %v3702 = vpop.f32.mrb[0].mxu0
      %v3703 = vadd.f32 %v723, %v3702
      %v3704 = vpop.f32.mrb[0].mxu0
      %v3705 = vpop.f32.mrb[0].mxu0
      %v3706 = vpop.f32.mrb[0].mxu0
      %3707 = vdwg.mxu0
      %v3709 = vsel %vm854, %v788, 0
      %v3712 = vsel %vm858, %v852, 0
      %3714 = vmatprep.subr.bf16.mxu0 0
      %3715 = vmatpush1.bf16.msra.mxu0 %v3712
      %3716 = vmatprep.subr.bf16.mxu0 0
      %3717 = vmatpush1.bf16.msra.mxu0 0
      %3718 = vmatprep.subr.bf16.mxu0 0
      %3719 = vmatpush1.bf16.msra.mxu0 0
      %3720 = vmatprep.subr.bf16.mxu0 0
      %3721 = vmatpush1.bf16.msra.mxu0 0
      %3722 = vmatprep.subr.bf16.mxu0 0
      %3723 = vmatpush1.bf16.msra.mxu0 0
      %3724 = vmatprep.subr.bf16.mxu0 0
      %3725 = vmatpush1.bf16.msra.mxu0 0
      %3726 = vmatprep.subr.bf16.mxu0 0
      %3727 = vmatpush1.bf16.msra.mxu0 0
      %3728 = vmatprep.subr.bf16.mxu0 0
      %3729 = vmatpush1.bf16.msra.mxu0 0
      %3730 = vmatprep.subr.bf16.mxu0 0
      %3731 = vmatpush1.bf16.msra.mxu0 0
      %3732 = vmatprep.subr.bf16.mxu0 0
      %3733 = vmatpush1.bf16.msra.mxu0 0
      %3734 = vmatprep.subr.bf16.mxu0 0
      %3735 = vmatpush1.bf16.msra.mxu0 0
      %3736 = vmatprep.subr.bf16.mxu0 0
      %3737 = vmatpush1.bf16.msra.mxu0 0
      %3738 = vmatprep.subr.bf16.mxu0 0
      %3739 = vmatpush1.bf16.msra.mxu0 0
      %3740 = vmatprep.subr.bf16.mxu0 0
      %3741 = vmatpush1.bf16.msra.mxu0 0
      %3742 = vmatprep.subr.bf16.mxu0 0
      %3743 = vmatpush1.bf16.msra.mxu0 0
      %3744 = vmatprep.subr.bf16.mxu0 0
      %3745 = vmatpush1.bf16.msra.mxu0 0
      %3746 = vmatprep.mubr.bf16.mxu0 0
      %3747 = vmatmul.mubr.bf16.gmra.mrb[0].mxu0 %v3709
      %v3748 = vpop.f32.mrb[0].mxu0
      %v3749 = vadd.f32 %v724, %v3748
      %v3750 = vpop.f32.mrb[0].mxu0
      %v3751 = vpop.f32.mrb[0].mxu0
      %v3752 = vpop.f32.mrb[0].mxu0
      %3753 = vdwg.mxu0
      %v3755 = vsel %vm854, %v789, 0
      %v3758 = vsel %vm858, %v853, 0
      %3760 = vmatprep.subr.bf16.mxu0 0
      %3761 = vmatpush1.bf16.msra.mxu0 %v3758
      %3762 = vmatprep.subr.bf16.mxu0 0
      %3763 = vmatpush1.bf16.msra.mxu0 0
      %3764 = vmatprep.subr.bf16.mxu0 0
      %3765 = vmatpush1.bf16.msra.mxu0 0
      %3766 = vmatprep.subr.bf16.mxu0 0
      %3767 = vmatpush1.bf16.msra.mxu0 0
      %3768 = vmatprep.subr.bf16.mxu0 0
      %3769 = vmatpush1.bf16.msra.mxu0 0
      %3770 = vmatprep.subr.bf16.mxu0 0
      %3771 = vmatpush1.bf16.msra.mxu0 0
      %3772 = vmatprep.subr.bf16.mxu0 0
      %3773 = vmatpush1.bf16.msra.mxu0 0
      %3774 = vmatprep.subr.bf16.mxu0 0
      %3775 = vmatpush1.bf16.msra.mxu0 0
      %3776 = vmatprep.subr.bf16.mxu0 0
      %3777 = vmatpush1.bf16.msra.mxu0 0
      %3778 = vmatprep.subr.bf16.mxu0 0
      %3779 = vmatpush1.bf16.msra.mxu0 0
      %3780 = vmatprep.subr.bf16.mxu0 0
      %3781 = vmatpush1.bf16.msra.mxu0 0
      %3782 = vmatprep.subr.bf16.mxu0 0
      %3783 = vmatpush1.bf16.msra.mxu0 0
      %3784 = vmatprep.subr.bf16.mxu0 0
      %3785 = vmatpush1.bf16.msra.mxu0 0
      %3786 = vmatprep.subr.bf16.mxu0 0
      %3787 = vmatpush1.bf16.msra.mxu0 0
      %3788 = vmatprep.subr.bf16.mxu0 0
      %3789 = vmatpush1.bf16.msra.mxu0 0
      %3790 = vmatprep.subr.bf16.mxu0 0
      %3791 = vmatpush1.bf16.msra.mxu0 0
      %3792 = vmatprep.mubr.bf16.mxu0 0
      %3793 = vmatmul.mubr.bf16.gmra.mrb[0].mxu0 %v3755
      %v3794 = vpop.f32.mrb[0].mxu0
      %v3795 = vadd.f32 %v725, %v3794
      %v3796 = vpop.f32.mrb[0].mxu0
      %v3797 = vpop.f32.mrb[0].mxu0
      %v3798 = vpop.f32.mrb[0].mxu0
      %3799 = vdwg.mxu0
      %v3800 = vmul.f32 %v897, %v409
      %v3801 = vmul.f32 %v943, %v413
      %v3802 = vmul.f32 %v989, %v417
      %v3803 = vmul.f32 %v1035, %v421
      %v3804 = vmul.f32 %v1081, %v425
      %v3805 = vmul.f32 %v1127, %v429
      %v3806 = vmul.f32 %v1173, %v433
      %v3807 = vmul.f32 %v1219, %v437
      %v3808 = vmul.f32 %v1265, %v441
      %v3809 = vmul.f32 %v1311, %v445
      %v3810 = vmul.f32 %v1357, %v449
      %v3811 = vmul.f32 %v1403, %v453
      %v3812 = vmul.f32 %v1449, %v457
      %v3813 = vmul.f32 %v1495, %v461
      %v3814 = vmul.f32 %v1541, %v465
      %v3815 = vmul.f32 %v1587, %v469
      %v3816 = vmul.f32 %v1633, %v473
      %v3817 = vmul.f32 %v1679, %v477
      %v3818 = vmul.f32 %v1725, %v481
      %v3819 = vmul.f32 %v1771, %v485
      %v3820 = vmul.f32 %v1817, %v489
      %v3821 = vmul.f32 %v1863, %v493
      %v3822 = vmul.f32 %v1909, %v497
      %v3823 = vmul.f32 %v1955, %v501
      %v3824 = vmul.f32 %v2001, %v505
      %v3825 = vmul.f32 %v2047, %v509
      %v3826 = vmul.f32 %v2093, %v513
      %v3827 = vmul.f32 %v2139, %v517
      %v3828 = vmul.f32 %v2185, %v521
      %v3829 = vmul.f32 %v2231, %v525
      %v3830 = vmul.f32 %v2277, %v529
      %v3831 = vmul.f32 %v2323, %v533
      %v3832 = vmul.f32 %v2369, %v537
      %v3833 = vmul.f32 %v2415, %v541
      %v3834 = vmul.f32 %v2461, %v545
      %v3835 = vmul.f32 %v2507, %v549
      %v3836 = vmul.f32 %v2553, %v553
      %v3837 = vmul.f32 %v2599, %v557
      %v3838 = vmul.f32 %v2645, %v561
      %v3839 = vmul.f32 %v2691, %v565
      %v3840 = vmul.f32 %v2737, %v569
      %v3841 = vmul.f32 %v2783, %v573
      %v3842 = vmul.f32 %v2829, %v577
      %v3843 = vmul.f32 %v2875, %v581
      %v3844 = vmul.f32 %v2921, %v585
      %v3845 = vmul.f32 %v2967, %v589
      %v3846 = vmul.f32 %v3013, %v593
      %v3847 = vmul.f32 %v3059, %v597
      %v3848 = vmul.f32 %v3105, %v601
      %v3849 = vmul.f32 %v3151, %v605
      %v3850 = vmul.f32 %v3197, %v609
      %v3851 = vmul.f32 %v3243, %v613
      %v3852 = vmul.f32 %v3289, %v617
      %v3853 = vmul.f32 %v3335, %v621
      %v3854 = vmul.f32 %v3381, %v625
      %v3855 = vmul.f32 %v3427, %v629
      %v3856 = vmul.f32 %v3473, %v633
      %v3857 = vmul.f32 %v3519, %v637
      %v3858 = vmul.f32 %v3565, %v641
      %v3859 = vmul.f32 %v3611, %v645
      %v3860 = vmul.f32 %v3657, %v649
      %v3861 = vmul.f32 %v3703, %v653
      %v3862 = vmul.f32 %v3749, %v657
      %v3863 = vmul.f32 %v3795, %v661
      %vm3864 = vcmask 60416
      %3865 = vst.msk [vmem:[#allocation2] sm:$0xf] %vm3864, %v3800
      %3866 = vst.msk [vmem:[#allocation2 + $0x4] sm:$0xf] %vm3864, %v3801
      %3867 = vst.msk [vmem:[#allocation2 + $0x8] sm:$0xf] %vm3864, %v3802
      %3868 = vst.msk [vmem:[#allocation2 + $0xc] sm:$0xf] %vm3864, %v3803
      %3869 = vst.msk [vmem:[#allocation2 + $0x10] sm:$0xf] %vm3864, %v3804
      %3870 = vst.msk [vmem:[#allocation2 + $0x14] sm:$0xf] %vm3864, %v3805
      %3871 = vst.msk [vmem:[#allocation2 + $0x18] sm:$0xf] %vm3864, %v3806
      %3872 = vst.msk [vmem:[#allocation2 + $0x1c] sm:$0xf] %vm3864, %v3807
      %3873 = vst.msk [vmem:[#allocation2 + $0x20] sm:$0xf] %vm3864, %v3808
      %3874 = vst.msk [vmem:[#allocation2 + $0x24] sm:$0xf] %vm3864, %v3809
      %3875 = vst.msk [vmem:[#allocation2 + $0x28] sm:$0xf] %vm3864, %v3810
      %3876 = vst.msk [vmem:[#allocation2 + $0x2c] sm:$0xf] %vm3864, %v3811
      %3877 = vst.msk [vmem:[#allocation2 + $0x30] sm:$0xf] %vm3864, %v3812
      %3878 = vst.msk [vmem:[#allocation2 + $0x34] sm:$0xf] %vm3864, %v3813
      %3879 = vst.msk [vmem:[#allocation2 + $0x38] sm:$0xf] %vm3864, %v3814
      %3880 = vst.msk [vmem:[#allocation2 + $0x3c] sm:$0xf] %vm3864, %v3815
      %3881 = vst.msk [vmem:[#allocation2 + $0x40] sm:$0xf] %vm3864, %v3816
      %3882 = vst.msk [vmem:[#allocation2 + $0x44] sm:$0xf] %vm3864, %v3817
      %3883 = vst.msk [vmem:[#allocation2 + $0x48] sm:$0xf] %vm3864, %v3818
      %3884 = vst.msk [vmem:[#allocation2 + $0x4c] sm:$0xf] %vm3864, %v3819
      %3885 = vst.msk [vmem:[#allocation2 + $0x50] sm:$0xf] %vm3864, %v3820
      %3886 = vst.msk [vmem:[#allocation2 + $0x54] sm:$0xf] %vm3864, %v3821
      %3887 = vst.msk [vmem:[#allocation2 + $0x58] sm:$0xf] %vm3864, %v3822
      %3888 = vst.msk [vmem:[#allocation2 + $0x5c] sm:$0xf] %vm3864, %v3823
      %3889 = vst.msk [vmem:[#allocation2 + $0x60] sm:$0xf] %vm3864, %v3824
      %3890 = vst.msk [vmem:[#allocation2 + $0x64] sm:$0xf] %vm3864, %v3825
      %3891 = vst.msk [vmem:[#allocation2 + $0x68] sm:$0xf] %vm3864, %v3826
      %3892 = vst.msk [vmem:[#allocation2 + $0x6c] sm:$0xf] %vm3864, %v3827
      %3893 = vst.msk [vmem:[#allocation2 + $0x70] sm:$0xf] %vm3864, %v3828
      %3894 = vst.msk [vmem:[#allocation2 + $0x74] sm:$0xf] %vm3864, %v3829
      %3895 = vst.msk [vmem:[#allocation2 + $0x78] sm:$0xf] %vm3864, %v3830
      %3896 = vst.msk [vmem:[#allocation2 + $0x7c] sm:$0xf] %vm3864, %v3831
      %3897 = vst.msk [vmem:[#allocation2 + $0x80] sm:$0xf] %vm3864, %v3832
      %3898 = vst.msk [vmem:[#allocation2 + $0x84] sm:$0xf] %vm3864, %v3833
      %3899 = vst.msk [vmem:[#allocation2 + $0x88] sm:$0xf] %vm3864, %v3834
      %3900 = vst.msk [vmem:[#allocation2 + $0x8c] sm:$0xf] %vm3864, %v3835
      %3901 = vst.msk [vmem:[#allocation2 + $0x90] sm:$0xf] %vm3864, %v3836
      %3902 = vst.msk [vmem:[#allocation2 + $0x94] sm:$0xf] %vm3864, %v3837
      %3903 = vst.msk [vmem:[#allocation2 + $0x98] sm:$0xf] %vm3864, %v3838
      %3904 = vst.msk [vmem:[#allocation2 + $0x9c] sm:$0xf] %vm3864, %v3839
      %3905 = vst.msk [vmem:[#allocation2 + $0xa0] sm:$0xf] %vm3864, %v3840
      %3906 = vst.msk [vmem:[#allocation2 + $0xa4] sm:$0xf] %vm3864, %v3841
      %3907 = vst.msk [vmem:[#allocation2 + $0xa8] sm:$0xf] %vm3864, %v3842
      %3908 = vst.msk [vmem:[#allocation2 + $0xac] sm:$0xf] %vm3864, %v3843
      %3909 = vst.msk [vmem:[#allocation2 + $0xb0] sm:$0xf] %vm3864, %v3844
      %3910 = vst.msk [vmem:[#allocation2 + $0xb4] sm:$0xf] %vm3864, %v3845
      %3911 = vst.msk [vmem:[#allocation2 + $0xb8] sm:$0xf] %vm3864, %v3846
      %3912 = vst.msk [vmem:[#allocation2 + $0xbc] sm:$0xf] %vm3864, %v3847
      %3913 = vst.msk [vmem:[#allocation2 + $0xc0] sm:$0xf] %vm3864, %v3848
      %3914 = vst.msk [vmem:[#allocation2 + $0xc4] sm:$0xf] %vm3864, %v3849
      %3915 = vst.msk [vmem:[#allocation2 + $0xc8] sm:$0xf] %vm3864, %v3850
      %3916 = vst.msk [vmem:[#allocation2 + $0xcc] sm:$0xf] %vm3864, %v3851
      %3917 = vst.msk [vmem:[#allocation2 + $0xd0] sm:$0xf] %vm3864, %v3852
      %3918 = vst.msk [vmem:[#allocation2 + $0xd4] sm:$0xf] %vm3864, %v3853
      %3919 = vst.msk [vmem:[#allocation2 + $0xd8] sm:$0xf] %vm3864, %v3854
      %3920 = vst.msk [vmem:[#allocation2 + $0xdc] sm:$0xf] %vm3864, %v3855
      %3921 = vst.msk [vmem:[#allocation2 + $0xe0] sm:$0xf] %vm3864, %v3856
      %3922 = vst.msk [vmem:[#allocation2 + $0xe4] sm:$0xf] %vm3864, %v3857
      %3923 = vst.msk [vmem:[#allocation2 + $0xe8] sm:$0xf] %vm3864, %v3858
      %3924 = vst.msk [vmem:[#allocation2 + $0xec] sm:$0xf] %vm3864, %v3859
      %3925 = vst.msk [vmem:[#allocation2 + $0xf0] sm:$0xf] %vm3864, %v3860
      %3926 = vst.msk [vmem:[#allocation2 + $0xf4] sm:$0xf] %vm3864, %v3861
      %3927 = vst.msk [vmem:[#allocation2 + $0xf8] sm:$0xf] %vm3864, %v3862
      %3928 = vst.msk [vmem:[#allocation2 + $0xfc] sm:$0xf] %vm3864, %v3863
      %v3929 = vld [vmem:[%s3] sm:$0x1]
      %v3930 = vld [vmem:[#allocation2] sm:$0x1]
      %v3931 = vld [vmem:[#allocation2 + $0x4] sm:$0x1]
      %v3932 = vld [vmem:[#allocation2 + $0x8] sm:$0x1]
      %v3933 = vld [vmem:[#allocation2 + $0xc] sm:$0x1]
      %v3934 = vld [vmem:[#allocation2 + $0x10] sm:$0x1]
      %v3935 = vld [vmem:[#allocation2 + $0x14] sm:$0x1]
      %v3936 = vld [vmem:[#allocation2 + $0x18] sm:$0x1]
      %v3937 = vld [vmem:[#allocation2 + $0x1c] sm:$0x1]
      %v3938 = vld [vmem:[#allocation2 + $0x20] sm:$0x1]
      %v3939 = vld [vmem:[#allocation2 + $0x24] sm:$0x1]
      %v3940 = vld [vmem:[#allocation2 + $0x28] sm:$0x1]
      %v3941 = vld [vmem:[#allocation2 + $0x2c] sm:$0x1]
      %v3942 = vld [vmem:[#allocation2 + $0x30] sm:$0x1]
      %v3943 = vld [vmem:[#allocation2 + $0x34] sm:$0x1]
      %v3944 = vld [vmem:[#allocation2 + $0x38] sm:$0x1]
      %v3945 = vld [vmem:[#allocation2 + $0x3c] sm:$0x1]
      %v3946 = vld [vmem:[#allocation2 + $0x40] sm:$0x1]
      %v3947 = vld [vmem:[#allocation2 + $0x44] sm:$0x1]
      %v3948 = vld [vmem:[#allocation2 + $0x48] sm:$0x1]
      %v3949 = vld [vmem:[#allocation2 + $0x4c] sm:$0x1]
      %v3950 = vld [vmem:[#allocation2 + $0x50] sm:$0x1]
      %v3951 = vld [vmem:[#allocation2 + $0x54] sm:$0x1]
      %v3952 = vld [vmem:[#allocation2 + $0x58] sm:$0x1]
      %v3953 = vld [vmem:[#allocation2 + $0x5c] sm:$0x1]
      %v3954 = vld [vmem:[#allocation2 + $0x60] sm:$0x1]
      %v3955 = vld [vmem:[#allocation2 + $0x64] sm:$0x1]
      %v3956 = vld [vmem:[#allocation2 + $0x68] sm:$0x1]
      %v3957 = vld [vmem:[#allocation2 + $0x6c] sm:$0x1]
      %v3958 = vld [vmem:[#allocation2 + $0x70] sm:$0x1]
      %v3959 = vld [vmem:[#allocation2 + $0x74] sm:$0x1]
      %v3960 = vld [vmem:[#allocation2 + $0x78] sm:$0x1]
      %v3961 = vld [vmem:[#allocation2 + $0x7c] sm:$0x1]
      %v3962 = vld [vmem:[#allocation2 + $0x80] sm:$0x1]
      %v3963 = vld [vmem:[#allocation2 + $0x84] sm:$0x1]
      %v3964 = vld [vmem:[#allocation2 + $0x88] sm:$0x1]
      %v3965 = vld [vmem:[#allocation2 + $0x8c] sm:$0x1]
      %v3966 = vld [vmem:[#allocation2 + $0x90] sm:$0x1]
      %v3967 = vld [vmem:[#allocation2 + $0x94] sm:$0x1]
      %v3968 = vld [vmem:[#allocation2 + $0x98] sm:$0x1]
      %v3969 = vld [vmem:[#allocation2 + $0x9c] sm:$0x1]
      %v3970 = vld [vmem:[#allocation2 + $0xa0] sm:$0x1]
      %v3971 = vld [vmem:[#allocation2 + $0xa4] sm:$0x1]
      %v3972 = vld [vmem:[#allocation2 + $0xa8] sm:$0x1]
      %v3973 = vld [vmem:[#allocation2 + $0xac] sm:$0x1]
      %v3974 = vld [vmem:[#allocation2 + $0xb0] sm:$0x1]
      %v3975 = vld [vmem:[#allocation2 + $0xb4] sm:$0x1]
      %v3976 = vld [vmem:[#allocation2 + $0xb8] sm:$0x1]
      %v3977 = vld [vmem:[#allocation2 + $0xbc] sm:$0x1]
      %v3978 = vld [vmem:[#allocation2 + $0xc0] sm:$0x1]
      %v3979 = vld [vmem:[#allocation2 + $0xc4] sm:$0x1]
      %v3980 = vld [vmem:[#allocation2 + $0xc8] sm:$0x1]
      %v3981 = vld [vmem:[#allocation2 + $0xcc] sm:$0x1]
      %v3982 = vld [vmem:[#allocation2 + $0xd0] sm:$0x1]
      %v3983 = vld [vmem:[#allocation2 + $0xd4] sm:$0x1]
      %v3984 = vld [vmem:[#allocation2 + $0xd8] sm:$0x1]
      %v3985 = vld [vmem:[#allocation2 + $0xdc] sm:$0x1]
      %v3986 = vld [vmem:[#allocation2 + $0xe0] sm:$0x1]
      %v3987 = vld [vmem:[#allocation2 + $0xe4] sm:$0x1]
      %v3988 = vld [vmem:[#allocation2 + $0xe8] sm:$0x1]
      %v3989 = vld [vmem:[#allocation2 + $0xec] sm:$0x1]
      %v3990 = vld [vmem:[#allocation2 + $0xf0] sm:$0x1]
      %v3991 = vld [vmem:[#allocation2 + $0xf4] sm:$0x1]
      %v3992 = vld [vmem:[#allocation2 + $0xf8] sm:$0x1]
      %v3993 = vld [vmem:[#allocation2 + $0xfc] sm:$0x1]
      %v3994 = vld [vmem:[%s2] sm:$0xff]
      %v4059 = vrot.slane %v3931, 7
      %vm4060 = vcmask 1041409
      %v4061 = vsel %vm4060, %v4059, %v3930
      %v4062 = vrot.slane %v3932, 6
      %vm4063 = vcmask 1042434
      %v4064 = vsel %vm4063, %v4062, %v4061
      %v4065 = vrot.slane %v3933, 5
      %vm4066 = vcmask 1043459
      %v4067 = vsel %vm4066, %v4065, %v4064
      %v4068 = vrot.slane %v3934, 4
      %vm4069 = vcmask 1044484
      %v4070 = vsel %vm4069, %v4068, %v4067
      %v4071 = vrot.slane %v3935, 3
      %vm4072 = vcmask 1045509
      %v4073 = vsel %vm4072, %v4071, %v4070
      %v4074 = vrot.slane %v3936, 2
      %vm4075 = vcmask 1046534
      %v4076 = vsel %vm4075, %v4074, %v4073
      %v4077 = vrot.slane %v3937, 1
      %vm4078 = vcmask 1047559
      %v4079 = vsel %vm4078, %v4077, %v4076
      %v4080 = vrot.slane %v3939, 7
      %v4081 = vsel %vm4060, %v4080, %v3938
      %v4082 = vrot.slane %v3940, 6
      %v4083 = vsel %vm4063, %v4082, %v4081
      %v4084 = vrot.slane %v3941, 5
      %v4085 = vsel %vm4066, %v4084, %v4083
      %v4086 = vrot.slane %v3942, 4
      %v4087 = vsel %vm4069, %v4086, %v4085
      %v4088 = vrot.slane %v3943, 3
      %v4089 = vsel %vm4072, %v4088, %v4087
      %v4090 = vrot.slane %v3944, 2
      %v4091 = vsel %vm4075, %v4090, %v4089
      %v4092 = vrot.slane %v3945, 1
      %v4093 = vsel %vm4078, %v4092, %v4091
      %v4094 = vrot.slane %v3947, 7
      %v4095 = vsel %vm4060, %v4094, %v3946
      %v4096 = vrot.slane %v3948, 6
      %v4097 = vsel %vm4063, %v4096, %v4095
      %v4098 = vrot.slane %v3949, 5
      %v4099 = vsel %vm4066, %v4098, %v4097
      %v4100 = vrot.slane %v3950, 4
      %v4101 = vsel %vm4069, %v4100, %v4099
      %v4102 = vrot.slane %v3951, 3
      %v4103 = vsel %vm4072, %v4102, %v4101
      %v4104 = vrot.slane %v3952, 2
      %v4105 = vsel %vm4075, %v4104, %v4103
      %v4106 = vrot.slane %v3953, 1
      %v4107 = vsel %vm4078, %v4106, %v4105
      %v4108 = vrot.slane %v3955, 7
      %v4109 = vsel %vm4060, %v4108, %v3954
      %v4110 = vrot.slane %v3956, 6
      %v4111 = vsel %vm4063, %v4110, %v4109
      %v4112 = vrot.slane %v3957, 5
      %v4113 = vsel %vm4066, %v4112, %v4111
      %v4114 = vrot.slane %v3958, 4
      %v4115 = vsel %vm4069, %v4114, %v4113
      %v4116 = vrot.slane %v3959, 3
      %v4117 = vsel %vm4072, %v4116, %v4115
      %v4118 = vrot.slane %v3960, 2
      %v4119 = vsel %vm4075, %v4118, %v4117
      %v4120 = vrot.slane %v3961, 1
      %v4121 = vsel %vm4078, %v4120, %v4119
      %v4122 = vrot.slane %v3963, 7
      %v4123 = vsel %vm4060, %v4122, %v3962
      %v4124 = vrot.slane %v3964, 6
      %v4125 = vsel %vm4063, %v4124, %v4123
      %v4126 = vrot.slane %v3965, 5
      %v4127 = vsel %vm4066, %v4126, %v4125
      %v4128 = vrot.slane %v3966, 4
      %v4129 = vsel %vm4069, %v4128, %v4127
      %v4130 = vrot.slane %v3967, 3
      %v4131 = vsel %vm4072, %v4130, %v4129
      %v4132 = vrot.slane %v3968, 2
      %v4133 = vsel %vm4075, %v4132, %v4131
      %v4134 = vrot.slane %v3969, 1
      %v4135 = vsel %vm4078, %v4134, %v4133
      %v4136 = vrot.slane %v3971, 7
      %v4137 = vsel %vm4060, %v4136, %v3970
      %v4138 = vrot.slane %v3972, 6
      %v4139 = vsel %vm4063, %v4138, %v4137
      %v4140 = vrot.slane %v3973, 5
      %v4141 = vsel %vm4066, %v4140, %v4139
      %v4142 = vrot.slane %v3974, 4
      %v4143 = vsel %vm4069, %v4142, %v4141
      %v4144 = vrot.slane %v3975, 3
      %v4145 = vsel %vm4072, %v4144, %v4143
      %v4146 = vrot.slane %v3976, 2
      %v4147 = vsel %vm4075, %v4146, %v4145
      %v4148 = vrot.slane %v3977, 1
      %v4149 = vsel %vm4078, %v4148, %v4147
      %v4150 = vrot.slane %v3979, 7
      %v4151 = vsel %vm4060, %v4150, %v3978
      %v4152 = vrot.slane %v3980, 6
      %v4153 = vsel %vm4063, %v4152, %v4151
      %v4154 = vrot.slane %v3981, 5
      %v4155 = vsel %vm4066, %v4154, %v4153
      %v4156 = vrot.slane %v3982, 4
      %v4157 = vsel %vm4069, %v4156, %v4155
      %v4158 = vrot.slane %v3983, 3
      %v4159 = vsel %vm4072, %v4158, %v4157
      %v4160 = vrot.slane %v3984, 2
      %v4161 = vsel %vm4075, %v4160, %v4159
      %v4162 = vrot.slane %v3985, 1
      %v4163 = vsel %vm4078, %v4162, %v4161
      %v4164 = vrot.slane %v3987, 7
      %v4165 = vsel %vm4060, %v4164, %v3986
      %v4166 = vrot.slane %v3988, 6
      %v4167 = vsel %vm4063, %v4166, %v4165
      %v4168 = vrot.slane %v3989, 5
      %v4169 = vsel %vm4066, %v4168, %v4167
      %v4170 = vrot.slane %v3990, 4
      %v4171 = vsel %vm4069, %v4170, %v4169
      %v4172 = vrot.slane %v3991, 3
      %v4173 = vsel %vm4072, %v4172, %v4171
      %v4174 = vrot.slane %v3992, 2
      %v4175 = vsel %vm4075, %v4174, %v4173
      %v4176 = vrot.slane %v3993, 1
      %v4177 = vsel %vm4078, %v4176, %v4175
      %v4178 = vsel %vm854, %v4079, 0
      %v4180 = vsel %vm854, %v4093, 0
      %v4182 = vsel %vm854, %v4107, 0
      %v4184 = vsel %vm854, %v4121, 0
      %v4186 = vsel %vm854, %v4135, 0
      %v4188 = vsel %vm854, %v4149, 0
      %v4190 = vsel %vm854, %v4163, 0
      %v4192 = vsel %vm854, %v4177, 0
      %4194 = vmatprep.subr.mxu0 0.0
      %4195 = vmatpush1.msra.mxu0 %v3994
      %4196 = vmatprep.subr.mxu0 0.0
      %4197 = vmatpush1.msra.mxu0 0.0
      %4198 = vmatprep.subr.mxu0 0.0
      %4199 = vmatpush1.msra.mxu0 0.0
      %4200 = vmatprep.subr.mxu0 0.0
      %4201 = vmatpush1.msra.mxu0 0.0
      %4202 = vmatprep.subr.mxu0 0.0
      %4203 = vmatpush1.msra.mxu0 0.0
      %4204 = vmatprep.subr.mxu0 0.0
      %4205 = vmatpush1.msra.mxu0 0.0
      %4206 = vmatprep.subr.mxu0 0.0
      %4207 = vmatpush1.msra.mxu0 0.0
      %4208 = vmatprep.subr.mxu0 0.0
      %4209 = vmatpush1.msra.mxu0 0.0
      %4210 = vmatprep.subr.mxu0 0.0
      %4211 = vmatpush1.msra.mxu0 0.0
      %4212 = vmatprep.subr.mxu0 0.0
      %4213 = vmatpush1.msra.mxu0 0.0
      %4214 = vmatprep.subr.mxu0 0.0
      %4215 = vmatpush1.msra.mxu0 0.0
      %4216 = vmatprep.subr.mxu0 0.0
      %4217 = vmatpush1.msra.mxu0 0.0
      %4218 = vmatprep.subr.mxu0 0.0
      %4219 = vmatpush1.msra.mxu0 0.0
      %4220 = vmatprep.subr.mxu0 0.0
      %4221 = vmatpush1.msra.mxu0 0.0
      %4222 = vmatprep.subr.mxu0 0.0
      %4223 = vmatpush1.msra.mxu0 0.0
      %4224 = vmatprep.subr.mxu0 0.0
      %4225 = vmatpush1.msra.mxu0 0.0
      %4226 = vmatprep.subr.mxu0 0.0
      %4227 = vmatpush1.msra.mxu0 0.0
      %4228 = vmatprep.subr.mxu0 0.0
      %4229 = vmatpush1.msra.mxu0 0.0
      %4230 = vmatprep.subr.mxu0 0.0
      %4231 = vmatpush1.msra.mxu0 0.0
      %4232 = vmatprep.subr.mxu0 0.0
      %4233 = vmatpush1.msra.mxu0 0.0
      %4234 = vmatprep.subr.mxu0 0.0
      %4235 = vmatpush1.msra.mxu0 0.0
      %4236 = vmatprep.subr.mxu0 0.0
      %4237 = vmatpush1.msra.mxu0 0.0
      %4238 = vmatprep.subr.mxu0 0.0
      %4239 = vmatpush1.msra.mxu0 0.0
      %4240 = vmatprep.subr.mxu0 0.0
      %4241 = vmatpush1.msra.mxu0 0.0
      %4242 = vmatprep.subr.mxu0 0.0
      %4243 = vmatpush1.msra.mxu0 0.0
      %4244 = vmatprep.subr.mxu0 0.0
      %4245 = vmatpush1.msra.mxu0 0.0
      %4246 = vmatprep.subr.mxu0 0.0
      %4247 = vmatpush1.msra.mxu0 0.0
      %4248 = vmatprep.subr.mxu0 0.0
      %4249 = vmatpush1.msra.mxu0 0.0
      %4250 = vmatprep.subr.mxu0 0.0
      %4251 = vmatpush1.msra.mxu0 0.0
      %4252 = vmatprep.subr.mxu0 0.0
      %4253 = vmatpush1.msra.mxu0 0.0
      %4254 = vmatprep.subr.mxu0 0.0
      %4255 = vmatpush1.msra.mxu0 0.0
      %4256 = vmatprep.subr.mxu0 0.0
      %4257 = vmatpush1.msra.mxu0 0.0
      %4258 = vmatprep.mubr.f32.mxu0 0.0
      %4259 = vmatmul.mubr.f32.gmra.mrb[0].mxu0 %v4178
      %v4260 = vpop.f32.mrb[0].mxu0
      %v4261 = vadd.f32 0.0, %v4260
      %v4262 = vpop.f32.mrb[0].mxu0
      %4263 = vmatprep.mubr.f32.mxu0 0.0
      %4264 = vmatmul.mubr.f32.gmra.mrb[0].mxu0 %v4180
      %v4265 = vpop.f32.mrb[0].mxu0
      %v4266 = vadd.f32 0.0, %v4265
      %v4267 = vpop.f32.mrb[0].mxu0
      %4268 = vmatprep.mubr.f32.mxu0 0.0
      %4269 = vmatmul.mubr.f32.gmra.mrb[0].mxu0 %v4182
      %v4270 = vpop.f32.mrb[0].mxu0
      %v4271 = vadd.f32 0.0, %v4270
      %v4272 = vpop.f32.mrb[0].mxu0
      %4273 = vmatprep.mubr.f32.mxu0 0.0
      %4274 = vmatmul.mubr.f32.gmra.mrb[0].mxu0 %v4184
      %v4275 = vpop.f32.mrb[0].mxu0
      %v4276 = vadd.f32 0.0, %v4275
      %v4277 = vpop.f32.mrb[0].mxu0
      %4278 = vmatprep.mubr.f32.mxu0 0.0
      %4279 = vmatmul.mubr.f32.gmra.mrb[0].mxu0 %v4186
      %v4280 = vpop.f32.mrb[0].mxu0
      %v4281 = vadd.f32 0.0, %v4280
      %v4282 = vpop.f32.mrb[0].mxu0
      %4283 = vmatprep.mubr.f32.mxu0 0.0
      %4284 = vmatmul.mubr.f32.gmra.mrb[0].mxu0 %v4188
      %v4285 = vpop.f32.mrb[0].mxu0
      %v4286 = vadd.f32 0.0, %v4285
      %v4287 = vpop.f32.mrb[0].mxu0
      %4288 = vmatprep.mubr.f32.mxu0 0.0
      %4289 = vmatmul.mubr.f32.gmra.mrb[0].mxu0 %v4190
      %v4290 = vpop.f32.mrb[0].mxu0
      %v4291 = vadd.f32 0.0, %v4290
      %v4292 = vpop.f32.mrb[0].mxu0
      %4293 = vmatprep.mubr.f32.mxu0 0.0
      %4294 = vmatmul.mubr.f32.gmra.mrb[0].mxu0 %v4192
      %v4295 = vpop.f32.mrb[0].mxu0
      %v4296 = vadd.f32 0.0, %v4295
      %v4297 = vpop.f32.mrb[0].mxu0
      %4298 = vdwg.mxu0
      %v4300 = vlaneseq
      %v4301 = vshrl.u32 %v4300, 7
      %v4302 = vsub.s32 0, %v4301
      %v4303 = vrot.slane %v3929, %v4302
      %v4305 = vadd.f32 %v4303, %v4261
      %v4306 = vadd.f32 %v4303, %v4266
      %v4307 = vadd.f32 %v4303, %v4271
      %v4308 = vadd.f32 %v4303, %v4276
      %v4309 = vadd.f32 %v4303, %v4281
      %v4310 = vadd.f32 %v4303, %v4286
      %v4311 = vadd.f32 %v4303, %v4291
      %v4312 = vadd.f32 %v4303, %v4296
      %v4313 = vld [vmem:[#allocation2 + $0x1] sm:$0x1]
      %v4314 = vld [vmem:[#allocation2 + $0x5] sm:$0x1]
      %v4315 = vld [vmem:[#allocation2 + $0x9] sm:$0x1]
      %v4316 = vld [vmem:[#allocation2 + $0xd] sm:$0x1]
      %v4317 = vld [vmem:[#allocation2 + $0x11] sm:$0x1]
      %v4318 = vld [vmem:[#allocation2 + $0x15] sm:$0x1]
      %v4319 = vld [vmem:[#allocation2 + $0x19] sm:$0x1]
      %v4320 = vld [vmem:[#allocation2 + $0x1d] sm:$0x1]
      %v4321 = vld [vmem:[#allocation2 + $0x21] sm:$0x1]
      %v4322 = vld [vmem:[#allocation2 + $0x25] sm:$0x1]
      %v4323 = vld [vmem:[#allocation2 + $0x29] sm:$0x1]
      %v4324 = vld [vmem:[#allocation2 + $0x2d] sm:$0x1]
      %v4325 = vld [vmem:[#allocation2 + $0x31] sm:$0x1]
      %v4326 = vld [vmem:[#allocation2 + $0x35] sm:$0x1]
      %v4327 = vld [vmem:[#allocation2 + $0x39] sm:$0x1]
      %v4328 = vld [vmem:[#allocation2 + $0x3d] sm:$0x1]
      %v4329 = vld [vmem:[#allocation2 + $0x41] sm:$0x1]
      %v4330 = vld [vmem:[#allocation2 + $0x45] sm:$0x1]
      %v4331 = vld [vmem:[#allocation2 + $0x49] sm:$0x1]
      %v4332 = vld [vmem:[#allocation2 + $0x4d] sm:$0x1]
      %v4333 = vld [vmem:[#allocation2 + $0x51] sm:$0x1]
      %v4334 = vld [vmem:[#allocation2 + $0x55] sm:$0x1]
      %v4335 = vld [vmem:[#allocation2 + $0x59] sm:$0x1]
      %v4336 = vld [vmem:[#allocation2 + $0x5d] sm:$0x1]
      %v4337 = vld [vmem:[#allocation2 + $0x61] sm:$0x1]
      %v4338 = vld [vmem:[#allocation2 + $0x65] sm:$0x1]
      %v4339 = vld [vmem:[#allocation2 + $0x69] sm:$0x1]
      %v4340 = vld [vmem:[#allocation2 + $0x6d] sm:$0x1]
      %v4341 = vld [vmem:[#allocation2 + $0x71] sm:$0x1]
      %v4342 = vld [vmem:[#allocation2 + $0x75] sm:$0x1]
      %v4343 = vld [vmem:[#allocation2 + $0x79] sm:$0x1]
      %v4344 = vld [vmem:[#allocation2 + $0x7d] sm:$0x1]
      %v4345 = vld [vmem:[#allocation2 + $0x81] sm:$0x1]
      %v4346 = vld [vmem:[#allocation2 + $0x85] sm:$0x1]
      %v4347 = vld [vmem:[#allocation2 + $0x89] sm:$0x1]
      %v4348 = vld [vmem:[#allocation2 + $0x8d] sm:$0x1]
      %v4349 = vld [vmem:[#allocation2 + $0x91] sm:$0x1]
      %v4350 = vld [vmem:[#allocation2 + $0x95] sm:$0x1]
      %v4351 = vld [vmem:[#allocation2 + $0x99] sm:$0x1]
      %v4352 = vld [vmem:[#allocation2 + $0x9d] sm:$0x1]
      %v4353 = vld [vmem:[#allocation2 + $0xa1] sm:$0x1]
      %v4354 = vld [vmem:[#allocation2 + $0xa5] sm:$0x1]
      %v4355 = vld [vmem:[#allocation2 + $0xa9] sm:$0x1]
      %v4356 = vld [vmem:[#allocation2 + $0xad] sm:$0x1]
      %v4357 = vld [vmem:[#allocation2 + $0xb1] sm:$0x1]
      %v4358 = vld [vmem:[#allocation2 + $0xb5] sm:$0x1]
      %v4359 = vld [vmem:[#allocation2 + $0xb9] sm:$0x1]
      %v4360 = vld [vmem:[#allocation2 + $0xbd] sm:$0x1]
      %v4361 = vld [vmem:[#allocation2 + $0xc1] sm:$0x1]
      %v4362 = vld [vmem:[#allocation2 + $0xc5] sm:$0x1]
      %v4363 = vld [vmem:[#allocation2 + $0xc9] sm:$0x1]
      %v4364 = vld [vmem:[#allocation2 + $0xcd] sm:$0x1]
      %v4365 = vld [vmem:[#allocation2 + $0xd1] sm:$0x1]
      %v4366 = vld [vmem:[#allocation2 + $0xd5] sm:$0x1]
      %v4367 = vld [vmem:[#allocation2 + $0xd9] sm:$0x1]
      %v4368 = vld [vmem:[#allocation2 + $0xdd] sm:$0x1]
      %v4369 = vld [vmem:[#allocation2 + $0xe1] sm:$0x1]
      %v4370 = vld [vmem:[#allocation2 + $0xe5] sm:$0x1]
      %v4371 = vld [vmem:[#allocation2 + $0xe9] sm:$0x1]
      %v4372 = vld [vmem:[#allocation2 + $0xed] sm:$0x1]
      %v4373 = vld [vmem:[#allocation2 + $0xf1] sm:$0x1]
      %v4374 = vld [vmem:[#allocation2 + $0xf5] sm:$0x1]
      %v4375 = vld [vmem:[#allocation2 + $0xf9] sm:$0x1]
      %v4376 = vld [vmem:[#allocation2 + $0xfd] sm:$0x1]
      %s4377 = scalar_lea.vmem %s2, 8
      %v4378 = vld [vmem:[%s4377] sm:$0xff]
      %v4443 = vrot.slane %v4314, 7
      %v4444 = vsel %vm4060, %v4443, %v4313
      %v4445 = vrot.slane %v4315, 6
      %v4446 = vsel %vm4063, %v4445, %v4444
      %v4447 = vrot.slane %v4316, 5
      %v4448 = vsel %vm4066, %v4447, %v4446
      %v4449 = vrot.slane %v4317, 4
      %v4450 = vsel %vm4069, %v4449, %v4448
      %v4451 = vrot.slane %v4318, 3
      %v4452 = vsel %vm4072, %v4451, %v4450
      %v4453 = vrot.slane %v4319, 2
      %v4454 = vsel %vm4075, %v4453, %v4452
      %v4455 = vrot.slane %v4320, 1
      %v4456 = vsel %vm4078, %v4455, %v4454
      %v4457 = vrot.slane %v4322, 7
      %v4458 = vsel %vm4060, %v4457, %v4321
      %v4459 = vrot.slane %v4323, 6
      %v4460 = vsel %vm4063, %v4459, %v4458
      %v4461 = vrot.slane %v4324, 5
      %v4462 = vsel %vm4066, %v4461, %v4460
      %v4463 = vrot.slane %v4325, 4
      %v4464 = vsel %vm4069, %v4463, %v4462
      %v4465 = vrot.slane %v4326, 3
      %v4466 = vsel %vm4072, %v4465, %v4464
      %v4467 = vrot.slane %v4327, 2
      %v4468 = vsel %vm4075, %v4467, %v4466
      %v4469 = vrot.slane %v4328, 1
      %v4470 = vsel %vm4078, %v4469, %v4468
      %v4471 = vrot.slane %v4330, 7
      %v4472 = vsel %vm4060, %v4471, %v4329
      %v4473 = vrot.slane %v4331, 6
      %v4474 = vsel %vm4063, %v4473, %v4472
      %v4475 = vrot.slane %v4332, 5
      %v4476 = vsel %vm4066, %v4475, %v4474
      %v4477 = vrot.slane %v4333, 4
      %v4478 = vsel %vm4069, %v4477, %v4476
      %v4479 = vrot.slane %v4334, 3
      %v4480 = vsel %vm4072, %v4479, %v4478
      %v4481 = vrot.slane %v4335, 2
      %v4482 = vsel %vm4075, %v4481, %v4480
      %v4483 = vrot.slane %v4336, 1
      %v4484 = vsel %vm4078, %v4483, %v4482
      %v4485 = vrot.slane %v4338, 7
      %v4486 = vsel %vm4060, %v4485, %v4337
      %v4487 = vrot.slane %v4339, 6
      %v4488 = vsel %vm4063, %v4487, %v4486
      %v4489 = vrot.slane %v4340, 5
      %v4490 = vsel %vm4066, %v4489, %v4488
      %v4491 = vrot.slane %v4341, 4
      %v4492 = vsel %vm4069, %v4491, %v4490
      %v4493 = vrot.slane %v4342, 3
      %v4494 = vsel %vm4072, %v4493, %v4492
      %v4495 = vrot.slane %v4343, 2
      %v4496 = vsel %vm4075, %v4495, %v4494
      %v4497 = vrot.slane %v4344, 1
      %v4498 = vsel %vm4078, %v4497, %v4496
      %v4499 = vrot.slane %v4346, 7
      %v4500 = vsel %vm4060, %v4499, %v4345
      %v4501 = vrot.slane %v4347, 6
      %v4502 = vsel %vm4063, %v4501, %v4500
      %v4503 = vrot.slane %v4348, 5
      %v4504 = vsel %vm4066, %v4503, %v4502
      %v4505 = vrot.slane %v4349, 4
      %v4506 = vsel %vm4069, %v4505, %v4504
      %v4507 = vrot.slane %v4350, 3
      %v4508 = vsel %vm4072, %v4507, %v4506
      %v4509 = vrot.slane %v4351, 2
      %v4510 = vsel %vm4075, %v4509, %v4508
      %v4511 = vrot.slane %v4352, 1
      %v4512 = vsel %vm4078, %v4511, %v4510
      %v4513 = vrot.slane %v4354, 7
      %v4514 = vsel %vm4060, %v4513, %v4353
      %v4515 = vrot.slane %v4355, 6
      %v4516 = vsel %vm4063, %v4515, %v4514
      %v4517 = vrot.slane %v4356, 5
      %v4518 = vsel %vm4066, %v4517, %v4516
      %v4519 = vrot.slane %v4357, 4
      %v4520 = vsel %vm4069, %v4519, %v4518
      %v4521 = vrot.slane %v4358, 3
      %v4522 = vsel %vm4072, %v4521, %v4520
      %v4523 = vrot.slane %v4359, 2
      %v4524 = vsel %vm4075, %v4523, %v4522
      %v4525 = vrot.slane %v4360, 1
      %v4526 = vsel %vm4078, %v4525, %v4524
      %v4527 = vrot.slane %v4362, 7
      %v4528 = vsel %vm4060, %v4527, %v4361
      %v4529 = vrot.slane %v4363, 6
      %v4530 = vsel %vm4063, %v4529, %v4528
      %v4531 = vrot.slane %v4364, 5
      %v4532 = vsel %vm4066, %v4531, %v4530
      %v4533 = vrot.slane %v4365, 4
      %v4534 = vsel %vm4069, %v4533, %v4532
      %v4535 = vrot.slane %v4366, 3
      %v4536 = vsel %vm4072, %v4535, %v4534
      %v4537 = vrot.slane %v4367, 2
      %v4538 = vsel %vm4075, %v4537, %v4536
      %v4539 = vrot.slane %v4368, 1
      %v4540 = vsel %vm4078, %v4539, %v4538
      %v4541 = vrot.slane %v4370, 7
      %v4542 = vsel %vm4060, %v4541, %v4369
      %v4543 = vrot.slane %v4371, 6
      %v4544 = vsel %vm4063, %v4543, %v4542
      %v4545 = vrot.slane %v4372, 5
      %v4546 = vsel %vm4066, %v4545, %v4544
      %v4547 = vrot.slane %v4373, 4
      %v4548 = vsel %vm4069, %v4547, %v4546
      %v4549 = vrot.slane %v4374, 3
      %v4550 = vsel %vm4072, %v4549, %v4548
      %v4551 = vrot.slane %v4375, 2
      %v4552 = vsel %vm4075, %v4551, %v4550
      %v4553 = vrot.slane %v4376, 1
      %v4554 = vsel %vm4078, %v4553, %v4552
      %v4555 = vsel %vm854, %v4456, 0
      %v4557 = vsel %vm854, %v4470, 0
      %v4559 = vsel %vm854, %v4484, 0
      %v4561 = vsel %vm854, %v4498, 0
      %v4563 = vsel %vm854, %v4512, 0
      %v4565 = vsel %vm854, %v4526, 0
      %v4567 = vsel %vm854, %v4540, 0
      %v4569 = vsel %vm854, %v4554, 0
      %4571 = vmatprep.subr.mxu0 0.0
      %4572 = vmatpush1.msra.mxu0 %v4378
      %4573 = vmatprep.subr.mxu0 0.0
      %4574 = vmatpush1.msra.mxu0 0.0
      %4575 = vmatprep.subr.mxu0 0.0
      %4576 = vmatpush1.msra.mxu0 0.0
      %4577 = vmatprep.subr.mxu0 0.0
      %4578 = vmatpush1.msra.mxu0 0.0
      %4579 = vmatprep.subr.mxu0 0.0
      %4580 = vmatpush1.msra.mxu0 0.0
      %4581 = vmatprep.subr.mxu0 0.0
      %4582 = vmatpush1.msra.mxu0 0.0
      %4583 = vmatprep.subr.mxu0 0.0
      %4584 = vmatpush1.msra.mxu0 0.0
      %4585 = vmatprep.subr.mxu0 0.0
      %4586 = vmatpush1.msra.mxu0 0.0
      %4587 = vmatprep.subr.mxu0 0.0
      %4588 = vmatpush1.msra.mxu0 0.0
      %4589 = vmatprep.subr.mxu0 0.0
      %4590 = vmatpush1.msra.mxu0 0.0
      %4591 = vmatprep.subr.mxu0 0.0
      %4592 = vmatpush1.msra.mxu0 0.0
      %4593 = vmatprep.subr.mxu0 0.0
      %4594 = vmatpush1.msra.mxu0 0.0
      %4595 = vmatprep.subr.mxu0 0.0
      %4596 = vmatpush1.msra.mxu0 0.0
      %4597 = vmatprep.subr.mxu0 0.0
      %4598 = vmatpush1.msra.mxu0 0.0
      %4599 = vmatprep.subr.mxu0 0.0
      %4600 = vmatpush1.msra.mxu0 0.0
      %4601 = vmatprep.subr.mxu0 0.0
      %4602 = vmatpush1.msra.mxu0 0.0
      %4603 = vmatprep.subr.mxu0 0.0
      %4604 = vmatpush1.msra.mxu0 0.0
      %4605 = vmatprep.subr.mxu0 0.0
      %4606 = vmatpush1.msra.mxu0 0.0
      %4607 = vmatprep.subr.mxu0 0.0
      %4608 = vmatpush1.msra.mxu0 0.0
      %4609 = vmatprep.subr.mxu0 0.0
      %4610 = vmatpush1.msra.mxu0 0.0
      %4611 = vmatprep.subr.mxu0 0.0
      %4612 = vmatpush1.msra.mxu0 0.0
      %4613 = vmatprep.subr.mxu0 0.0
      %4614 = vmatpush1.msra.mxu0 0.0
      %4615 = vmatprep.subr.mxu0 0.0
      %4616 = vmatpush1.msra.mxu0 0.0
      %4617 = vmatprep.subr.mxu0 0.0
      %4618 = vmatpush1.msra.mxu0 0.0
      %4619 = vmatprep.subr.mxu0 0.0
      %4620 = vmatpush1.msra.mxu0 0.0
      %4621 = vmatprep.subr.mxu0 0.0
      %4622 = vmatpush1.msra.mxu0 0.0
      %4623 = vmatprep.subr.mxu0 0.0
      %4624 = vmatpush1.msra.mxu0 0.0
      %4625 = vmatprep.subr.mxu0 0.0
      %4626 = vmatpush1.msra.mxu0 0.0
      %4627 = vmatprep.subr.mxu0 0.0
      %4628 = vmatpush1.msra.mxu0 0.0
      %4629 = vmatprep.subr.mxu0 0.0
      %4630 = vmatpush1.msra.mxu0 0.0
      %4631 = vmatprep.subr.mxu0 0.0
      %4632 = vmatpush1.msra.mxu0 0.0
      %4633 = vmatprep.subr.mxu0 0.0
      %4634 = vmatpush1.msra.mxu0 0.0
      %4635 = vmatprep.mubr.f32.mxu0 0.0
      %4636 = vmatmul.mubr.f32.gmra.mrb[0].mxu0 %v4555
      %v4637 = vpop.f32.mrb[0].mxu0
      %v4638 = vadd.f32 0.0, %v4637
      %v4639 = vpop.f32.mrb[0].mxu0
      %4640 = vmatprep.mubr.f32.mxu0 0.0
      %4641 = vmatmul.mubr.f32.gmra.mrb[0].mxu0 %v4557
      %v4642 = vpop.f32.mrb[0].mxu0
      %v4643 = vadd.f32 0.0, %v4642
      %v4644 = vpop.f32.mrb[0].mxu0
      %4645 = vmatprep.mubr.f32.mxu0 0.0
      %4646 = vmatmul.mubr.f32.gmra.mrb[0].mxu0 %v4559
      %v4647 = vpop.f32.mrb[0].mxu0
      %v4648 = vadd.f32 0.0, %v4647
      %v4649 = vpop.f32.mrb[0].mxu0
      %4650 = vmatprep.mubr.f32.mxu0 0.0
      %4651 = vmatmul.mubr.f32.gmra.mrb[0].mxu0 %v4561
      %v4652 = vpop.f32.mrb[0].mxu0
      %v4653 = vadd.f32 0.0, %v4652
      %v4654 = vpop.f32.mrb[0].mxu0
      %4655 = vmatprep.mubr.f32.mxu0 0.0
      %4656 = vmatmul.mubr.f32.gmra.mrb[0].mxu0 %v4563
      %v4657 = vpop.f32.mrb[0].mxu0
      %v4658 = vadd.f32 0.0, %v4657
      %v4659 = vpop.f32.mrb[0].mxu0
      %4660 = vmatprep.mubr.f32.mxu0 0.0
      %4661 = vmatmul.mubr.f32.gmra.mrb[0].mxu0 %v4565
      %v4662 = vpop.f32.mrb[0].mxu0
      %v4663 = vadd.f32 0.0, %v4662
      %v4664 = vpop.f32.mrb[0].mxu0
      %4665 = vmatprep.mubr.f32.mxu0 0.0
      %4666 = vmatmul.mubr.f32.gmra.mrb[0].mxu0 %v4567
      %v4667 = vpop.f32.mrb[0].mxu0
      %v4668 = vadd.f32 0.0, %v4667
      %v4669 = vpop.f32.mrb[0].mxu0
      %4670 = vmatprep.mubr.f32.mxu0 0.0
      %4671 = vmatmul.mubr.f32.gmra.mrb[0].mxu0 %v4569
      %v4672 = vpop.f32.mrb[0].mxu0
      %v4673 = vadd.f32 0.0, %v4672
      %v4674 = vpop.f32.mrb[0].mxu0
      %4675 = vdwg.mxu0
      %v4676 = vadd.f32 %v4305, %v4638
      %v4677 = vadd.f32 %v4306, %v4643
      %v4678 = vadd.f32 %v4307, %v4648
      %v4679 = vadd.f32 %v4308, %v4653
      %v4680 = vadd.f32 %v4309, %v4658
      %v4681 = vadd.f32 %v4310, %v4663
      %v4682 = vadd.f32 %v4311, %v4668
      %v4683 = vadd.f32 %v4312, %v4673
      %v4684 = vld [vmem:[#allocation2 + $0x2] sm:$0x1]
      %v4685 = vld [vmem:[#allocation2 + $0x6] sm:$0x1]
      %v4686 = vld [vmem:[#allocation2 + $0xa] sm:$0x1]
      %v4687 = vld [vmem:[#allocation2 + $0xe] sm:$0x1]
      %v4688 = vld [vmem:[#allocation2 + $0x12] sm:$0x1]
      %v4689 = vld [vmem:[#allocation2 + $0x16] sm:$0x1]
      %v4690 = vld [vmem:[#allocation2 + $0x1a] sm:$0x1]
      %v4691 = vld [vmem:[#allocation2 + $0x1e] sm:$0x1]
      %v4692 = vld [vmem:[#allocation2 + $0x22] sm:$0x1]
      %v4693 = vld [vmem:[#allocation2 + $0x26] sm:$0x1]
      %v4694 = vld [vmem:[#allocation2 + $0x2a] sm:$0x1]
      %v4695 = vld [vmem:[#allocation2 + $0x2e] sm:$0x1]
      %v4696 = vld [vmem:[#allocation2 + $0x32] sm:$0x1]
      %v4697 = vld [vmem:[#allocation2 + $0x36] sm:$0x1]
      %v4698 = vld [vmem:[#allocation2 + $0x3a] sm:$0x1]
      %v4699 = vld [vmem:[#allocation2 + $0x3e] sm:$0x1]
      %v4700 = vld [vmem:[#allocation2 + $0x42] sm:$0x1]
      %v4701 = vld [vmem:[#allocation2 + $0x46] sm:$0x1]
      %v4702 = vld [vmem:[#allocation2 + $0x4a] sm:$0x1]
      %v4703 = vld [vmem:[#allocation2 + $0x4e] sm:$0x1]
      %v4704 = vld [vmem:[#allocation2 + $0x52] sm:$0x1]
      %v4705 = vld [vmem:[#allocation2 + $0x56] sm:$0x1]
      %v4706 = vld [vmem:[#allocation2 + $0x5a] sm:$0x1]
      %v4707 = vld [vmem:[#allocation2 + $0x5e] sm:$0x1]
      %v4708 = vld [vmem:[#allocation2 + $0x62] sm:$0x1]
      %v4709 = vld [vmem:[#allocation2 + $0x66] sm:$0x1]
      %v4710 = vld [vmem:[#allocation2 + $0x6a] sm:$0x1]
      %v4711 = vld [vmem:[#allocation2 + $0x6e] sm:$0x1]
      %v4712 = vld [vmem:[#allocation2 + $0x72] sm:$0x1]
      %v4713 = vld [vmem:[#allocation2 + $0x76] sm:$0x1]
      %v4714 = vld [vmem:[#allocation2 + $0x7a] sm:$0x1]
      %v4715 = vld [vmem:[#allocation2 + $0x7e] sm:$0x1]
      %v4716 = vld [vmem:[#allocation2 + $0x82] sm:$0x1]
      %v4717 = vld [vmem:[#allocation2 + $0x86] sm:$0x1]
      %v4718 = vld [vmem:[#allocation2 + $0x8a] sm:$0x1]
      %v4719 = vld [vmem:[#allocation2 + $0x8e] sm:$0x1]
      %v4720 = vld [vmem:[#allocation2 + $0x92] sm:$0x1]
      %v4721 = vld [vmem:[#allocation2 + $0x96] sm:$0x1]
      %v4722 = vld [vmem:[#allocation2 + $0x9a] sm:$0x1]
      %v4723 = vld [vmem:[#allocation2 + $0x9e] sm:$0x1]
      %v4724 = vld [vmem:[#allocation2 + $0xa2] sm:$0x1]
      %v4725 = vld [vmem:[#allocation2 + $0xa6] sm:$0x1]
      %v4726 = vld [vmem:[#allocation2 + $0xaa] sm:$0x1]
      %v4727 = vld [vmem:[#allocation2 + $0xae] sm:$0x1]
      %v4728 = vld [vmem:[#allocation2 + $0xb2] sm:$0x1]
      %v4729 = vld [vmem:[#allocation2 + $0xb6] sm:$0x1]
      %v4730 = vld [vmem:[#allocation2 + $0xba] sm:$0x1]
      %v4731 = vld [vmem:[#allocation2 + $0xbe] sm:$0x1]
      %v4732 = vld [vmem:[#allocation2 + $0xc2] sm:$0x1]
      %v4733 = vld [vmem:[#allocation2 + $0xc6] sm:$0x1]
      %v4734 = vld [vmem:[#allocation2 + $0xca] sm:$0x1]
      %v4735 = vld [vmem:[#allocation2 + $0xce] sm:$0x1]
      %v4736 = vld [vmem:[#allocation2 + $0xd2] sm:$0x1]
      %v4737 = vld [vmem:[#allocation2 + $0xd6] sm:$0x1]
      %v4738 = vld [vmem:[#allocation2 + $0xda] sm:$0x1]
      %v4739 = vld [vmem:[#allocation2 + $0xde] sm:$0x1]
      %v4740 = vld [vmem:[#allocation2 + $0xe2] sm:$0x1]
      %v4741 = vld [vmem:[#allocation2 + $0xe6] sm:$0x1]
      %v4742 = vld [vmem:[#allocation2 + $0xea] sm:$0x1]
      %v4743 = vld [vmem:[#allocation2 + $0xee] sm:$0x1]
      %v4744 = vld [vmem:[#allocation2 + $0xf2] sm:$0x1]
      %v4745 = vld [vmem:[#allocation2 + $0xf6] sm:$0x1]
      %v4746 = vld [vmem:[#allocation2 + $0xfa] sm:$0x1]
      %v4747 = vld [vmem:[#allocation2 + $0xfe] sm:$0x1]
      %s4748 = scalar_lea.vmem %s2, 16
      %v4749 = vld [vmem:[%s4748] sm:$0xff]
      %v4814 = vrot.slane %v4685, 7
      %v4815 = vsel %vm4060, %v4814, %v4684
      %v4816 = vrot.slane %v4686, 6
      %v4817 = vsel %vm4063, %v4816, %v4815
      %v4818 = vrot.slane %v4687, 5
      %v4819 = vsel %vm4066, %v4818, %v4817
      %v4820 = vrot.slane %v4688, 4
      %v4821 = vsel %vm4069, %v4820, %v4819
      %v4822 = vrot.slane %v4689, 3
      %v4823 = vsel %vm4072, %v4822, %v4821
      %v4824 = vrot.slane %v4690, 2
      %v4825 = vsel %vm4075, %v4824, %v4823
      %v4826 = vrot.slane %v4691, 1
      %v4827 = vsel %vm4078, %v4826, %v4825
      %v4828 = vrot.slane %v4693, 7
      %v4829 = vsel %vm4060, %v4828, %v4692
      %v4830 = vrot.slane %v4694, 6
      %v4831 = vsel %vm4063, %v4830, %v4829
      %v4832 = vrot.slane %v4695, 5
      %v4833 = vsel %vm4066, %v4832, %v4831
      %v4834 = vrot.slane %v4696, 4
      %v4835 = vsel %vm4069, %v4834, %v4833
      %v4836 = vrot.slane %v4697, 3
      %v4837 = vsel %vm4072, %v4836, %v4835
      %v4838 = vrot.slane %v4698, 2
      %v4839 = vsel %vm4075, %v4838, %v4837
      %v4840 = vrot.slane %v4699, 1
      %v4841 = vsel %vm4078, %v4840, %v4839
      %v4842 = vrot.slane %v4701, 7
      %v4843 = vsel %vm4060, %v4842, %v4700
      %v4844 = vrot.slane %v4702, 6
      %v4845 = vsel %vm4063, %v4844, %v4843
      %v4846 = vrot.slane %v4703, 5
      %v4847 = vsel %vm4066, %v4846, %v4845
      %v4848 = vrot.slane %v4704, 4
      %v4849 = vsel %vm4069, %v4848, %v4847
      %v4850 = vrot.slane %v4705, 3
      %v4851 = vsel %vm4072, %v4850, %v4849
      %v4852 = vrot.slane %v4706, 2
      %v4853 = vsel %vm4075, %v4852, %v4851
      %v4854 = vrot.slane %v4707, 1
      %v4855 = vsel %vm4078, %v4854, %v4853
      %v4856 = vrot.slane %v4709, 7
      %v4857 = vsel %vm4060, %v4856, %v4708
      %v4858 = vrot.slane %v4710, 6
      %v4859 = vsel %vm4063, %v4858, %v4857
      %v4860 = vrot.slane %v4711, 5
      %v4861 = vsel %vm4066, %v4860, %v4859
      %v4862 = vrot.slane %v4712, 4
      %v4863 = vsel %vm4069, %v4862, %v4861
      %v4864 = vrot.slane %v4713, 3
      %v4865 = vsel %vm4072, %v4864, %v4863
      %v4866 = vrot.slane %v4714, 2
      %v4867 = vsel %vm4075, %v4866, %v4865
      %v4868 = vrot.slane %v4715, 1
      %v4869 = vsel %vm4078, %v4868, %v4867
      %v4870 = vrot.slane %v4717, 7
      %v4871 = vsel %vm4060, %v4870, %v4716
      %v4872 = vrot.slane %v4718, 6
      %v4873 = vsel %vm4063, %v4872, %v4871
      %v4874 = vrot.slane %v4719, 5
      %v4875 = vsel %vm4066, %v4874, %v4873
      %v4876 = vrot.slane %v4720, 4
      %v4877 = vsel %vm4069, %v4876, %v4875
      %v4878 = vrot.slane %v4721, 3
      %v4879 = vsel %vm4072, %v4878, %v4877
      %v4880 = vrot.slane %v4722, 2
      %v4881 = vsel %vm4075, %v4880, %v4879
      %v4882 = vrot.slane %v4723, 1
      %v4883 = vsel %vm4078, %v4882, %v4881
      %v4884 = vrot.slane %v4725, 7
      %v4885 = vsel %vm4060, %v4884, %v4724
      %v4886 = vrot.slane %v4726, 6
      %v4887 = vsel %vm4063, %v4886, %v4885
      %v4888 = vrot.slane %v4727, 5
      %v4889 = vsel %vm4066, %v4888, %v4887
      %v4890 = vrot.slane %v4728, 4
      %v4891 = vsel %vm4069, %v4890, %v4889
      %v4892 = vrot.slane %v4729, 3
      %v4893 = vsel %vm4072, %v4892, %v4891
      %v4894 = vrot.slane %v4730, 2
      %v4895 = vsel %vm4075, %v4894, %v4893
      %v4896 = vrot.slane %v4731, 1
      %v4897 = vsel %vm4078, %v4896, %v4895
      %v4898 = vrot.slane %v4733, 7
      %v4899 = vsel %vm4060, %v4898, %v4732
      %v4900 = vrot.slane %v4734, 6
      %v4901 = vsel %vm4063, %v4900, %v4899
      %v4902 = vrot.slane %v4735, 5
      %v4903 = vsel %vm4066, %v4902, %v4901
      %v4904 = vrot.slane %v4736, 4
      %v4905 = vsel %vm4069, %v4904, %v4903
      %v4906 = vrot.slane %v4737, 3
      %v4907 = vsel %vm4072, %v4906, %v4905
      %v4908 = vrot.slane %v4738, 2
      %v4909 = vsel %vm4075, %v4908, %v4907
      %v4910 = vrot.slane %v4739, 1
      %v4911 = vsel %vm4078, %v4910, %v4909
      %v4912 = vrot.slane %v4741, 7
      %v4913 = vsel %vm4060, %v4912, %v4740
      %v4914 = vrot.slane %v4742, 6
      %v4915 = vsel %vm4063, %v4914, %v4913
      %v4916 = vrot.slane %v4743, 5
      %v4917 = vsel %vm4066, %v4916, %v4915
      %v4918 = vrot.slane %v4744, 4
      %v4919 = vsel %vm4069, %v4918, %v4917
      %v4920 = vrot.slane %v4745, 3
      %v4921 = vsel %vm4072, %v4920, %v4919
      %v4922 = vrot.slane %v4746, 2
      %v4923 = vsel %vm4075, %v4922, %v4921
      %v4924 = vrot.slane %v4747, 1
      %v4925 = vsel %vm4078, %v4924, %v4923
      %v4926 = vsel %vm854, %v4827, 0
      %v4928 = vsel %vm854, %v4841, 0
      %v4930 = vsel %vm854, %v4855, 0
      %v4932 = vsel %vm854, %v4869, 0
      %v4934 = vsel %vm854, %v4883, 0
      %v4936 = vsel %vm854, %v4897, 0
      %v4938 = vsel %vm854, %v4911, 0
      %v4940 = vsel %vm854, %v4925, 0
      %4942 = vmatprep.subr.mxu0 0.0
      %4943 = vmatpush1.msra.mxu0 %v4749
      %4944 = vmatprep.subr.mxu0 0.0
      %4945 = vmatpush1.msra.mxu0 0.0
      %4946 = vmatprep.subr.mxu0 0.0
      %4947 = vmatpush1.msra.mxu0 0.0
      %4948 = vmatprep.subr.mxu0 0.0
      %4949 = vmatpush1.msra.mxu0 0.0
      %4950 = vmatprep.subr.mxu0 0.0
      %4951 = vmatpush1.msra.mxu0 0.0
      %4952 = vmatprep.subr.mxu0 0.0
      %4953 = vmatpush1.msra.mxu0 0.0
      %4954 = vmatprep.subr.mxu0 0.0
      %4955 = vmatpush1.msra.mxu0 0.0
      %4956 = vmatprep.subr.mxu0 0.0
      %4957 = vmatpush1.msra.mxu0 0.0
      %4958 = vmatprep.subr.mxu0 0.0
      %4959 = vmatpush1.msra.mxu0 0.0
      %4960 = vmatprep.subr.mxu0 0.0
      %4961 = vmatpush1.msra.mxu0 0.0
      %4962 = vmatprep.subr.mxu0 0.0
      %4963 = vmatpush1.msra.mxu0 0.0
      %4964 = vmatprep.subr.mxu0 0.0
      %4965 = vmatpush1.msra.mxu0 0.0
      %4966 = vmatprep.subr.mxu0 0.0
      %4967 = vmatpush1.msra.mxu0 0.0
      %4968 = vmatprep.subr.mxu0 0.0
      %4969 = vmatpush1.msra.mxu0 0.0
      %4970 = vmatprep.subr.mxu0 0.0
      %4971 = vmatpush1.msra.mxu0 0.0
      %4972 = vmatprep.subr.mxu0 0.0
      %4973 = vmatpush1.msra.mxu0 0.0
      %4974 = vmatprep.subr.mxu0 0.0
      %4975 = vmatpush1.msra.mxu0 0.0
      %4976 = vmatprep.subr.mxu0 0.0
      %4977 = vmatpush1.msra.mxu0 0.0
      %4978 = vmatprep.subr.mxu0 0.0
      %4979 = vmatpush1.msra.mxu0 0.0
      %4980 = vmatprep.subr.mxu0 0.0
      %4981 = vmatpush1.msra.mxu0 0.0
      %4982 = vmatprep.subr.mxu0 0.0
      %4983 = vmatpush1.msra.mxu0 0.0
      %4984 = vmatprep.subr.mxu0 0.0
      %4985 = vmatpush1.msra.mxu0 0.0
      %4986 = vmatprep.subr.mxu0 0.0
      %4987 = vmatpush1.msra.mxu0 0.0
      %4988 = vmatprep.subr.mxu0 0.0
      %4989 = vmatpush1.msra.mxu0 0.0
      %4990 = vmatprep.subr.mxu0 0.0
      %4991 = vmatpush1.msra.mxu0 0.0
      %4992 = vmatprep.subr.mxu0 0.0
      %4993 = vmatpush1.msra.mxu0 0.0
      %4994 = vmatprep.subr.mxu0 0.0
      %4995 = vmatpush1.msra.mxu0 0.0
      %4996 = vmatprep.subr.mxu0 0.0
      %4997 = vmatpush1.msra.mxu0 0.0
      %4998 = vmatprep.subr.mxu0 0.0
      %4999 = vmatpush1.msra.mxu0 0.0
      %5000 = vmatprep.subr.mxu0 0.0
      %5001 = vmatpush1.msra.mxu0 0.0
      %5002 = vmatprep.subr.mxu0 0.0
      %5003 = vmatpush1.msra.mxu0 0.0
      %5004 = vmatprep.subr.mxu0 0.0
      %5005 = vmatpush1.msra.mxu0 0.0
      %5006 = vmatprep.mubr.f32.mxu0 0.0
      %5007 = vmatmul.mubr.f32.gmra.mrb[0].mxu0 %v4926
      %v5008 = vpop.f32.mrb[0].mxu0
      %v5009 = vadd.f32 0.0, %v5008
      %v5010 = vpop.f32.mrb[0].mxu0
      %5011 = vmatprep.mubr.f32.mxu0 0.0
      %5012 = vmatmul.mubr.f32.gmra.mrb[0].mxu0 %v4928
      %v5013 = vpop.f32.mrb[0].mxu0
      %v5014 = vadd.f32 0.0, %v5013
      %v5015 = vpop.f32.mrb[0].mxu0
      %5016 = vmatprep.mubr.f32.mxu0 0.0
      %5017 = vmatmul.mubr.f32.gmra.mrb[0].mxu0 %v4930
      %v5018 = vpop.f32.mrb[0].mxu0
      %v5019 = vadd.f32 0.0, %v5018
      %v5020 = vpop.f32.mrb[0].mxu0
      %5021 = vmatprep.mubr.f32.mxu0 0.0
      %5022 = vmatmul.mubr.f32.gmra.mrb[0].mxu0 %v4932
      %v5023 = vpop.f32.mrb[0].mxu0
      %v5024 = vadd.f32 0.0, %v5023
      %v5025 = vpop.f32.mrb[0].mxu0
      %5026 = vmatprep.mubr.f32.mxu0 0.0
      %5027 = vmatmul.mubr.f32.gmra.mrb[0].mxu0 %v4934
      %v5028 = vpop.f32.mrb[0].mxu0
      %v5029 = vadd.f32 0.0, %v5028
      %v5030 = vpop.f32.mrb[0].mxu0
      %5031 = vmatprep.mubr.f32.mxu0 0.0
      %5032 = vmatmul.mubr.f32.gmra.mrb[0].mxu0 %v4936
      %v5033 = vpop.f32.mrb[0].mxu0
      %v5034 = vadd.f32 0.0, %v5033
      %v5035 = vpop.f32.mrb[0].mxu0
      %5036 = vmatprep.mubr.f32.mxu0 0.0
      %5037 = vmatmul.mubr.f32.gmra.mrb[0].mxu0 %v4938
      %v5038 = vpop.f32.mrb[0].mxu0
      %v5039 = vadd.f32 0.0, %v5038
      %v5040 = vpop.f32.mrb[0].mxu0
      %5041 = vmatprep.mubr.f32.mxu0 0.0
      %5042 = vmatmul.mubr.f32.gmra.mrb[0].mxu0 %v4940
      %v5043 = vpop.f32.mrb[0].mxu0
      %v5044 = vadd.f32 0.0, %v5043
      %v5045 = vpop.f32.mrb[0].mxu0
      %5046 = vdwg.mxu0
      %v5047 = vadd.f32 %v4676, %v5009
      %v5048 = vadd.f32 %v4677, %v5014
      %v5049 = vadd.f32 %v4678, %v5019
      %v5050 = vadd.f32 %v4679, %v5024
      %v5051 = vadd.f32 %v4680, %v5029
      %v5052 = vadd.f32 %v4681, %v5034
      %v5053 = vadd.f32 %v4682, %v5039
      %v5054 = vadd.f32 %v4683, %v5044
      %v5055 = vld [vmem:[#allocation2 + $0x3] sm:$0x1]
      %v5056 = vld [vmem:[#allocation2 + $0x7] sm:$0x1]
      %v5057 = vld [vmem:[#allocation2 + $0xb] sm:$0x1]
      %v5058 = vld [vmem:[#allocation2 + $0xf] sm:$0x1]
      %v5059 = vld [vmem:[#allocation2 + $0x13] sm:$0x1]
      %v5060 = vld [vmem:[#allocation2 + $0x17] sm:$0x1]
      %v5061 = vld [vmem:[#allocation2 + $0x1b] sm:$0x1]
      %v5062 = vld [vmem:[#allocation2 + $0x1f] sm:$0x1]
      %v5063 = vld [vmem:[#allocation2 + $0x23] sm:$0x1]
      %v5064 = vld [vmem:[#allocation2 + $0x27] sm:$0x1]
      %v5065 = vld [vmem:[#allocation2 + $0x2b] sm:$0x1]
      %v5066 = vld [vmem:[#allocation2 + $0x2f] sm:$0x1]
      %v5067 = vld [vmem:[#allocation2 + $0x33] sm:$0x1]
      %v5068 = vld [vmem:[#allocation2 + $0x37] sm:$0x1]
      %v5069 = vld [vmem:[#allocation2 + $0x3b] sm:$0x1]
      %v5070 = vld [vmem:[#allocation2 + $0x3f] sm:$0x1]
      %v5071 = vld [vmem:[#allocation2 + $0x43] sm:$0x1]
      %v5072 = vld [vmem:[#allocation2 + $0x47] sm:$0x1]
      %v5073 = vld [vmem:[#allocation2 + $0x4b] sm:$0x1]
      %v5074 = vld [vmem:[#allocation2 + $0x4f] sm:$0x1]
      %v5075 = vld [vmem:[#allocation2 + $0x53] sm:$0x1]
      %v5076 = vld [vmem:[#allocation2 + $0x57] sm:$0x1]
      %v5077 = vld [vmem:[#allocation2 + $0x5b] sm:$0x1]
      %v5078 = vld [vmem:[#allocation2 + $0x5f] sm:$0x1]
      %v5079 = vld [vmem:[#allocation2 + $0x63] sm:$0x1]
      %v5080 = vld [vmem:[#allocation2 + $0x67] sm:$0x1]
      %v5081 = vld [vmem:[#allocation2 + $0x6b] sm:$0x1]
      %v5082 = vld [vmem:[#allocation2 + $0x6f] sm:$0x1]
      %v5083 = vld [vmem:[#allocation2 + $0x73] sm:$0x1]
      %v5084 = vld [vmem:[#allocation2 + $0x77] sm:$0x1]
      %v5085 = vld [vmem:[#allocation2 + $0x7b] sm:$0x1]
      %v5086 = vld [vmem:[#allocation2 + $0x7f] sm:$0x1]
      %v5087 = vld [vmem:[#allocation2 + $0x83] sm:$0x1]
      %v5088 = vld [vmem:[#allocation2 + $0x87] sm:$0x1]
      %v5089 = vld [vmem:[#allocation2 + $0x8b] sm:$0x1]
      %v5090 = vld [vmem:[#allocation2 + $0x8f] sm:$0x1]
      %v5091 = vld [vmem:[#allocation2 + $0x93] sm:$0x1]
      %v5092 = vld [vmem:[#allocation2 + $0x97] sm:$0x1]
      %v5093 = vld [vmem:[#allocation2 + $0x9b] sm:$0x1]
      %v5094 = vld [vmem:[#allocation2 + $0x9f] sm:$0x1]
      %v5095 = vld [vmem:[#allocation2 + $0xa3] sm:$0x1]
      %v5096 = vld [vmem:[#allocation2 + $0xa7] sm:$0x1]
      %v5097 = vld [vmem:[#allocation2 + $0xab] sm:$0x1]
      %v5098 = vld [vmem:[#allocation2 + $0xaf] sm:$0x1]
      %v5099 = vld [vmem:[#allocation2 + $0xb3] sm:$0x1]
      %v5100 = vld [vmem:[#allocation2 + $0xb7] sm:$0x1]
      %v5101 = vld [vmem:[#allocation2 + $0xbb] sm:$0x1]
      %v5102 = vld [vmem:[#allocation2 + $0xbf] sm:$0x1]
      %v5103 = vld [vmem:[#allocation2 + $0xc3] sm:$0x1]
      %v5104 = vld [vmem:[#allocation2 + $0xc7] sm:$0x1]
      %v5105 = vld [vmem:[#allocation2 + $0xcb] sm:$0x1]
      %v5106 = vld [vmem:[#allocation2 + $0xcf] sm:$0x1]
      %v5107 = vld [vmem:[#allocation2 + $0xd3] sm:$0x1]
      %v5108 = vld [vmem:[#allocation2 + $0xd7] sm:$0x1]
      %v5109 = vld [vmem:[#allocation2 + $0xdb] sm:$0x1]
      %v5110 = vld [vmem:[#allocation2 + $0xdf] sm:$0x1]
      %v5111 = vld [vmem:[#allocation2 + $0xe3] sm:$0x1]
      %v5112 = vld [vmem:[#allocation2 + $0xe7] sm:$0x1]
      %v5113 = vld [vmem:[#allocation2 + $0xeb] sm:$0x1]
      %v5114 = vld [vmem:[#allocation2 + $0xef] sm:$0x1]
      %v5115 = vld [vmem:[#allocation2 + $0xf3] sm:$0x1]
      %v5116 = vld [vmem:[#allocation2 + $0xf7] sm:$0x1]
      %v5117 = vld [vmem:[#allocation2 + $0xfb] sm:$0x1]
      %v5118 = vld [vmem:[#allocation2 + $0xff] sm:$0x1]
      %s5119 = scalar_lea.vmem %s2, 24
      %v5120 = vld [vmem:[%s5119] sm:$0xff]
      %v5185 = vrot.slane %v5056, 7
      %v5186 = vsel %vm4060, %v5185, %v5055
      %v5187 = vrot.slane %v5057, 6
      %v5188 = vsel %vm4063, %v5187, %v5186
      %v5189 = vrot.slane %v5058, 5
      %v5190 = vsel %vm4066, %v5189, %v5188
      %v5191 = vrot.slane %v5059, 4
      %v5192 = vsel %vm4069, %v5191, %v5190
      %v5193 = vrot.slane %v5060, 3
      %v5194 = vsel %vm4072, %v5193, %v5192
      %v5195 = vrot.slane %v5061, 2
      %v5196 = vsel %vm4075, %v5195, %v5194
      %v5197 = vrot.slane %v5062, 1
      %v5198 = vsel %vm4078, %v5197, %v5196
      %v5199 = vrot.slane %v5064, 7
      %v5200 = vsel %vm4060, %v5199, %v5063
      %v5201 = vrot.slane %v5065, 6
      %v5202 = vsel %vm4063, %v5201, %v5200
      %v5203 = vrot.slane %v5066, 5
      %v5204 = vsel %vm4066, %v5203, %v5202
      %v5205 = vrot.slane %v5067, 4
      %v5206 = vsel %vm4069, %v5205, %v5204
      %v5207 = vrot.slane %v5068, 3
      %v5208 = vsel %vm4072, %v5207, %v5206
      %v5209 = vrot.slane %v5069, 2
      %v5210 = vsel %vm4075, %v5209, %v5208
      %v5211 = vrot.slane %v5070, 1
      %v5212 = vsel %vm4078, %v5211, %v5210
      %v5213 = vrot.slane %v5072, 7
      %v5214 = vsel %vm4060, %v5213, %v5071
      %v5215 = vrot.slane %v5073, 6
      %v5216 = vsel %vm4063, %v5215, %v5214
      %v5217 = vrot.slane %v5074, 5
      %v5218 = vsel %vm4066, %v5217, %v5216
      %v5219 = vrot.slane %v5075, 4
      %v5220 = vsel %vm4069, %v5219, %v5218
      %v5221 = vrot.slane %v5076, 3
      %v5222 = vsel %vm4072, %v5221, %v5220
      %v5223 = vrot.slane %v5077, 2
      %v5224 = vsel %vm4075, %v5223, %v5222
      %v5225 = vrot.slane %v5078, 1
      %v5226 = vsel %vm4078, %v5225, %v5224
      %v5227 = vrot.slane %v5080, 7
      %v5228 = vsel %vm4060, %v5227, %v5079
      %v5229 = vrot.slane %v5081, 6
      %v5230 = vsel %vm4063, %v5229, %v5228
      %v5231 = vrot.slane %v5082, 5
      %v5232 = vsel %vm4066, %v5231, %v5230
      %v5233 = vrot.slane %v5083, 4
      %v5234 = vsel %vm4069, %v5233, %v5232
      %v5235 = vrot.slane %v5084, 3
      %v5236 = vsel %vm4072, %v5235, %v5234
      %v5237 = vrot.slane %v5085, 2
      %v5238 = vsel %vm4075, %v5237, %v5236
      %v5239 = vrot.slane %v5086, 1
      %v5240 = vsel %vm4078, %v5239, %v5238
      %v5241 = vrot.slane %v5088, 7
      %v5242 = vsel %vm4060, %v5241, %v5087
      %v5243 = vrot.slane %v5089, 6
      %v5244 = vsel %vm4063, %v5243, %v5242
      %v5245 = vrot.slane %v5090, 5
      %v5246 = vsel %vm4066, %v5245, %v5244
      %v5247 = vrot.slane %v5091, 4
      %v5248 = vsel %vm4069, %v5247, %v5246
      %v5249 = vrot.slane %v5092, 3
      %v5250 = vsel %vm4072, %v5249, %v5248
      %v5251 = vrot.slane %v5093, 2
      %v5252 = vsel %vm4075, %v5251, %v5250
      %v5253 = vrot.slane %v5094, 1
      %v5254 = vsel %vm4078, %v5253, %v5252
      %v5255 = vrot.slane %v5096, 7
      %v5256 = vsel %vm4060, %v5255, %v5095
      %v5257 = vrot.slane %v5097, 6
      %v5258 = vsel %vm4063, %v5257, %v5256
      %v5259 = vrot.slane %v5098, 5
      %v5260 = vsel %vm4066, %v5259, %v5258
      %v5261 = vrot.slane %v5099, 4
      %v5262 = vsel %vm4069, %v5261, %v5260
      %v5263 = vrot.slane %v5100, 3
      %v5264 = vsel %vm4072, %v5263, %v5262
      %v5265 = vrot.slane %v5101, 2
      %v5266 = vsel %vm4075, %v5265, %v5264
      %v5267 = vrot.slane %v5102, 1
      %v5268 = vsel %vm4078, %v5267, %v5266
      %v5269 = vrot.slane %v5104, 7
      %v5270 = vsel %vm4060, %v5269, %v5103
      %v5271 = vrot.slane %v5105, 6
      %v5272 = vsel %vm4063, %v5271, %v5270
      %v5273 = vrot.slane %v5106, 5
      %v5274 = vsel %vm4066, %v5273, %v5272
      %v5275 = vrot.slane %v5107, 4
      %v5276 = vsel %vm4069, %v5275, %v5274
      %v5277 = vrot.slane %v5108, 3
      %v5278 = vsel %vm4072, %v5277, %v5276
      %v5279 = vrot.slane %v5109, 2
      %v5280 = vsel %vm4075, %v5279, %v5278
      %v5281 = vrot.slane %v5110, 1
      %v5282 = vsel %vm4078, %v5281, %v5280
      %v5283 = vrot.slane %v5112, 7
      %v5284 = vsel %vm4060, %v5283, %v5111
      %v5285 = vrot.slane %v5113, 6
      %v5286 = vsel %vm4063, %v5285, %v5284
      %v5287 = vrot.slane %v5114, 5
      %v5288 = vsel %vm4066, %v5287, %v5286
      %v5289 = vrot.slane %v5115, 4
      %v5290 = vsel %vm4069, %v5289, %v5288
      %v5291 = vrot.slane %v5116, 3
      %v5292 = vsel %vm4072, %v5291, %v5290
      %v5293 = vrot.slane %v5117, 2
      %v5294 = vsel %vm4075, %v5293, %v5292
      %v5295 = vrot.slane %v5118, 1
      %v5296 = vsel %vm4078, %v5295, %v5294
      %v5297 = vsel %vm854, %v5198, 0
      %v5299 = vsel %vm854, %v5212, 0
      %v5301 = vsel %vm854, %v5226, 0
      %v5303 = vsel %vm854, %v5240, 0
      %v5305 = vsel %vm854, %v5254, 0
      %v5307 = vsel %vm854, %v5268, 0
      %v5309 = vsel %vm854, %v5282, 0
      %v5311 = vsel %vm854, %v5296, 0
      %5313 = vmatprep.subr.mxu0 0.0
      %5314 = vmatpush1.msra.mxu0 %v5120
      %5315 = vmatprep.subr.mxu0 0.0
      %5316 = vmatpush1.msra.mxu0 0.0
      %5317 = vmatprep.subr.mxu0 0.0
      %5318 = vmatpush1.msra.mxu0 0.0
      %5319 = vmatprep.subr.mxu0 0.0
      %5320 = vmatpush1.msra.mxu0 0.0
      %5321 = vmatprep.subr.mxu0 0.0
      %5322 = vmatpush1.msra.mxu0 0.0
      %5323 = vmatprep.subr.mxu0 0.0
      %5324 = vmatpush1.msra.mxu0 0.0
      %5325 = vmatprep.subr.mxu0 0.0
      %5326 = vmatpush1.msra.mxu0 0.0
      %5327 = vmatprep.subr.mxu0 0.0
      %5328 = vmatpush1.msra.mxu0 0.0
      %5329 = vmatprep.subr.mxu0 0.0
      %5330 = vmatpush1.msra.mxu0 0.0
      %5331 = vmatprep.subr.mxu0 0.0
      %5332 = vmatpush1.msra.mxu0 0.0
      %5333 = vmatprep.subr.mxu0 0.0
      %5334 = vmatpush1.msra.mxu0 0.0
      %5335 = vmatprep.subr.mxu0 0.0
      %5336 = vmatpush1.msra.mxu0 0.0
      %5337 = vmatprep.subr.mxu0 0.0
      %5338 = vmatpush1.msra.mxu0 0.0
      %5339 = vmatprep.subr.mxu0 0.0
      %5340 = vmatpush1.msra.mxu0 0.0
      %5341 = vmatprep.subr.mxu0 0.0
      %5342 = vmatpush1.msra.mxu0 0.0
      %5343 = vmatprep.subr.mxu0 0.0
      %5344 = vmatpush1.msra.mxu0 0.0
      %5345 = vmatprep.subr.mxu0 0.0
      %5346 = vmatpush1.msra.mxu0 0.0
      %5347 = vmatprep.subr.mxu0 0.0
      %5348 = vmatpush1.msra.mxu0 0.0
      %5349 = vmatprep.subr.mxu0 0.0
      %5350 = vmatpush1.msra.mxu0 0.0
      %5351 = vmatprep.subr.mxu0 0.0
      %5352 = vmatpush1.msra.mxu0 0.0
      %5353 = vmatprep.subr.mxu0 0.0
      %5354 = vmatpush1.msra.mxu0 0.0
      %5355 = vmatprep.subr.mxu0 0.0
      %5356 = vmatpush1.msra.mxu0 0.0
      %5357 = vmatprep.subr.mxu0 0.0
      %5358 = vmatpush1.msra.mxu0 0.0
      %5359 = vmatprep.subr.mxu0 0.0
      %5360 = vmatpush1.msra.mxu0 0.0
      %5361 = vmatprep.subr.mxu0 0.0
      %5362 = vmatpush1.msra.mxu0 0.0
      %5363 = vmatprep.subr.mxu0 0.0
      %5364 = vmatpush1.msra.mxu0 0.0
      %5365 = vmatprep.subr.mxu0 0.0
      %5366 = vmatpush1.msra.mxu0 0.0
      %5367 = vmatprep.subr.mxu0 0.0
      %5368 = vmatpush1.msra.mxu0 0.0
      %5369 = vmatprep.subr.mxu0 0.0
      %5370 = vmatpush1.msra.mxu0 0.0
      %5371 = vmatprep.subr.mxu0 0.0
      %5372 = vmatpush1.msra.mxu0 0.0
      %5373 = vmatprep.subr.mxu0 0.0
      %5374 = vmatpush1.msra.mxu0 0.0
      %5375 = vmatprep.subr.mxu0 0.0
      %5376 = vmatpush1.msra.mxu0 0.0
      %5377 = vmatprep.mubr.f32.mxu0 0.0
      %5378 = vmatmul.mubr.f32.gmra.mrb[0].mxu0 %v5297
      %v5379 = vpop.f32.mrb[0].mxu0
      %v5380 = vadd.f32 0.0, %v5379
      %v5381 = vpop.f32.mrb[0].mxu0
      %5382 = vmatprep.mubr.f32.mxu0 0.0
      %5383 = vmatmul.mubr.f32.gmra.mrb[0].mxu0 %v5299
      %v5384 = vpop.f32.mrb[0].mxu0
      %v5385 = vadd.f32 0.0, %v5384
      %v5386 = vpop.f32.mrb[0].mxu0
      %5387 = vmatprep.mubr.f32.mxu0 0.0
      %5388 = vmatmul.mubr.f32.gmra.mrb[0].mxu0 %v5301
      %v5389 = vpop.f32.mrb[0].mxu0
      %v5390 = vadd.f32 0.0, %v5389
      %v5391 = vpop.f32.mrb[0].mxu0
      %5392 = vmatprep.mubr.f32.mxu0 0.0
      %5393 = vmatmul.mubr.f32.gmra.mrb[0].mxu0 %v5303
      %v5394 = vpop.f32.mrb[0].mxu0
      %v5395 = vadd.f32 0.0, %v5394
      %v5396 = vpop.f32.mrb[0].mxu0
      %5397 = vmatprep.mubr.f32.mxu0 0.0
      %5398 = vmatmul.mubr.f32.gmra.mrb[0].mxu0 %v5305
      %v5399 = vpop.f32.mrb[0].mxu0
      %v5400 = vadd.f32 0.0, %v5399
      %v5401 = vpop.f32.mrb[0].mxu0
      %5402 = vmatprep.mubr.f32.mxu0 0.0
      %5403 = vmatmul.mubr.f32.gmra.mrb[0].mxu0 %v5307
      %v5404 = vpop.f32.mrb[0].mxu0
      %v5405 = vadd.f32 0.0, %v5404
      %v5406 = vpop.f32.mrb[0].mxu0
      %5407 = vmatprep.mubr.f32.mxu0 0.0
      %5408 = vmatmul.mubr.f32.gmra.mrb[0].mxu0 %v5309
      %v5409 = vpop.f32.mrb[0].mxu0
      %v5410 = vadd.f32 0.0, %v5409
      %v5411 = vpop.f32.mrb[0].mxu0
      %5412 = vmatprep.mubr.f32.mxu0 0.0
      %5413 = vmatmul.mubr.f32.gmra.mrb[0].mxu0 %v5311
      %v5414 = vpop.f32.mrb[0].mxu0
      %v5415 = vadd.f32 0.0, %v5414
      %v5416 = vpop.f32.mrb[0].mxu0
      %5417 = vdwg.mxu0
      %v5418 = vadd.f32 %v5047, %v5380
      %v5419 = vadd.f32 %v5048, %v5385
      %v5420 = vadd.f32 %v5049, %v5390
      %v5421 = vadd.f32 %v5050, %v5395
      %v5422 = vadd.f32 %v5051, %v5400
      %v5423 = vadd.f32 %v5052, %v5405
      %v5424 = vadd.f32 %v5053, %v5410
      %v5425 = vadd.f32 %v5054, %v5415
      %v5426 = vmax.f32 %v5418, 0.0
      %v5427 = vmax.f32 %v5419, 0.0
      %v5428 = vmax.f32 %v5420, 0.0
      %v5429 = vmax.f32 %v5421, 0.0
      %v5430 = vmax.f32 %v5422, 0.0
      %v5431 = vmax.f32 %v5423, 0.0
      %v5432 = vmax.f32 %v5424, 0.0
      %v5433 = vmax.f32 %v5425, 0.0
      %v5434 = vld [vmem:[%s4] sm:$0xff]
      %v5435 = vld [vmem:[%s4 + $0x8] sm:$0xff]
      %v5436 = vld [vmem:[%s4 + $0x10] sm:$0xff]
      %v5437 = vld [vmem:[%s4 + $0x18] sm:$0xff]
      %v5438 = vld [vmem:[%s5] sm:$0x1]
      %v5440 = vlaneseq
      %v5441 = vshrl.u32 %v5440, 7
      %v5442 = vsub.s32 0, %v5441
      %v5443 = vrot.slane %v5438, %v5442
      %vm5445 = vcmask 261120
      %v5447 = vsel %vm5445, %v5426, 0
      %v5450 = vsel %vm5445, %v5427, 0
      %v5453 = vsel %vm5445, %v5428, 0
      %v5456 = vsel %vm5445, %v5429, 0
      %v5459 = vsel %vm5445, %v5430, 0
      %v5462 = vsel %vm5445, %v5431, 0
      %v5465 = vsel %vm5445, %v5432, 0
      %v5468 = vsel %vm5445, %v5433, 0
      %5470 = vmatprep.subr.mxu0 0.0
      %5471 = vmatpush1.msra.mxu0 %v5434
      %5472 = vmatprep.subr.mxu0 0.0
      %5473 = vmatpush1.msra.mxu0 %v5435
      %5474 = vmatprep.subr.mxu0 0.0
      %5475 = vmatpush1.msra.mxu0 %v5436
      %5476 = vmatprep.subr.mxu0 0.0
      %5477 = vmatpush1.msra.mxu0 %v5437
      %5478 = vmatprep.subr.mxu0 0.0
      %5479 = vmatpush1.msra.mxu0 0.0
      %5480 = vmatprep.subr.mxu0 0.0
      %5481 = vmatpush1.msra.mxu0 0.0
      %5482 = vmatprep.subr.mxu0 0.0
      %5483 = vmatpush1.msra.mxu0 0.0
      %5484 = vmatprep.subr.mxu0 0.0
      %5485 = vmatpush1.msra.mxu0 0.0
      %5486 = vmatprep.subr.mxu0 0.0
      %5487 = vmatpush1.msra.mxu0 0.0
      %5488 = vmatprep.subr.mxu0 0.0
      %5489 = vmatpush1.msra.mxu0 0.0
      %5490 = vmatprep.subr.mxu0 0.0
      %5491 = vmatpush1.msra.mxu0 0.0
      %5492 = vmatprep.subr.mxu0 0.0
      %5493 = vmatpush1.msra.mxu0 0.0
      %5494 = vmatprep.subr.mxu0 0.0
      %5495 = vmatpush1.msra.mxu0 0.0
      %5496 = vmatprep.subr.mxu0 0.0
      %5497 = vmatpush1.msra.mxu0 0.0
      %5498 = vmatprep.subr.mxu0 0.0
      %5499 = vmatpush1.msra.mxu0 0.0
      %5500 = vmatprep.subr.mxu0 0.0
      %5501 = vmatpush1.msra.mxu0 0.0
      %5502 = vmatprep.subr.mxu0 0.0
      %5503 = vmatpush1.msra.mxu0 0.0
      %5504 = vmatprep.subr.mxu0 0.0
      %5505 = vmatpush1.msra.mxu0 0.0
      %5506 = vmatprep.subr.mxu0 0.0
      %5507 = vmatpush1.msra.mxu0 0.0
      %5508 = vmatprep.subr.mxu0 0.0
      %5509 = vmatpush1.msra.mxu0 0.0
      %5510 = vmatprep.subr.mxu0 0.0
      %5511 = vmatpush1.msra.mxu0 0.0
      %5512 = vmatprep.subr.mxu0 0.0
      %5513 = vmatpush1.msra.mxu0 0.0
      %5514 = vmatprep.subr.mxu0 0.0
      %5515 = vmatpush1.msra.mxu0 0.0
      %5516 = vmatprep.subr.mxu0 0.0
      %5517 = vmatpush1.msra.mxu0 0.0
      %5518 = vmatprep.subr.mxu0 0.0
      %5519 = vmatpush1.msra.mxu0 0.0
      %5520 = vmatprep.subr.mxu0 0.0
      %5521 = vmatpush1.msra.mxu0 0.0
      %5522 = vmatprep.subr.mxu0 0.0
      %5523 = vmatpush1.msra.mxu0 0.0
      %5524 = vmatprep.subr.mxu0 0.0
      %5525 = vmatpush1.msra.mxu0 0.0
      %5526 = vmatprep.subr.mxu0 0.0
      %5527 = vmatpush1.msra.mxu0 0.0
      %5528 = vmatprep.subr.mxu0 0.0
      %5529 = vmatpush1.msra.mxu0 0.0
      %5530 = vmatprep.subr.mxu0 0.0
      %5531 = vmatpush1.msra.mxu0 0.0
      %5532 = vmatprep.subr.mxu0 0.0
      %5533 = vmatpush1.msra.mxu0 0.0
      %5534 = vmatprep.mubr.f32.mxu0 0.0
      %5535 = vmatmul.mubr.f32.gmra.mrb[0].mxu0 %v5447
      %v5536 = vpop.f32.mrb[0].mxu0
      %v5537 = vadd.f32 %v5443, %v5536
      %v5538 = vpop.f32.mrb[0].mxu0
      %5539 = vmatprep.mubr.f32.mxu0 0.0
      %5540 = vmatmul.mubr.f32.gmra.mrb[0].mxu0 %v5450
      %v5541 = vpop.f32.mrb[0].mxu0
      %v5542 = vadd.f32 %v5443, %v5541
      %v5543 = vpop.f32.mrb[0].mxu0
      %5544 = vmatprep.mubr.f32.mxu0 0.0
      %5545 = vmatmul.mubr.f32.gmra.mrb[0].mxu0 %v5453
      %v5546 = vpop.f32.mrb[0].mxu0
      %v5547 = vadd.f32 %v5443, %v5546
      %v5548 = vpop.f32.mrb[0].mxu0
      %5549 = vmatprep.mubr.f32.mxu0 0.0
      %5550 = vmatmul.mubr.f32.gmra.mrb[0].mxu0 %v5456
      %v5551 = vpop.f32.mrb[0].mxu0
      %v5552 = vadd.f32 %v5443, %v5551
      %v5553 = vpop.f32.mrb[0].mxu0
      %5554 = vmatprep.mubr.f32.mxu0 0.0
      %5555 = vmatmul.mubr.f32.gmra.mrb[0].mxu0 %v5459
      %v5556 = vpop.f32.mrb[0].mxu0
      %v5557 = vadd.f32 %v5443, %v5556
      %v5558 = vpop.f32.mrb[0].mxu0
      %5559 = vmatprep.mubr.f32.mxu0 0.0
      %5560 = vmatmul.mubr.f32.gmra.mrb[0].mxu0 %v5462
      %v5561 = vpop.f32.mrb[0].mxu0
      %v5562 = vadd.f32 %v5443, %v5561
      %v5563 = vpop.f32.mrb[0].mxu0
      %5564 = vmatprep.mubr.f32.mxu0 0.0
      %5565 = vmatmul.mubr.f32.gmra.mrb[0].mxu0 %v5465
      %v5566 = vpop.f32.mrb[0].mxu0
      %v5567 = vadd.f32 %v5443, %v5566
      %v5568 = vpop.f32.mrb[0].mxu0
      %5569 = vmatprep.mubr.f32.mxu0 0.0
      %5570 = vmatmul.mubr.f32.gmra.mrb[0].mxu0 %v5468
      %v5571 = vpop.f32.mrb[0].mxu0
      %v5572 = vadd.f32 %v5443, %v5571
      %v5573 = vpop.f32.mrb[0].mxu0
      %5574 = vdwg.mxu0
      %vm5575 = vcmask 15360
      %5576 = vst.msk [vmem:[%s275] sm:$0xff] %vm5575, %v5537
      %5577 = vst.msk [vmem:[%s275 + $0x8] sm:$0xff] %vm5575, %v5542
      %5578 = vst.msk [vmem:[%s275 + $0x10] sm:$0xff] %vm5575, %v5547
      %5579 = vst.msk [vmem:[%s275 + $0x18] sm:$0xff] %vm5575, %v5552
      %5580 = vst.msk [vmem:[%s275 + $0x20] sm:$0xff] %vm5575, %v5557
      %5581 = vst.msk [vmem:[%s275 + $0x28] sm:$0xff] %vm5575, %v5562
      %5582 = vst.msk [vmem:[%s275 + $0x30] sm:$0xff] %vm5575, %v5567
      %5583 = vst.msk [vmem:[%s275 + $0x38] sm:$0xff] %vm5575, %v5572
      %s5584 = smul.u32 8, %s17
      %p5585 = scmp.lt.s32.totalorder %s5584, 15
      %s5586 = scalar_select %p5585, %s5584, 15
      %s5587 = smul.addr %s5586, 8
      %s5588 = scalar_lea.vmem %s6, %s5587
      // Predicated region
      $region45: #{tpu_custom_call.1} parent=43 // pred_check
        %p5589 = pneg %p171
      $region46: #{tpu_custom_call.1} parent=43 // pred_check_branch
        %5591 = sbr.rel (%p5589) target = $region48
      $region47: #{tpu_custom_call.1} parent=43 // pred_region
        %s5592 = smul.u32 8, %s17
      $region48: #{tpu_custom_call.1} parent=43 // pred_fallthru
        _
    $region44: #{tpu_custom_call.1} parent=5 // pred_fallthru
      _
    %p5593 = scmp.le.s32.totalorder 2, %s12
    // Predicated region
    $region49: #{tpu_custom_call.1} parent=5 // pred_check
      %p5594 = pneg %p5593
    $region50: #{tpu_custom_call.1} parent=5 // pred_check_branch
      %5596 = sbr.rel (%p5594) target = $region52
    $region51: #{tpu_custom_call.1} parent=5 // pred_region
      %s5597 = ssub.s32 %s12, 2
      // Predicated region
      $region53: #{tpu_custom_call.1} parent=51 // pred_check
        %p5598 = pneg %p177
      $region54: #{tpu_custom_call.1} parent=51 // pred_check_branch
        %5600 = sbr.rel (%p5598) target = $region56
      $region55: #{tpu_custom_call.1} parent=51 // pred_region
        %s5601 = smul.u32 8, %s18
        %p5602 = scmp.lt.s32.totalorder %s5601, 15
        %s5603 = scalar_select %p5602, %s5601, 15
        %s5604 = smul.addr %s5603, 8
        %s5605 = scalar_lea.vmem %s6, %s5604
      $region56: #{tpu_custom_call.1} parent=51 // pred_fallthru
        _
    $region52: #{tpu_custom_call.1} parent=5 // pred_fallthru
      _
  $region6: #{tpu_custom_call.1} parent=0 // loop_footer
    %s16 = sadd.s32 1, %s12
  $region7: #{tpu_custom_call.1} parent=0 // loop_footer_branch
    %11 = sbr.rel target = $region3
  $region8: #{tpu_custom_call.1} parent=0 // loop_exit
    _

</llo_original>
